<compile_context>
chip_gen: v5e
topology: v5e:2x2
jax: 0.10.0
libtpu: 0.0.40
codegen_flags: <defaults>
</compile_context>

<pallas_src>
import functools

import jax
import jax.numpy as jnp
from jax.experimental import pallas as pl
from jax.experimental.pallas import tpu as pltpu

BN_EPS = 1e-5
NEG_INF = -1e30                       # softmax mask for padded class lanes
H1, H2, H3 = 1000, 256, 10            # PyTorch hidden widths
H1P, H2P, H3P = 1024, 256, 128        # lane-padded widths (multiples of 128)
FUSED_ACT_BYTES = 4 * 1024 * 1024     # fused path if f32 activation <= 4 MiB
MAX_TILE_N = 512                      # batch-tile cap for the gridded path


def _round_up(x, m):
    return ((x + m - 1) // m) * m


def _pad2(a, shape, fill=0.0):
    pads = [(0, t - s) for s, t in zip(a.shape, shape)]
    return jnp.pad(a, pads, constant_values=fill)


# ----------------------------------------------------------------------------
# Shared MLP head: bf16 matmuls with f32 accumulation, bf16 tanh, exact softmax
# ----------------------------------------------------------------------------
def _mlp_head(h, w1_ref, b1_ref, w2_ref, b2_ref, w3_ref, b3_ref, w4_ref,
              b4_ref):
    """h: (rows, F) f32 normalized activation -> (rows, NCP) softmax probs."""
    z = jnp.dot(h.astype(jnp.bfloat16), w1_ref[...],
                preferred_element_type=jnp.float32) + b1_ref[...]
    h = jnp.tanh(z.astype(jnp.bfloat16))            # bf16 tanh feeds bf16 MXU
    z = jnp.dot(h, w2_ref[...], preferred_element_type=jnp.float32) + b2_ref[...]
    h = jnp.tanh(z.astype(jnp.bfloat16))
    z = jnp.dot(h, w3_ref[...], preferred_element_type=jnp.float32) + b3_ref[...]
    h = jnp.tanh(z.astype(jnp.bfloat16))
    logits = jnp.dot(h, w4_ref[...],
                     preferred_element_type=jnp.float32) + b4_ref[...]
    # Softmax over classes; padded class lanes carry a -1e30 bias -> exp()==0.
    m = jnp.max(logits, axis=1, keepdims=True)
    e = jnp.exp(logits - m)
    return e / jnp.sum(e, axis=1, keepdims=True)    # exact divide (tiny)


# ----------------------------------------------------------------------------
# Fused kernel (small batches): ReLU + BN (batch stats) + MLP, one pallas_call
#   x_ref:              (N, F) f32, whole batch resident in VMEM
#   gamma_f/beta_f:     (1, F) BN affine expanded per feature
#   sel_fc (F, CP) / sel_cf (CP, F): 0/1 selectors implementing the per-channel
#     reduction / per-feature broadcast without any in-kernel reshape.
# ----------------------------------------------------------------------------
def fused_cls_kernel(x_ref, gamma_f_ref, beta_f_ref, sel_cf_ref, sel_fc_ref,
                     w1_ref, b1_ref, w2_ref, b2_ref, w3_ref, b3_ref,
                     w4_ref, b4_ref, o_ref, *, inv_cnt):
    xr = jnp.maximum(x_ref[...], 0.0)                               # ReLU
    s_f = jnp.sum(xr, axis=0, keepdims=True)                        # (1, F)
    mean_c = jnp.dot(s_f, sel_fc_ref[...],
                     preferred_element_type=jnp.float32) * inv_cnt  # (1, CP)
    mean_f = jnp.dot(mean_c, sel_cf_ref[...],
                     preferred_element_type=jnp.float32)            # (1, F)
    # exact two-pass (mean-subtracted) biased variance
    d = xr - mean_f
    v_f = jnp.sum(d * d, axis=0, keepdims=True)                     # (1, F)
    var_c = jnp.dot(v_f, sel_fc_ref[...],
                    preferred_element_type=jnp.float32) * inv_cnt
    inv_c = jax.lax.rsqrt(jnp.maximum(var_c, 0.0) + BN_EPS)
    inv_f = jnp.dot(inv_c, sel_cf_ref[...],
                    preferred_element_type=jnp.float32)             # (1, F)
    h = d * (gamma_f_ref[...] * inv_f) + beta_f_ref[...]            # BN apply
    o_ref[...] = _mlp_head(h, w1_ref, b1_ref, w2_ref, b2_ref,
                           w3_ref, b3_ref, w4_ref, b4_ref)


# ----------------------------------------------------------------------------
# Gridded fallback, kernel 1: BN batch statistics accumulated over the batch
#   grid axis.  Emits lane-dense per-feature (1, F) scale / shift.
# ----------------------------------------------------------------------------
def bn_stats_kernel(x_ref, gamma_f_ref, beta_f_ref, sel_cf_ref, sel_fc_ref,
                    scale_ref, shift_ref, s_acc, s2_acc, *, inv_cnt):
    i = pl.program_id(0)

    @pl.when(i == 0)
    def _():
        s_acc[...] = jnp.zeros_like(s_acc)
        s2_acc[...] = jnp.zeros_like(s2_acc)

    xr = jnp.maximum(x_ref[...], 0.0)                   # (tile_n, F)
    s_acc[...] += jnp.sum(xr, axis=0, keepdims=True)
    s2_acc[...] += jnp.sum(xr * xr, axis=0, keepdims=True)

    @pl.when(i == pl.num_programs(0) - 1)
    def _():
        s_c = jnp.dot(s_acc[...], sel_fc_ref[...],
                      preferred_element_type=jnp.float32)
        s2_c = jnp.dot(s2_acc[...], sel_fc_ref[...],
                       preferred_element_type=jnp.float32)
        mean_c = s_c * inv_cnt
        # single-pass biased variance, clamped at 0 against cancellation
        var_c = jnp.maximum(s2_c * inv_cnt - mean_c * mean_c, 0.0)
        inv_c = jax.lax.rsqrt(var_c + BN_EPS)
        mean_f = jnp.dot(mean_c, sel_cf_ref[...],
                         preferred_element_type=jnp.float32)
        inv_f = jnp.dot(inv_c, sel_cf_ref[...],
                        preferred_element_type=jnp.float32)
        scale = gamma_f_ref[...] * inv_f
        scale_ref[...] = scale
        shift_ref[...] = beta_f_ref[...] - mean_f * scale


# ----------------------------------------------------------------------------
# Gridded fallback, kernel 2: fused ReLU + BN affine + MLP head per batch tile
# ----------------------------------------------------------------------------
def mlp_kernel(x_ref, scale_ref, shift_ref, w1_ref, b1_ref, w2_ref, b2_ref,
               w3_ref, b3_ref, w4_ref, b4_ref, o_ref):
    h = jnp.maximum(x_ref[...], 0.0) * scale_ref[...] + shift_ref[...]
    o_ref[...] = _mlp_head(h, w1_ref, b1_ref, w2_ref, b2_ref,
                           w3_ref, b3_ref, w4_ref, b4_ref)


def _mlp_cost(rows, feat, ncp):
    flops = 2 * rows * (feat * H1P + H1P * H2P + H2P * H3P + H3P * ncp)
    trans = rows * (H1P + H2P + H3P + ncp)          # tanh + exp
    return int(flops), int(trans)


@functools.partial(jax.jit, static_argnames=("num_classes", "use_fused"))
def classification_forward(x, params, num_classes=2, use_fused=None):
    """x: (N, C, H, W) float32 (same NCHW layout as PyTorch)."""
    N, C, H, W = x.shape
    (gamma_f, beta_f, sel_cf, sel_fc,
     w1, b1, w2, b2, w3, b3, w4, b4) = params
    F = gamma_f.shape[1]
    assert F == C * H * W and w1.shape[0] == F
    ncp = w4.shape[1]                                    # padded #classes
    inv_cnt = 1.0 / float(N * H * W)                     # BN count per channel
    x_flat = x.reshape(N, F)                             # zero-copy NCHW view

    vmem = pl.BlockSpec(memory_space=pltpu.MemorySpace.VMEM)
    wbytes = int(sum(a.size * a.dtype.itemsize for a in
                     (w1, b1, w2, b2, w3, b3, w4, b4, sel_cf, sel_fc)))

    fused = use_fused
    if fused is None:
        # Fuse whenever the activation fits comfortably next to the weights;
        # conservative w.r.t. v7x's 64 MiB VMEM / 32 MiB default scoped limit.
        fused = N * F * 4 <= FUSED_ACT_BYTES

    if fused:
        flops, trans = _mlp_cost(N, F, ncp)
        out_padded = pl.pallas_call(
            functools.partial(fused_cls_kernel, inv_cnt=inv_cnt),
            out_shape=jax.ShapeDtypeStruct((N, ncp), jnp.float32),
            in_specs=[vmem] * 13,
            out_specs=vmem,
            cost_estimate=pl.CostEstimate(
                flops=flops + 6 * N * F,
                transcendentals=trans,
                bytes_accessed=4 * N * F + wbytes + 4 * N * ncp),
        )(x_flat, gamma_f, beta_f, sel_cf, sel_fc,
          w1, b1, w2, b2, w3, b3, w4, b4)
        return out_padded[:, :num_classes]

    # ---- large-batch fallback: gridded stats + gridded MLP ----
    # >=2 grid steps (so v7x's two TensorCores both get work), tile capped at
    # MAX_TILE_N rows; zero-pad the batch to a multiple of the tile (zero rows
    # add nothing to the BN sums; their MLP rows are sliced off at the end).
    tile_n = min(MAX_TILE_N, _round_up(max(pl.cdiv(N, 2), 8), 8))
    n_pad = _round_up(N, tile_n)
    if n_pad != N:
        x_flat = jnp.pad(x_flat, ((0, n_pad - N), (0, 0)))
    grid = (n_pad // tile_n,)

    cp = sel_cf.shape[0]
    const = lambda i: (0, 0)
    # Constant operands: single-buffered (their block index never changes).
    cspec = lambda shape: pl.BlockSpec(shape, const,
                                       pipeline_mode=pl.Buffered(1))

    scale_f, shift_f = pl.pallas_call(
        functools.partial(bn_stats_kernel, inv_cnt=inv_cnt),
        grid=grid,
        out_shape=(jax.ShapeDtypeStruct((1, F), jnp.float32),
                   jax.ShapeDtypeStruct((1, F), jnp.float32)),
        in_specs=[pl.BlockSpec((tile_n, F), lambda i: (i, 0)),
                  cspec((1, F)), cspec((1, F)),
                  cspec((cp, F)), cspec((F, cp))],
        out_specs=(pl.BlockSpec((1, F), const), pl.BlockSpec((1, F), const)),
        scratch_shapes=[pltpu.VMEM((1, F), jnp.float32),
                        pltpu.VMEM((1, F), jnp.float32)],
        compiler_params=pltpu.CompilerParams(
            dimension_semantics=("arbitrary",)),
        cost_estimate=pl.CostEstimate(
            flops=5 * n_pad * F, transcendentals=0,
            bytes_accessed=4 * n_pad * F + 8 * F),
    )(x_flat, gamma_f, beta_f, sel_cf, sel_fc)

    flops, trans = _mlp_cost(n_pad, F, ncp)
    out_padded = pl.pallas_call(
        mlp_kernel,
        grid=grid,
        out_shape=jax.ShapeDtypeStruct((n_pad, ncp), jnp.float32),
        in_specs=[pl.BlockSpec((tile_n, F), lambda i: (i, 0)),
                  cspec((1, F)), cspec((1, F)),
                  cspec(w1.shape), cspec(b1.shape),
                  cspec(w2.shape), cspec(b2.shape),
                  cspec(w3.shape), cspec(b3.shape),
                  cspec(w4.shape), cspec(b4.shape)],
        out_specs=pl.BlockSpec((tile_n, ncp), lambda i: (i, 0)),
        compiler_params=pltpu.CompilerParams(
            dimension_semantics=("parallel",),
            vmem_limit_bytes=48 * 1024 * 1024),   # stays under v7x's 64 MiB
        cost_estimate=pl.CostEstimate(
            flops=flops, transcendentals=trans,
            bytes_accessed=4 * n_pad * (F + ncp) + wbytes),
    )(x_flat, scale_f, shift_f, w1, b1, w2, b2, w3, b3, w4, b4)

    return out_padded[:N, :num_classes]


# ----------------------------------------------------------------------------
# Parameter handling
# ----------------------------------------------------------------------------
def init_reference_params(key, in_features, in_channels, num_classes):
    """f32, unpadded, PyTorch-like init. Linear weights stored as (in, out)."""
    dims = [in_features, H1, H2, H3, num_classes]
    keys = jax.random.split(key, 8)
    params = [jnp.ones((in_channels,), jnp.float32),     # BN gamma
              jnp.zeros((in_channels,), jnp.float32)]    # BN beta
    for i in range(4):
        fan_in, fan_out = dims[i], dims[i + 1]
        bound = 1.0 / float(fan_in) ** 0.5
        w = jax.random.uniform(keys[2 * i], (fan_in, fan_out),
                               jnp.float32, -bound, bound)
        b = jax.random.uniform(keys[2 * i + 1], (1, fan_out),
                               jnp.float32, -bound, bound)
        params += [w, b]
    return tuple(params)


def prepare_kernel_params(ref_params, num_classes):
    """Expand BN affine per feature, build channel selector matrices,
    lane-pad hidden dims, cast weights to bf16, mask padded class lanes."""
    gamma, beta, w1, b1, w2, b2, w3, b3, w4, b4 = ref_params
    F = w1.shape[0]
    C = gamma.shape[0]
    HW = F // C
    cp = _round_up(C, 128)
    ncp = _round_up(max(num_classes, 128), 128)

    gamma_f = jnp.repeat(gamma, HW).reshape(1, F).astype(jnp.float32)
    beta_f = jnp.repeat(beta, HW).reshape(1, F).astype(jnp.float32)
    # 0/1 selector: feature f belongs to channel f // HW (NCHW flatten order).
    ch_of_f = jnp.arange(F, dtype=jnp.int32) // HW
    sel_fc = (ch_of_f[:, None] == jnp.arange(cp, dtype=jnp.int32)[None, :]
              ).astype(jnp.float32)                       # (F, CP)
    sel_cf = sel_fc.T                                     # (CP, F)

    w1p = _pad2(w1, (F, H1P)).astype(jnp.bfloat16)
    b1p = _pad2(b1, (1, H1P))
    w2p = _pad2(w2, (H1P, H2P)).astype(jnp.bfloat16)
    b2p = _pad2(b2, (1, H2P))
    w3p = _pad2(w3, (H2P, H3P)).astype(jnp.bfloat16)
    b3p = _pad2(b3, (1, H3P))
    w4p = _pad2(w4, (H3P, ncp)).astype(jnp.bfloat16)
    b4p = _pad2(b4, (1, ncp), fill=NEG_INF)               # mask pad classes
    return (gamma_f, beta_f, sel_cf, sel_fc,
            w1p, b1p, w2p, b2p, w3p, b3p, w4p, b4p)


def reference_forward(x, ref_params):
    """Pure-JAX f32 reference matching the PyTorch module (training-mode BN)."""
    gamma, beta, w1, b1, w2, b2, w3, b3, w4, b4 = ref_params
    xr = jnp.maximum(x, 0.0)
    mean = jnp.mean(xr, axis=(0, 2, 3), keepdims=True)
    var = jnp.mean((xr - mean) ** 2, axis=(0, 2, 3), keepdims=True)
    y = ((xr - mean) * jax.lax.rsqrt(var + BN_EPS)
         * gamma.reshape(1, -1, 1, 1) + beta.reshape(1, -1, 1, 1))
    h = y.reshape(x.shape[0], -1)
    h = jnp.tanh(h @ w1 + b1)
    h = jnp.tanh(h @ w2 + b2)
    h = jnp.tanh(h @ w3 + b3)
    return jax.nn.softmax(h @ w4 + b4, axis=1)


if __name__ == "__main__":
    # Small shapes consistent with the module: in_size=(8, 8), in_channels=16
    C, H, W = 16, 8, 8
    NUM_CLASSES = 2

    key = jax.random.PRNGKey(0)
    kx1, kx2, kp = jax.random.split(key, 3)

    ref_params = init_reference_params(kp, C * H * W, C, NUM_CLASSES)
    kern_params = prepare_kernel_params(ref_params, NUM_CLASSES)

    # --- fused single-kernel path (small batch) ---
    x_small = jax.random.normal(kx1, (2, C, H, W), jnp.float32)
    out = classification_forward(x_small, kern_params, num_classes=NUM_CLASSES)
    jax.block_until_ready(out)
    assert out.shape == (2, NUM_CLASSES)
    assert jnp.allclose(jnp.sum(out, axis=1), 1.0, atol=1e-3)
    ref = reference_forward(x_small, ref_params)
    assert jnp.allclose(out, ref, atol=2.5e-2), (
        "fused path max abs diff", float(jnp.max(jnp.abs(out - ref))))

    # --- gridded fallback path (forced; exercises batch tiling + padding) ---
    x_big = jax.random.normal(kx2, (60, C, H, W), jnp.float32)
    out_g = classification_forward(x_big, kern_params,
                                   num_classes=NUM_CLASSES, use_fused=False)
    jax.block_until_ready(out_g)
    assert out_g.shape == (60, NUM_CLASSES)
    assert jnp.allclose(jnp.sum(out_g, axis=1), 1.0, atol=1e-3)
    ref_g = reference_forward(x_big, ref_params)
    assert jnp.allclose(out_g, ref_g, atol=2.5e-2), (
        "gridded path max abs diff", float(jnp.max(jnp.abs(out_g - ref_g))))

    print("KERNEL_OK")
</pallas_src>

<mosaic_0001>
module attributes {stable_mosaic.version = 11 : i64} {
  func.func @fused_cls_kernel(%arg0: memref<2x1024xf32, #tpu.memory_space<vmem>>, %arg1: memref<1x1024xf32, #tpu.memory_space<vmem>>, %arg2: memref<1x1024xf32, #tpu.memory_space<vmem>>, %arg3: memref<128x1024xf32, #tpu.memory_space<vmem>>, %arg4: memref<1024x128xf32, #tpu.memory_space<vmem>>, %arg5: memref<1024x1024xbf16, #tpu.memory_space<vmem>>, %arg6: memref<1x1024xf32, #tpu.memory_space<vmem>>, %arg7: memref<1024x256xbf16, #tpu.memory_space<vmem>>, %arg8: memref<1x256xf32, #tpu.memory_space<vmem>>, %arg9: memref<256x128xbf16, #tpu.memory_space<vmem>>, %arg10: memref<1x128xf32, #tpu.memory_space<vmem>>, %arg11: memref<128x128xbf16, #tpu.memory_space<vmem>>, %arg12: memref<1x128xf32, #tpu.memory_space<vmem>>, %arg13: memref<2x128xf32, #tpu.memory_space<vmem>>) attributes {dimension_semantics = [], scalar_prefetch = 0 : i64, scratch_operands = 0 : i64, tpu.core_type = #tpu.core_type<tc>} {
    %c0 = arith.constant 0 : index
    %c0_0 = arith.constant 0 : index
    %0 = vector.load %arg0[%c0, %c0_0] : memref<2x1024xf32, #tpu.memory_space<vmem>>, vector<2x1024xf32>
    %cst = arith.constant 0.000000e+00 : f32
    %1 = vector.broadcast %cst : f32 to vector<2x1024xf32>
    %2 = arith.maximumf %0, %1 : vector<2x1024xf32>
    %cst_1 = arith.constant dense<0.000000e+00> : vector<1024xf32>
    %3 = vector.multi_reduction <add>, %2, %cst_1 [0] : vector<2x1024xf32> to vector<1024xf32>
    %4 = vector.shape_cast %3 : vector<1024xf32> to vector<1x1024xf32>
    %c0_2 = arith.constant 0 : index
    %c0_3 = arith.constant 0 : index
    %5 = vector.load %arg4[%c0_2, %c0_3] : memref<1024x128xf32, #tpu.memory_space<vmem>>, vector<1024x128xf32>
    %cst_4 = arith.constant dense<0.000000e+00> : vector<1x128xf32>
    %6 = tpu.matmul %4, %5, %cst_4 {dimension_numbers = #tpu.dot_dimension_numbers<[1], [0], [0], [1], [0, 0, 1, 1], [], []>} : vector<1x1024xf32>, vector<1024x128xf32>, vector<1x128xf32> -> vector<1x128xf32>
    %cst_5 = arith.constant 7.812500e-03 : f32
    %7 = vector.broadcast %cst_5 : f32 to vector<1x128xf32>
    %8 = arith.mulf %6, %7 : vector<1x128xf32>
    %c0_6 = arith.constant 0 : index
    %c0_7 = arith.constant 0 : index
    %9 = vector.load %arg3[%c0_6, %c0_7] : memref<128x1024xf32, #tpu.memory_space<vmem>>, vector<128x1024xf32>
    %cst_8 = arith.constant dense<0.000000e+00> : vector<1x1024xf32>
    %10 = tpu.matmul %8, %9, %cst_8 {dimension_numbers = #tpu.dot_dimension_numbers<[1], [0], [0], [1], [0, 0, 1, 1], [], []>} : vector<1x128xf32>, vector<128x1024xf32>, vector<1x1024xf32> -> vector<1x1024xf32>
    %11 = vector.broadcast %10 : vector<1x1024xf32> to vector<2x1024xf32>
    %12 = arith.subf %2, %11 : vector<2x1024xf32>
    %13 = arith.mulf %12, %12 : vector<2x1024xf32>
    %cst_9 = arith.constant dense<0.000000e+00> : vector<1024xf32>
    %14 = vector.multi_reduction <add>, %13, %cst_9 [0] : vector<2x1024xf32> to vector<1024xf32>
    %15 = vector.shape_cast %14 : vector<1024xf32> to vector<1x1024xf32>
    %c0_10 = arith.constant 0 : index
    %c0_11 = arith.constant 0 : index
    %16 = vector.load %arg4[%c0_10, %c0_11] : memref<1024x128xf32, #tpu.memory_space<vmem>>, vector<1024x128xf32>
    %cst_12 = arith.constant dense<0.000000e+00> : vector<1x128xf32>
    %17 = tpu.matmul %15, %16, %cst_12 {dimension_numbers = #tpu.dot_dimension_numbers<[1], [0], [0], [1], [0, 0, 1, 1], [], []>} : vector<1x1024xf32>, vector<1024x128xf32>, vector<1x128xf32> -> vector<1x128xf32>
    %cst_13 = arith.constant 7.812500e-03 : f32
    %18 = vector.broadcast %cst_13 : f32 to vector<1x128xf32>
    %19 = arith.mulf %17, %18 : vector<1x128xf32>
    %cst_14 = arith.constant 0.000000e+00 : f32
    %20 = vector.broadcast %cst_14 : f32 to vector<1x128xf32>
    %21 = arith.maximumf %19, %20 : vector<1x128xf32>
    %cst_15 = arith.constant 9.99999974E-6 : f32
    %22 = vector.broadcast %cst_15 : f32 to vector<1x128xf32>
    %23 = arith.addf %21, %22 : vector<1x128xf32>
    %24 = math.rsqrt %23 : vector<1x128xf32>
    %c0_16 = arith.constant 0 : index
    %c0_17 = arith.constant 0 : index
    %25 = vector.load %arg3[%c0_16, %c0_17] : memref<128x1024xf32, #tpu.memory_space<vmem>>, vector<128x1024xf32>
    %cst_18 = arith.constant dense<0.000000e+00> : vector<1x1024xf32>
    %26 = tpu.matmul %24, %25, %cst_18 {dimension_numbers = #tpu.dot_dimension_numbers<[1], [0], [0], [1], [0, 0, 1, 1], [], []>} : vector<1x128xf32>, vector<128x1024xf32>, vector<1x1024xf32> -> vector<1x1024xf32>
    %c0_19 = arith.constant 0 : index
    %c0_20 = arith.constant 0 : index
    %27 = vector.load %arg1[%c0_19, %c0_20] : memref<1x1024xf32, #tpu.memory_space<vmem>>, vector<1x1024xf32>
    %28 = arith.mulf %27, %26 : vector<1x1024xf32>
    %29 = vector.broadcast %28 : vector<1x1024xf32> to vector<2x1024xf32>
    %30 = arith.mulf %12, %29 : vector<2x1024xf32>
    %c0_21 = arith.constant 0 : index
    %c0_22 = arith.constant 0 : index
    %31 = vector.load %arg2[%c0_21, %c0_22] : memref<1x1024xf32, #tpu.memory_space<vmem>>, vector<1x1024xf32>
    %32 = vector.broadcast %31 : vector<1x1024xf32> to vector<2x1024xf32>
    %33 = arith.addf %30, %32 : vector<2x1024xf32>
    %34 = arith.truncf %33 : vector<2x1024xf32> to vector<2x1024xbf16>
    %c0_23 = arith.constant 0 : index
    %c0_24 = arith.constant 0 : index
    %35 = vector.load %arg5[%c0_23, %c0_24] : memref<1024x1024xbf16, #tpu.memory_space<vmem>>, vector<1024x1024xbf16>
    %cst_25 = arith.constant dense<0.000000e+00> : vector<2x1024xf32>
    %36 = tpu.matmul %34, %35, %cst_25 {dimension_numbers = #tpu.dot_dimension_numbers<[1], [0], [0], [1], [0, 0, 1, 1], [], []>} : vector<2x1024xbf16>, vector<1024x1024xbf16>, vector<2x1024xf32> -> vector<2x1024xf32>
    %c0_26 = arith.constant 0 : index
    %c0_27 = arith.constant 0 : index
    %37 = vector.load %arg6[%c0_26, %c0_27] : memref<1x1024xf32, #tpu.memory_space<vmem>>, vector<1x1024xf32>
    %38 = vector.broadcast %37 : vector<1x1024xf32> to vector<2x1024xf32>
    %39 = arith.addf %36, %38 : vector<2x1024xf32>
    %40 = arith.truncf %39 : vector<2x1024xf32> to vector<2x1024xbf16>
    %41 = math.tanh %40 : vector<2x1024xbf16>
    %c0_28 = arith.constant 0 : index
    %c0_29 = arith.constant 0 : index
    %42 = vector.load %arg7[%c0_28, %c0_29] : memref<1024x256xbf16, #tpu.memory_space<vmem>>, vector<1024x256xbf16>
    %cst_30 = arith.constant dense<0.000000e+00> : vector<2x256xf32>
    %43 = tpu.matmul %41, %42, %cst_30 {dimension_numbers = #tpu.dot_dimension_numbers<[1], [0], [0], [1], [0, 0, 1, 1], [], []>} : vector<2x1024xbf16>, vector<1024x256xbf16>, vector<2x256xf32> -> vector<2x256xf32>
    %c0_31 = arith.constant 0 : index
    %c0_32 = arith.constant 0 : index
    %44 = vector.load %arg8[%c0_31, %c0_32] : memref<1x256xf32, #tpu.memory_space<vmem>>, vector<1x256xf32>
    %45 = vector.broadcast %44 : vector<1x256xf32> to vector<2x256xf32>
    %46 = arith.addf %43, %45 : vector<2x256xf32>
    %47 = arith.truncf %46 : vector<2x256xf32> to vector<2x256xbf16>
    %48 = math.tanh %47 : vector<2x256xbf16>
    %c0_33 = arith.constant 0 : index
    %c0_34 = arith.constant 0 : index
    %49 = vector.load %arg9[%c0_33, %c0_34] : memref<256x128xbf16, #tpu.memory_space<vmem>>, vector<256x128xbf16>
    %cst_35 = arith.constant dense<0.000000e+00> : vector<2x128xf32>
    %50 = tpu.matmul %48, %49, %cst_35 {dimension_numbers = #tpu.dot_dimension_numbers<[1], [0], [0], [1], [0, 0, 1, 1], [], []>} : vector<2x256xbf16>, vector<256x128xbf16>, vector<2x128xf32> -> vector<2x128xf32>
    %c0_36 = arith.constant 0 : index
    %c0_37 = arith.constant 0 : index
    %51 = vector.load %arg10[%c0_36, %c0_37] : memref<1x128xf32, #tpu.memory_space<vmem>>, vector<1x128xf32>
    %52 = vector.broadcast %51 : vector<1x128xf32> to vector<2x128xf32>
    %53 = arith.addf %50, %52 : vector<2x128xf32>
    %54 = arith.truncf %53 : vector<2x128xf32> to vector<2x128xbf16>
    %55 = math.tanh %54 : vector<2x128xbf16>
    %c0_38 = arith.constant 0 : index
    %c0_39 = arith.constant 0 : index
    %56 = vector.load %arg11[%c0_38, %c0_39] : memref<128x128xbf16, #tpu.memory_space<vmem>>, vector<128x128xbf16>
    %cst_40 = arith.constant dense<0.000000e+00> : vector<2x128xf32>
    %57 = tpu.matmul %55, %56, %cst_40 {dimension_numbers = #tpu.dot_dimension_numbers<[1], [0], [0], [1], [0, 0, 1, 1], [], []>} : vector<2x128xbf16>, vector<128x128xbf16>, vector<2x128xf32> -> vector<2x128xf32>
    %c0_41 = arith.constant 0 : index
    %c0_42 = arith.constant 0 : index
    %58 = vector.load %arg12[%c0_41, %c0_42] : memref<1x128xf32, #tpu.memory_space<vmem>>, vector<1x128xf32>
    %59 = vector.broadcast %58 : vector<1x128xf32> to vector<2x128xf32>
    %60 = arith.addf %57, %59 : vector<2x128xf32>
    %cst_43 = arith.constant dense<0xFF800000> : vector<2xf32>
    %61 = vector.multi_reduction <maximumf>, %60, %cst_43 [1] : vector<2x128xf32> to vector<2xf32>
    %62 = vector.shape_cast %61 : vector<2xf32> to vector<2x1xf32>
    %63 = vector.broadcast %62 : vector<2x1xf32> to vector<2x128xf32>
    %64 = arith.subf %60, %63 : vector<2x128xf32>
    %65 = math.exp %64 : vector<2x128xf32>
    %cst_44 = arith.constant dense<0.000000e+00> : vector<2xf32>
    %66 = vector.multi_reduction <add>, %65, %cst_44 [1] : vector<2x128xf32> to vector<2xf32>
    %67 = vector.shape_cast %66 : vector<2xf32> to vector<2x1xf32>
    %68 = vector.broadcast %67 : vector<2x1xf32> to vector<2x128xf32>
    %69 = arith.divf %65, %68 : vector<2x128xf32>
    %c0_45 = arith.constant 0 : index
    %c0_46 = arith.constant 0 : index
    %70 = vector.load %arg13[%c0_45, %c0_46] : memref<2x128xf32, #tpu.memory_space<vmem>>, vector<2x128xf32>
    tpu.vector_store %arg13[%c0_45, %c0_46], %69 {strides = array<i32>} : memref<2x128xf32, #tpu.memory_space<vmem>>, vector<2x128xf32>,
    return
  }
}

</mosaic_0001>

<llo_original>
// kernel: classification_forward.1
$region0: #{classification_forward.1}
  #allocation0 [shape = 'u32[]', space=smem, size = 0x4, offset = 0x4, fixed_abs, tag = 'smem constant byte address 0x4 - core index']
  #allocation1 [shape = 'u32[72,128]{1,0:T(1,128)}', space=vmem, size = 0x9000, scoped, tag = 'internal scratch']
  %s0 = inlined_call_operand.vmem [shape: f32[2,1024], index: 0, kind: input, shape index: {}]
  %s1 = inlined_call_operand.hbm [shape: f32[1,1024], index: 1, kind: input, shape index: {}]
  %s2 = inlined_call_operand.hbm [shape: f32[1,1024], index: 2, kind: input, shape index: {}]
  %s3 = inlined_call_operand.hbm [shape: f32[128,1024], index: 3, kind: input, shape index: {}]
  %s4 = inlined_call_operand.hbm [shape: f32[1024,128], index: 4, kind: input, shape index: {}]
  %s5 = inlined_call_operand.hbm [shape: bf16[1024,1024], index: 5, kind: input, shape index: {}]
  %s6 = inlined_call_operand.hbm [shape: f32[1,1024], index: 6, kind: input, shape index: {}]
  %s7 = inlined_call_operand.hbm [shape: bf16[1024,256], index: 7, kind: input, shape index: {}]
  %s8 = inlined_call_operand.hbm [shape: f32[1,256], index: 8, kind: input, shape index: {}]
  %s9 = inlined_call_operand.hbm [shape: bf16[256,128], index: 9, kind: input, shape index: {}]
  %s10 = inlined_call_operand.hbm [shape: f32[1,128], index: 10, kind: input, shape index: {}]
  %s11 = inlined_call_operand.hbm [shape: bf16[128,128], index: 11, kind: input, shape index: {}]
  %s12 = inlined_call_operand.hbm [shape: f32[1,128], index: 12, kind: input, shape index: {}]
  %s13 = inlined_call_operand.hbm [shape: f32[2,128], index: 13, kind: output, shape index: {}]
  %s14 = sld [smem:[#allocation0]]
  $region110: #{classification_forward.1} parent=0
    _
  %s16 = ssub.s32 1, %s14
  %s17 = scalar_select 0, %s16, %s14
  $region1: #{classification_forward.1} parent=0
    #allocation2 [shape = 'u8[4096]{0}', space=vmem, size = 0x1000, scoped, tag = 'input window, operand 1, single buffered']
    #allocation3 [shape = 's32[1]{0}', space=sflag, size = 0x4, scoped, tag = 'scoped memory for classification_forward.1']
    #allocation4 [shape = 's32[1]{0}', space=sflag, size = 0x4, scoped, tag = 'scoped memory for classification_forward.1']
    #allocation5 [shape = 'u8[4096]{0}', space=vmem, size = 0x1000, scoped, tag = 'input window, operand 2, single buffered']
    #allocation6 [shape = 's32[1]{0}', space=sflag, size = 0x4, scoped, tag = 'scoped memory for classification_forward.1']
    #allocation7 [shape = 'u8[524288]{0}', space=vmem, size = 0x80000, scoped, tag = 'input window, operand 3, single buffered']
    #allocation8 [shape = 'u8[524288]{0}', space=vmem, size = 0x80000, scoped, tag = 'input window, operand 4, single buffered']
    #allocation9 [shape = 's32[1]{0}', space=sflag, size = 0x4, scoped, tag = 'scoped memory for classification_forward.1']
    #allocation10 [shape = 'u8[2097152]{0}', space=vmem, size = 0x200000, scoped, tag = 'input window, operand 5, single buffered']
    #allocation11 [shape = 'u8[4096]{0}', space=vmem, size = 0x1000, scoped, tag = 'input window, operand 6, single buffered']
    #allocation12 [shape = 's32[1]{0}', space=sflag, size = 0x4, scoped, tag = 'scoped memory for classification_forward.1']
    #allocation13 [shape = 'u8[524288]{0}', space=vmem, size = 0x80000, scoped, tag = 'input window, operand 7, single buffered']
    #allocation14 [shape = 'u8[1024]{0}', space=vmem, size = 0x400, scoped, tag = 'input window, operand 8, single buffered']
    #allocation15 [shape = 's32[1]{0}', space=sflag, size = 0x4, scoped, tag = 'scoped memory for classification_forward.1']
    #allocation16 [shape = 'u8[65536]{0}', space=vmem, size = 0x10000, scoped, tag = 'input window, operand 9, single buffered']
    #allocation17 [shape = 'u8[512]{0}', space=vmem, size = 0x400, scoped, tag = 'input window, operand 10, single buffered']
    #allocation18 [shape = 's32[1]{0}', space=sflag, size = 0x4, scoped, tag = 'scoped memory for classification_forward.1']
    #allocation19 [shape = 'u8[32768]{0}', space=vmem, size = 0x8000, scoped, tag = 'input window, operand 11, single buffered']
    #allocation20 [shape = 'u8[512]{0}', space=vmem, size = 0x400, scoped, tag = 'input window, operand 12, single buffered']
    #allocation21 [shape = 's32[1]{0}', space=sflag, size = 0x4, scoped, tag = 'scoped memory for classification_forward.1']
    #allocation22 [shape = 'u8[1024]{0}', space=vmem, size = 0x400, scoped, tag = 'output window, operand 0, single buffered']
    %18 = vsyncpa [#allocation3], 0
    %19 = vsyncpa [#allocation6], 0
    %20 = vsyncpa [#allocation9], 0
    %21 = vsyncpa [#allocation12], 0
    %22 = vsyncpa [#allocation15], 0
    %23 = vsyncpa [#allocation18], 0
    %24 = vsyncpa [#allocation21], 0
    %25 = vsyncpa [#allocation4], 0
    // Predicated region
    $region2: #{classification_forward.1} parent=1 // pred_check
      _
    $region3: #{classification_forward.1} parent=1 // pred_check_branch
      %27 = sbr.rel (0) target = $region5
    $region4: #{classification_forward.1} parent=1 // pred_region
      _
    $region5: #{classification_forward.1} parent=1 // pred_fallthru
      _
    // Predicated region
    $region6: #{classification_forward.1} parent=1 // pred_check
      _
    $region7: #{classification_forward.1} parent=1 // pred_check_branch
      %29 = sbr.rel (0) target = $region9
    $region8: #{classification_forward.1} parent=1 // pred_region
      %31 = vsyncadd [#allocation3], 0
      %s33 = sshll.u32 %s1, 4
      %s34 = int_to_ptr.hbm [resolvable:$true] %s33
      %s35 = sshll.u32 [#allocation2], 4
      %s36 = int_to_ptr.vmem [resolvable:$true] %s35
      %38 = dma.hbm_to_vmem [thread:$0]  %s34, 128, %s36, [#allocation3]
    $region9: #{classification_forward.1} parent=1 // pred_fallthru
      _
    // Predicated region
    $region10: #{classification_forward.1} parent=1 // pred_check
      _
    $region11: #{classification_forward.1} parent=1 // pred_check_branch
      %40 = sbr.rel (0) target = $region13
    $region12: #{classification_forward.1} parent=1 // pred_region
      %42 = vsyncadd [#allocation6], 0
      %s44 = sshll.u32 %s2, 4
      %s45 = int_to_ptr.hbm [resolvable:$true] %s44
      %s46 = sshll.u32 [#allocation5], 4
      %s47 = int_to_ptr.vmem [resolvable:$true] %s46
      %49 = dma.hbm_to_vmem [thread:$0]  %s45, 128, %s47, [#allocation6]
    $region13: #{classification_forward.1} parent=1 // pred_fallthru
      _
    // Predicated region
    $region14: #{classification_forward.1} parent=1 // pred_check
      _
    $region15: #{classification_forward.1} parent=1 // pred_check_branch
      %51 = sbr.rel (0) target = $region17
    $region16: #{classification_forward.1} parent=1 // pred_region
      %53 = vsyncadd [#allocation6], 0
      %s54 = sshll.u32 %s3, 4
      %s55 = int_to_ptr.hbm [resolvable:$true] %s54
      %s56 = sshll.u32 [#allocation7], 4
      %s57 = int_to_ptr.vmem [resolvable:$true] %s56
      %62 = dma.hbm_to_vmem [thread:$0]  %s55, 16384, %s57, [#allocation6], 1024, 1024, 64
    $region17: #{classification_forward.1} parent=1 // pred_fallthru
      _
    // Predicated region
    $region18: #{classification_forward.1} parent=1 // pred_check
      _
    $region19: #{classification_forward.1} parent=1 // pred_check_branch
      %64 = sbr.rel (0) target = $region21
    $region20: #{classification_forward.1} parent=1 // pred_region
      %66 = vsyncadd [#allocation9], 0
      %s67 = sshll.u32 %s4, 4
      %s68 = int_to_ptr.hbm [resolvable:$true] %s67
      %s69 = sshll.u32 [#allocation8], 4
      %s70 = int_to_ptr.vmem [resolvable:$true] %s69
      %75 = dma.hbm_to_vmem [thread:$0]  %s68, 16384, %s70, [#allocation9], 128, 128, 8
    $region21: #{classification_forward.1} parent=1 // pred_fallthru
      _
    // Predicated region
    $region22: #{classification_forward.1} parent=1 // pred_check
      _
    $region23: #{classification_forward.1} parent=1 // pred_check_branch
      %77 = sbr.rel (0) target = $region25
    $region24: #{classification_forward.1} parent=1 // pred_region
      %79 = vsyncadd [#allocation9], 0
      %s80 = sshll.u32 %s5, 4
      %s81 = int_to_ptr.hbm [resolvable:$true] %s80
      %s82 = sshll.u32 [#allocation10], 4
      %s83 = int_to_ptr.vmem [resolvable:$true] %s82
      %88 = dma.hbm_to_vmem [thread:$0]  %s81, 65536, %s83, [#allocation9], 512, 512, 32
    $region25: #{classification_forward.1} parent=1 // pred_fallthru
      _
    // Predicated region
    $region26: #{classification_forward.1} parent=1 // pred_check
      _
    $region27: #{classification_forward.1} parent=1 // pred_check_branch
      %90 = sbr.rel (0) target = $region29
    $region28: #{classification_forward.1} parent=1 // pred_region
      %92 = vsyncadd [#allocation12], 0
      %s94 = sshll.u32 %s6, 4
      %s95 = int_to_ptr.hbm [resolvable:$true] %s94
      %s96 = sshll.u32 [#allocation11], 4
      %s97 = int_to_ptr.vmem [resolvable:$true] %s96
      %99 = dma.hbm_to_vmem [thread:$0]  %s95, 128, %s97, [#allocation12]
    $region29: #{classification_forward.1} parent=1 // pred_fallthru
      _
    // Predicated region
    $region30: #{classification_forward.1} parent=1 // pred_check
      _
    $region31: #{classification_forward.1} parent=1 // pred_check_branch
      %101 = sbr.rel (0) target = $region33
    $region32: #{classification_forward.1} parent=1 // pred_region
      %103 = vsyncadd [#allocation12], 0
      %s104 = sshll.u32 %s7, 4
      %s105 = int_to_ptr.hbm [resolvable:$true] %s104
      %s106 = sshll.u32 [#allocation13], 4
      %s107 = int_to_ptr.vmem [resolvable:$true] %s106
      %112 = dma.hbm_to_vmem [thread:$0]  %s105, 16384, %s107, [#allocation12], 128, 128, 8
    $region33: #{classification_forward.1} parent=1 // pred_fallthru
      _
    // Predicated region
    $region34: #{classification_forward.1} parent=1 // pred_check
      _
    $region35: #{classification_forward.1} parent=1 // pred_check_branch
      %114 = sbr.rel (0) target = $region37
    $region36: #{classification_forward.1} parent=1 // pred_region
      %116 = vsyncadd [#allocation15], 0
      %s118 = sshll.u32 %s8, 4
      %s119 = int_to_ptr.hbm [resolvable:$true] %s118
      %s120 = sshll.u32 [#allocation14], 4
      %s121 = int_to_ptr.vmem [resolvable:$true] %s120
      %123 = dma.hbm_to_vmem [thread:$0]  %s119, 32, %s121, [#allocation15]
    $region37: #{classification_forward.1} parent=1 // pred_fallthru
      _
    // Predicated region
    $region38: #{classification_forward.1} parent=1 // pred_check
      _
    $region39: #{classification_forward.1} parent=1 // pred_check_branch
      %125 = sbr.rel (0) target = $region41
    $region40: #{classification_forward.1} parent=1 // pred_region
      %127 = vsyncadd [#allocation15], 0
      %s128 = sshll.u32 %s9, 4
      %s129 = int_to_ptr.hbm [resolvable:$true] %s128
      %s130 = sshll.u32 [#allocation16], 4
      %s131 = int_to_ptr.vmem [resolvable:$true] %s130
      %136 = dma.hbm_to_vmem [thread:$0]  %s129, 2048, %s131, [#allocation15], 64, 64, 4
    $region41: #{classification_forward.1} parent=1 // pred_fallthru
      _
    // Predicated region
    $region42: #{classification_forward.1} parent=1 // pred_check
      _
    $region43: #{classification_forward.1} parent=1 // pred_check_branch
      %138 = sbr.rel (0) target = $region45
    $region44: #{classification_forward.1} parent=1 // pred_region
      %140 = vsyncadd [#allocation18], 0
      %s142 = sshll.u32 %s10, 4
      %s143 = int_to_ptr.hbm [resolvable:$true] %s142
      %s144 = sshll.u32 [#allocation17], 4
      %s145 = int_to_ptr.vmem [resolvable:$true] %s144
      %147 = dma.hbm_to_vmem [thread:$0]  %s143, 16, %s145, [#allocation18]
    $region45: #{classification_forward.1} parent=1 // pred_fallthru
      _
    // Predicated region
    $region46: #{classification_forward.1} parent=1 // pred_check
      _
    $region47: #{classification_forward.1} parent=1 // pred_check_branch
      %149 = sbr.rel (0) target = $region49
    $region48: #{classification_forward.1} parent=1 // pred_region
      %151 = vsyncadd [#allocation18], 0
      %s152 = sshll.u32 %s11, 4
      %s153 = int_to_ptr.hbm [resolvable:$true] %s152
      %s154 = sshll.u32 [#allocation19], 4
      %s155 = int_to_ptr.vmem [resolvable:$true] %s154
      %160 = dma.hbm_to_vmem [thread:$0]  %s153, 1024, %s155, [#allocation18], 64, 64, 4
    $region49: #{classification_forward.1} parent=1 // pred_fallthru
      _
    // Predicated region
    $region50: #{classification_forward.1} parent=1 // pred_check
      _
    $region51: #{classification_forward.1} parent=1 // pred_check_branch
      %162 = sbr.rel (0) target = $region53
    $region52: #{classification_forward.1} parent=1 // pred_region
      %164 = vsyncadd [#allocation21], 0
      %s166 = sshll.u32 %s12, 4
      %s167 = int_to_ptr.hbm [resolvable:$true] %s166
      %s168 = sshll.u32 [#allocation20], 4
      %s169 = int_to_ptr.vmem [resolvable:$true] %s168
      %171 = dma.hbm_to_vmem [thread:$0]  %s167, 16, %s169, [#allocation21]
    $region53: #{classification_forward.1} parent=1 // pred_fallthru
      _
    // Predicated region
    $region54: #{classification_forward.1} parent=1 // pred_check
      _
    $region55: #{classification_forward.1} parent=1 // pred_check_branch
      %173 = sbr.rel (0) target = $region57
    $region56: #{classification_forward.1} parent=1 // pred_region
      %175 = dma.done [#allocation3], 128
    $region57: #{classification_forward.1} parent=1 // pred_fallthru
      _
    // Predicated region
    $region58: #{classification_forward.1} parent=1 // pred_check
      _
    $region59: #{classification_forward.1} parent=1 // pred_check_branch
      %177 = sbr.rel (0) target = $region61
    $region60: #{classification_forward.1} parent=1 // pred_region
      %179 = dma.done [#allocation6], 128
    $region61: #{classification_forward.1} parent=1 // pred_fallthru
      _
    // Predicated region
    $region62: #{classification_forward.1} parent=1 // pred_check
      _
    $region63: #{classification_forward.1} parent=1 // pred_check_branch
      %181 = sbr.rel (0) target = $region65
    $region64: #{classification_forward.1} parent=1 // pred_region
      %183 = dma.done [#allocation6], 16384
    $region65: #{classification_forward.1} parent=1 // pred_fallthru
      _
    // Predicated region
    $region66: #{classification_forward.1} parent=1 // pred_check
      _
    $region67: #{classification_forward.1} parent=1 // pred_check_branch
      %185 = sbr.rel (0) target = $region69
    $region68: #{classification_forward.1} parent=1 // pred_region
      %187 = dma.done [#allocation9], 16384
    $region69: #{classification_forward.1} parent=1 // pred_fallthru
      _
    // Predicated region
    $region70: #{classification_forward.1} parent=1 // pred_check
      _
    $region71: #{classification_forward.1} parent=1 // pred_check_branch
      %189 = sbr.rel (0) target = $region73
    $region72: #{classification_forward.1} parent=1 // pred_region
      %191 = dma.done [#allocation9], 65536
    $region73: #{classification_forward.1} parent=1 // pred_fallthru
      _
    // Predicated region
    $region74: #{classification_forward.1} parent=1 // pred_check
      _
    $region75: #{classification_forward.1} parent=1 // pred_check_branch
      %193 = sbr.rel (0) target = $region77
    $region76: #{classification_forward.1} parent=1 // pred_region
      %195 = dma.done [#allocation12], 128
    $region77: #{classification_forward.1} parent=1 // pred_fallthru
      _
    // Predicated region
    $region78: #{classification_forward.1} parent=1 // pred_check
      _
    $region79: #{classification_forward.1} parent=1 // pred_check_branch
      %197 = sbr.rel (0) target = $region81
    $region80: #{classification_forward.1} parent=1 // pred_region
      %199 = dma.done [#allocation12], 16384
    $region81: #{classification_forward.1} parent=1 // pred_fallthru
      _
    // Predicated region
    $region82: #{classification_forward.1} parent=1 // pred_check
      _
    $region83: #{classification_forward.1} parent=1 // pred_check_branch
      %201 = sbr.rel (0) target = $region85
    $region84: #{classification_forward.1} parent=1 // pred_region
      %203 = dma.done [#allocation15], 32
    $region85: #{classification_forward.1} parent=1 // pred_fallthru
      _
    // Predicated region
    $region86: #{classification_forward.1} parent=1 // pred_check
      _
    $region87: #{classification_forward.1} parent=1 // pred_check_branch
      %205 = sbr.rel (0) target = $region89
    $region88: #{classification_forward.1} parent=1 // pred_region
      %207 = dma.done [#allocation15], 2048
    $region89: #{classification_forward.1} parent=1 // pred_fallthru
      _
    // Predicated region
    $region90: #{classification_forward.1} parent=1 // pred_check
      _
    $region91: #{classification_forward.1} parent=1 // pred_check_branch
      %209 = sbr.rel (0) target = $region93
    $region92: #{classification_forward.1} parent=1 // pred_region
      %211 = dma.done [#allocation18], 16
    $region93: #{classification_forward.1} parent=1 // pred_fallthru
      _
    // Predicated region
    $region94: #{classification_forward.1} parent=1 // pred_check
      _
    $region95: #{classification_forward.1} parent=1 // pred_check_branch
      %213 = sbr.rel (0) target = $region97
    $region96: #{classification_forward.1} parent=1 // pred_region
      %215 = dma.done [#allocation18], 1024
    $region97: #{classification_forward.1} parent=1 // pred_fallthru
      _
    // Predicated region
    $region98: #{classification_forward.1} parent=1 // pred_check
      _
    $region99: #{classification_forward.1} parent=1 // pred_check_branch
      %217 = sbr.rel (0) target = $region101
    $region100: #{classification_forward.1} parent=1 // pred_region
      %219 = dma.done [#allocation21], 16
    $region101: #{classification_forward.1} parent=1 // pred_fallthru
      _
    %v220 = vld [vmem:[%s0] sm:$0xff]
    %v221 = vld [vmem:[%s0 + $0x8] sm:$0xff]
    %v222 = vmax.f32 %v220, 0.0
    %v223 = vmax.f32 %v221, 0.0
    %226 = vst [vmem:[#allocation1] ss:$4 sm:$0xff] %v222
    %s227 = scalar_lea.vmem [#allocation1], 32
    %228 = vst [vmem:[%s227] ss:$4 sm:$0xff] %v223
    %v229 = vld.sshfl [vmem:[#allocation1] sm:$0xff pattern:$0x73625140]
    %v230 = vld.sshfl [vmem:[#allocation1 + $0x8] sm:$0xff pattern:$0x73625140]
    %v231 = vld.sshfl [vmem:[#allocation1 + $0x10] sm:$0xff pattern:$0x73625140]
    %v232 = vld.sshfl [vmem:[#allocation1 + $0x18] sm:$0xff pattern:$0x73625140]
    %v233 = vld.sshfl [vmem:[#allocation1 + $0x20] sm:$0xff pattern:$0x73625140]
    %v234 = vld.sshfl [vmem:[#allocation1 + $0x28] sm:$0xff pattern:$0x73625140]
    %v235 = vld.sshfl [vmem:[#allocation1 + $0x30] sm:$0xff pattern:$0x73625140]
    %v236 = vld.sshfl [vmem:[#allocation1 + $0x38] sm:$0xff pattern:$0x73625140]
    %vm245 = vcmask 1041408
    %v246 = vsel %vm245, %v229, 0.0
    %v247 = vrot.slane %v246, 4
    %v248 = vadd.f32 %v246, %v247
    %v249 = vrot.slane %v248, 2
    %v250 = vadd.f32 %v248, %v249
    %v251 = vrot.slane %v250, 1
    %v252 = vadd.f32 %v250, %v251
    %v253 = vsel %vm245, %v230, 0.0
    %v254 = vrot.slane %v253, 4
    %v255 = vadd.f32 %v253, %v254
    %v256 = vrot.slane %v255, 2
    %v257 = vadd.f32 %v255, %v256
    %v258 = vrot.slane %v257, 1
    %v259 = vadd.f32 %v257, %v258
    %v260 = vsel %vm245, %v231, 0.0
    %v261 = vrot.slane %v260, 4
    %v262 = vadd.f32 %v260, %v261
    %v263 = vrot.slane %v262, 2
    %v264 = vadd.f32 %v262, %v263
    %v265 = vrot.slane %v264, 1
    %v266 = vadd.f32 %v264, %v265
    %v267 = vsel %vm245, %v232, 0.0
    %v268 = vrot.slane %v267, 4
    %v269 = vadd.f32 %v267, %v268
    %v270 = vrot.slane %v269, 2
    %v271 = vadd.f32 %v269, %v270
    %v272 = vrot.slane %v271, 1
    %v273 = vadd.f32 %v271, %v272
    %v274 = vsel %vm245, %v233, 0.0
    %v275 = vrot.slane %v274, 4
    %v276 = vadd.f32 %v274, %v275
    %v277 = vrot.slane %v276, 2
    %v278 = vadd.f32 %v276, %v277
    %v279 = vrot.slane %v278, 1
    %v280 = vadd.f32 %v278, %v279
    %v281 = vsel %vm245, %v234, 0.0
    %v282 = vrot.slane %v281, 4
    %v283 = vadd.f32 %v281, %v282
    %v284 = vrot.slane %v283, 2
    %v285 = vadd.f32 %v283, %v284
    %v286 = vrot.slane %v285, 1
    %v287 = vadd.f32 %v285, %v286
    %v288 = vsel %vm245, %v235, 0.0
    %v289 = vrot.slane %v288, 4
    %v290 = vadd.f32 %v288, %v289
    %v291 = vrot.slane %v290, 2
    %v292 = vadd.f32 %v290, %v291
    %v293 = vrot.slane %v292, 1
    %v294 = vadd.f32 %v292, %v293
    %v295 = vsel %vm245, %v236, 0.0
    %v296 = vrot.slane %v295, 4
    %v297 = vadd.f32 %v295, %v296
    %v298 = vrot.slane %v297, 2
    %v299 = vadd.f32 %v297, %v298
    %v300 = vrot.slane %v299, 1
    %v301 = vadd.f32 %v299, %v300
    %v302 = vld [vmem:[#allocation8] sm:$0xff]
    %v303 = vld [vmem:[#allocation8 + $0x8] sm:$0xff]
    %v304 = vld [vmem:[#allocation8 + $0x10] sm:$0xff]
    %v305 = vld [vmem:[#allocation8 + $0x18] sm:$0xff]
    %v306 = vld [vmem:[#allocation8 + $0x20] sm:$0xff]
    %v307 = vld [vmem:[#allocation8 + $0x28] sm:$0xff]
    %v308 = vld [vmem:[#allocation8 + $0x30] sm:$0xff]
    %v309 = vld [vmem:[#allocation8 + $0x38] sm:$0xff]
    %v310 = vld [vmem:[#allocation8 + $0x40] sm:$0xff]
    %v311 = vld [vmem:[#allocation8 + $0x48] sm:$0xff]
    %v312 = vld [vmem:[#allocation8 + $0x50] sm:$0xff]
    %v313 = vld [vmem:[#allocation8 + $0x58] sm:$0xff]
    %v314 = vld [vmem:[#allocation8 + $0x60] sm:$0xff]
    %v315 = vld [vmem:[#allocation8 + $0x68] sm:$0xff]
    %v316 = vld [vmem:[#allocation8 + $0x70] sm:$0xff]
    %v317 = vld [vmem:[#allocation8 + $0x78] sm:$0xff]
    %v318 = vld [vmem:[#allocation8 + $0x80] sm:$0xff]
    %v319 = vld [vmem:[#allocation8 + $0x88] sm:$0xff]
    %v320 = vld [vmem:[#allocation8 + $0x90] sm:$0xff]
    %v321 = vld [vmem:[#allocation8 + $0x98] sm:$0xff]
    %v322 = vld [vmem:[#allocation8 + $0xa0] sm:$0xff]
    %v323 = vld [vmem:[#allocation8 + $0xa8] sm:$0xff]
    %v324 = vld [vmem:[#allocation8 + $0xb0] sm:$0xff]
    %v325 = vld [vmem:[#allocation8 + $0xb8] sm:$0xff]
    %v326 = vld [vmem:[#allocation8 + $0xc0] sm:$0xff]
    %v327 = vld [vmem:[#allocation8 + $0xc8] sm:$0xff]
    %v328 = vld [vmem:[#allocation8 + $0xd0] sm:$0xff]
    %v329 = vld [vmem:[#allocation8 + $0xd8] sm:$0xff]
    %v330 = vld [vmem:[#allocation8 + $0xe0] sm:$0xff]
    %v331 = vld [vmem:[#allocation8 + $0xe8] sm:$0xff]
    %v332 = vld [vmem:[#allocation8 + $0xf0] sm:$0xff]
    %v333 = vld [vmem:[#allocation8 + $0xf8] sm:$0xff]
    %v334 = vld [vmem:[#allocation8 + $0x100] sm:$0xff]
    %v335 = vld [vmem:[#allocation8 + $0x108] sm:$0xff]
    %v336 = vld [vmem:[#allocation8 + $0x110] sm:$0xff]
    %v337 = vld [vmem:[#allocation8 + $0x118] sm:$0xff]
    %v338 = vld [vmem:[#allocation8 + $0x120] sm:$0xff]
    %v339 = vld [vmem:[#allocation8 + $0x128] sm:$0xff]
    %v340 = vld [vmem:[#allocation8 + $0x130] sm:$0xff]
    %v341 = vld [vmem:[#allocation8 + $0x138] sm:$0xff]
    %v342 = vld [vmem:[#allocation8 + $0x140] sm:$0xff]
    %v343 = vld [vmem:[#allocation8 + $0x148] sm:$0xff]
    %v344 = vld [vmem:[#allocation8 + $0x150] sm:$0xff]
    %v345 = vld [vmem:[#allocation8 + $0x158] sm:$0xff]
    %v346 = vld [vmem:[#allocation8 + $0x160] sm:$0xff]
    %v347 = vld [vmem:[#allocation8 + $0x168] sm:$0xff]
    %v348 = vld [vmem:[#allocation8 + $0x170] sm:$0xff]
    %v349 = vld [vmem:[#allocation8 + $0x178] sm:$0xff]
    %v350 = vld [vmem:[#allocation8 + $0x180] sm:$0xff]
    %v351 = vld [vmem:[#allocation8 + $0x188] sm:$0xff]
    %v352 = vld [vmem:[#allocation8 + $0x190] sm:$0xff]
    %v353 = vld [vmem:[#allocation8 + $0x198] sm:$0xff]
    %v354 = vld [vmem:[#allocation8 + $0x1a0] sm:$0xff]
    %v355 = vld [vmem:[#allocation8 + $0x1a8] sm:$0xff]
    %v356 = vld [vmem:[#allocation8 + $0x1b0] sm:$0xff]
    %v357 = vld [vmem:[#allocation8 + $0x1b8] sm:$0xff]
    %v358 = vld [vmem:[#allocation8 + $0x1c0] sm:$0xff]
    %v359 = vld [vmem:[#allocation8 + $0x1c8] sm:$0xff]
    %v360 = vld [vmem:[#allocation8 + $0x1d0] sm:$0xff]
    %v361 = vld [vmem:[#allocation8 + $0x1d8] sm:$0xff]
    %v362 = vld [vmem:[#allocation8 + $0x1e0] sm:$0xff]
    %v363 = vld [vmem:[#allocation8 + $0x1e8] sm:$0xff]
    %v364 = vld [vmem:[#allocation8 + $0x1f0] sm:$0xff]
    %v365 = vld [vmem:[#allocation8 + $0x1f8] sm:$0xff]
    %v366 = vld [vmem:[#allocation8 + $0x200] sm:$0xff]
    %v367 = vld [vmem:[#allocation8 + $0x208] sm:$0xff]
    %v368 = vld [vmem:[#allocation8 + $0x210] sm:$0xff]
    %v369 = vld [vmem:[#allocation8 + $0x218] sm:$0xff]
    %v370 = vld [vmem:[#allocation8 + $0x220] sm:$0xff]
    %v371 = vld [vmem:[#allocation8 + $0x228] sm:$0xff]
    %v372 = vld [vmem:[#allocation8 + $0x230] sm:$0xff]
    %v373 = vld [vmem:[#allocation8 + $0x238] sm:$0xff]
    %v374 = vld [vmem:[#allocation8 + $0x240] sm:$0xff]
    %v375 = vld [vmem:[#allocation8 + $0x248] sm:$0xff]
    %v376 = vld [vmem:[#allocation8 + $0x250] sm:$0xff]
    %v377 = vld [vmem:[#allocation8 + $0x258] sm:$0xff]
    %v378 = vld [vmem:[#allocation8 + $0x260] sm:$0xff]
    %v379 = vld [vmem:[#allocation8 + $0x268] sm:$0xff]
    %v380 = vld [vmem:[#allocation8 + $0x270] sm:$0xff]
    %v381 = vld [vmem:[#allocation8 + $0x278] sm:$0xff]
    %v382 = vld [vmem:[#allocation8 + $0x280] sm:$0xff]
    %v383 = vld [vmem:[#allocation8 + $0x288] sm:$0xff]
    %v384 = vld [vmem:[#allocation8 + $0x290] sm:$0xff]
    %v385 = vld [vmem:[#allocation8 + $0x298] sm:$0xff]
    %v386 = vld [vmem:[#allocation8 + $0x2a0] sm:$0xff]
    %v387 = vld [vmem:[#allocation8 + $0x2a8] sm:$0xff]
    %v388 = vld [vmem:[#allocation8 + $0x2b0] sm:$0xff]
    %v389 = vld [vmem:[#allocation8 + $0x2b8] sm:$0xff]
    %v390 = vld [vmem:[#allocation8 + $0x2c0] sm:$0xff]
    %v391 = vld [vmem:[#allocation8 + $0x2c8] sm:$0xff]
    %v392 = vld [vmem:[#allocation8 + $0x2d0] sm:$0xff]
    %v393 = vld [vmem:[#allocation8 + $0x2d8] sm:$0xff]
    %v394 = vld [vmem:[#allocation8 + $0x2e0] sm:$0xff]
    %v395 = vld [vmem:[#allocation8 + $0x2e8] sm:$0xff]
    %v396 = vld [vmem:[#allocation8 + $0x2f0] sm:$0xff]
    %v397 = vld [vmem:[#allocation8 + $0x2f8] sm:$0xff]
    %v398 = vld [vmem:[#allocation8 + $0x300] sm:$0xff]
    %v399 = vld [vmem:[#allocation8 + $0x308] sm:$0xff]
    %v400 = vld [vmem:[#allocation8 + $0x310] sm:$0xff]
    %v401 = vld [vmem:[#allocation8 + $0x318] sm:$0xff]
    %v402 = vld [vmem:[#allocation8 + $0x320] sm:$0xff]
    %v403 = vld [vmem:[#allocation8 + $0x328] sm:$0xff]
    %v404 = vld [vmem:[#allocation8 + $0x330] sm:$0xff]
    %v405 = vld [vmem:[#allocation8 + $0x338] sm:$0xff]
    %v406 = vld [vmem:[#allocation8 + $0x340] sm:$0xff]
    %v407 = vld [vmem:[#allocation8 + $0x348] sm:$0xff]
    %v408 = vld [vmem:[#allocation8 + $0x350] sm:$0xff]
    %v409 = vld [vmem:[#allocation8 + $0x358] sm:$0xff]
    %v410 = vld [vmem:[#allocation8 + $0x360] sm:$0xff]
    %v411 = vld [vmem:[#allocation8 + $0x368] sm:$0xff]
    %v412 = vld [vmem:[#allocation8 + $0x370] sm:$0xff]
    %v413 = vld [vmem:[#allocation8 + $0x378] sm:$0xff]
    %v414 = vld [vmem:[#allocation8 + $0x380] sm:$0xff]
    %v415 = vld [vmem:[#allocation8 + $0x388] sm:$0xff]
    %v416 = vld [vmem:[#allocation8 + $0x390] sm:$0xff]
    %v417 = vld [vmem:[#allocation8 + $0x398] sm:$0xff]
    %v418 = vld [vmem:[#allocation8 + $0x3a0] sm:$0xff]
    %v419 = vld [vmem:[#allocation8 + $0x3a8] sm:$0xff]
    %v420 = vld [vmem:[#allocation8 + $0x3b0] sm:$0xff]
    %v421 = vld [vmem:[#allocation8 + $0x3b8] sm:$0xff]
    %v422 = vld [vmem:[#allocation8 + $0x3c0] sm:$0xff]
    %v423 = vld [vmem:[#allocation8 + $0x3c8] sm:$0xff]
    %v424 = vld [vmem:[#allocation8 + $0x3d0] sm:$0xff]
    %v425 = vld [vmem:[#allocation8 + $0x3d8] sm:$0xff]
    %v426 = vld [vmem:[#allocation8 + $0x3e0] sm:$0xff]
    %v427 = vld [vmem:[#allocation8 + $0x3e8] sm:$0xff]
    %v428 = vld [vmem:[#allocation8 + $0x3f0] sm:$0xff]
    %v429 = vld [vmem:[#allocation8 + $0x3f8] sm:$0xff]
    %430 = vmatpush.msra.mxu0 %v317
    %431 = vmatpush.msra.mxu0 %v316
    %432 = vmatpush.msra.mxu0 %v315
    %433 = vmatpush.msra.mxu0 %v314
    %434 = vmatpush.msra.mxu0 %v313
    %435 = vmatpush.msra.mxu0 %v312
    %436 = vmatpush.msra.mxu0 %v311
    %437 = vmatpush.msra.mxu0 %v310
    %438 = vmatpush.msra.mxu0 %v309
    %439 = vmatpush.msra.mxu0 %v308
    %440 = vmatpush.msra.mxu0 %v307
    %441 = vmatpush.msra.mxu0 %v306
    %442 = vmatpush.msra.mxu0 %v305
    %443 = vmatpush.msra.mxu0 %v304
    %444 = vmatpush.msra.mxu0 %v303
    %445 = vmatpush.msra.mxu0 %v302
    %446 = vmatmul.f32.gmra.mxu0 %v252
    %v447 = vpop.f32.mrf.mxu0
    %v448 = vadd.f32 0.0, %v447
    %449 = vdwg.mxu0
    %450 = vmatpush.msra.mxu0 %v333
    %451 = vmatpush.msra.mxu0 %v332
    %452 = vmatpush.msra.mxu0 %v331
    %453 = vmatpush.msra.mxu0 %v330
    %454 = vmatpush.msra.mxu0 %v329
    %455 = vmatpush.msra.mxu0 %v328
    %456 = vmatpush.msra.mxu0 %v327
    %457 = vmatpush.msra.mxu0 %v326
    %458 = vmatpush.msra.mxu0 %v325
    %459 = vmatpush.msra.mxu0 %v324
    %460 = vmatpush.msra.mxu0 %v323
    %461 = vmatpush.msra.mxu0 %v322
    %462 = vmatpush.msra.mxu0 %v321
    %463 = vmatpush.msra.mxu0 %v320
    %464 = vmatpush.msra.mxu0 %v319
    %465 = vmatpush.msra.mxu0 %v318
    %466 = vmatmul.f32.gmra.mxu0 %v259
    %v467 = vpop.f32.mrf.mxu0
    %v468 = vadd.f32 %v448, %v467
    %469 = vdwg.mxu0
    %470 = vmatpush.msra.mxu0 %v349
    %471 = vmatpush.msra.mxu0 %v348
    %472 = vmatpush.msra.mxu0 %v347
    %473 = vmatpush.msra.mxu0 %v346
    %474 = vmatpush.msra.mxu0 %v345
    %475 = vmatpush.msra.mxu0 %v344
    %476 = vmatpush.msra.mxu0 %v343
    %477 = vmatpush.msra.mxu0 %v342
    %478 = vmatpush.msra.mxu0 %v341
    %479 = vmatpush.msra.mxu0 %v340
    %480 = vmatpush.msra.mxu0 %v339
    %481 = vmatpush.msra.mxu0 %v338
    %482 = vmatpush.msra.mxu0 %v337
    %483 = vmatpush.msra.mxu0 %v336
    %484 = vmatpush.msra.mxu0 %v335
    %485 = vmatpush.msra.mxu0 %v334
    %486 = vmatmul.f32.gmra.mxu0 %v266
    %v487 = vpop.f32.mrf.mxu0
    %v488 = vadd.f32 %v468, %v487
    %489 = vdwg.mxu0
    %490 = vmatpush.msra.mxu0 %v365
    %491 = vmatpush.msra.mxu0 %v364
    %492 = vmatpush.msra.mxu0 %v363
    %493 = vmatpush.msra.mxu0 %v362
    %494 = vmatpush.msra.mxu0 %v361
    %495 = vmatpush.msra.mxu0 %v360
    %496 = vmatpush.msra.mxu0 %v359
    %497 = vmatpush.msra.mxu0 %v358
    %498 = vmatpush.msra.mxu0 %v357
    %499 = vmatpush.msra.mxu0 %v356
    %500 = vmatpush.msra.mxu0 %v355
    %501 = vmatpush.msra.mxu0 %v354
    %502 = vmatpush.msra.mxu0 %v353
    %503 = vmatpush.msra.mxu0 %v352
    %504 = vmatpush.msra.mxu0 %v351
    %505 = vmatpush.msra.mxu0 %v350
    %506 = vmatmul.f32.gmra.mxu0 %v273
    %v507 = vpop.f32.mrf.mxu0
    %v508 = vadd.f32 %v488, %v507
    %509 = vdwg.mxu0
    %510 = vmatpush.msra.mxu0 %v381
    %511 = vmatpush.msra.mxu0 %v380
    %512 = vmatpush.msra.mxu0 %v379
    %513 = vmatpush.msra.mxu0 %v378
    %514 = vmatpush.msra.mxu0 %v377
    %515 = vmatpush.msra.mxu0 %v376
    %516 = vmatpush.msra.mxu0 %v375
    %517 = vmatpush.msra.mxu0 %v374
    %518 = vmatpush.msra.mxu0 %v373
    %519 = vmatpush.msra.mxu0 %v372
    %520 = vmatpush.msra.mxu0 %v371
    %521 = vmatpush.msra.mxu0 %v370
    %522 = vmatpush.msra.mxu0 %v369
    %523 = vmatpush.msra.mxu0 %v368
    %524 = vmatpush.msra.mxu0 %v367
    %525 = vmatpush.msra.mxu0 %v366
    %526 = vmatmul.f32.gmra.mxu0 %v280
    %v527 = vpop.f32.mrf.mxu0
    %v528 = vadd.f32 %v508, %v527
    %529 = vdwg.mxu0
    %530 = vmatpush.msra.mxu0 %v397
    %531 = vmatpush.msra.mxu0 %v396
    %532 = vmatpush.msra.mxu0 %v395
    %533 = vmatpush.msra.mxu0 %v394
    %534 = vmatpush.msra.mxu0 %v393
    %535 = vmatpush.msra.mxu0 %v392
    %536 = vmatpush.msra.mxu0 %v391
    %537 = vmatpush.msra.mxu0 %v390
    %538 = vmatpush.msra.mxu0 %v389
    %539 = vmatpush.msra.mxu0 %v388
    %540 = vmatpush.msra.mxu0 %v387
    %541 = vmatpush.msra.mxu0 %v386
    %542 = vmatpush.msra.mxu0 %v385
    %543 = vmatpush.msra.mxu0 %v384
    %544 = vmatpush.msra.mxu0 %v383
    %545 = vmatpush.msra.mxu0 %v382
    %546 = vmatmul.f32.gmra.mxu0 %v287
    %v547 = vpop.f32.mrf.mxu0
    %v548 = vadd.f32 %v528, %v547
    %549 = vdwg.mxu0
    %550 = vmatpush.msra.mxu0 %v413
    %551 = vmatpush.msra.mxu0 %v412
    %552 = vmatpush.msra.mxu0 %v411
    %553 = vmatpush.msra.mxu0 %v410
    %554 = vmatpush.msra.mxu0 %v409
    %555 = vmatpush.msra.mxu0 %v408
    %556 = vmatpush.msra.mxu0 %v407
    %557 = vmatpush.msra.mxu0 %v406
    %558 = vmatpush.msra.mxu0 %v405
    %559 = vmatpush.msra.mxu0 %v404
    %560 = vmatpush.msra.mxu0 %v403
    %561 = vmatpush.msra.mxu0 %v402
    %562 = vmatpush.msra.mxu0 %v401
    %563 = vmatpush.msra.mxu0 %v400
    %564 = vmatpush.msra.mxu0 %v399
    %565 = vmatpush.msra.mxu0 %v398
    %566 = vmatmul.f32.gmra.mxu0 %v294
    %v567 = vpop.f32.mrf.mxu0
    %v568 = vadd.f32 %v548, %v567
    %569 = vdwg.mxu0
    %570 = vmatpush.msra.mxu0 %v429
    %571 = vmatpush.msra.mxu0 %v428
    %572 = vmatpush.msra.mxu0 %v427
    %573 = vmatpush.msra.mxu0 %v426
    %574 = vmatpush.msra.mxu0 %v425
    %575 = vmatpush.msra.mxu0 %v424
    %576 = vmatpush.msra.mxu0 %v423
    %577 = vmatpush.msra.mxu0 %v422
    %578 = vmatpush.msra.mxu0 %v421
    %579 = vmatpush.msra.mxu0 %v420
    %580 = vmatpush.msra.mxu0 %v419
    %581 = vmatpush.msra.mxu0 %v418
    %582 = vmatpush.msra.mxu0 %v417
    %583 = vmatpush.msra.mxu0 %v416
    %584 = vmatpush.msra.mxu0 %v415
    %585 = vmatpush.msra.mxu0 %v414
    %586 = vmatmul.f32.gmra.mxu0 %v301
    %v587 = vpop.f32.mrf.mxu0
    %v588 = vadd.f32 %v568, %v587
    %589 = vdwg.mxu0
    %v590 = vmul.f32 %v588, 0.0078125
    %v591 = vld [vmem:[#allocation7] sm:$0xff]
    %v592 = vld [vmem:[#allocation7 + $0x8] sm:$0xff]
    %v593 = vld [vmem:[#allocation7 + $0x10] sm:$0xff]
    %v594 = vld [vmem:[#allocation7 + $0x18] sm:$0xff]
    %v595 = vld [vmem:[#allocation7 + $0x20] sm:$0xff]
    %v596 = vld [vmem:[#allocation7 + $0x28] sm:$0xff]
    %v597 = vld [vmem:[#allocation7 + $0x30] sm:$0xff]
    %v598 = vld [vmem:[#allocation7 + $0x38] sm:$0xff]
    %v599 = vld [vmem:[#allocation7 + $0x40] sm:$0xff]
    %v600 = vld [vmem:[#allocation7 + $0x48] sm:$0xff]
    %v601 = vld [vmem:[#allocation7 + $0x50] sm:$0xff]
    %v602 = vld [vmem:[#allocation7 + $0x58] sm:$0xff]
    %v603 = vld [vmem:[#allocation7 + $0x60] sm:$0xff]
    %v604 = vld [vmem:[#allocation7 + $0x68] sm:$0xff]
    %v605 = vld [vmem:[#allocation7 + $0x70] sm:$0xff]
    %v606 = vld [vmem:[#allocation7 + $0x78] sm:$0xff]
    %v607 = vld [vmem:[#allocation7 + $0x80] sm:$0xff]
    %v608 = vld [vmem:[#allocation7 + $0x88] sm:$0xff]
    %v609 = vld [vmem:[#allocation7 + $0x90] sm:$0xff]
    %v610 = vld [vmem:[#allocation7 + $0x98] sm:$0xff]
    %v611 = vld [vmem:[#allocation7 + $0xa0] sm:$0xff]
    %v612 = vld [vmem:[#allocation7 + $0xa8] sm:$0xff]
    %v613 = vld [vmem:[#allocation7 + $0xb0] sm:$0xff]
    %v614 = vld [vmem:[#allocation7 + $0xb8] sm:$0xff]
    %v615 = vld [vmem:[#allocation7 + $0xc0] sm:$0xff]
    %v616 = vld [vmem:[#allocation7 + $0xc8] sm:$0xff]
    %v617 = vld [vmem:[#allocation7 + $0xd0] sm:$0xff]
    %v618 = vld [vmem:[#allocation7 + $0xd8] sm:$0xff]
    %v619 = vld [vmem:[#allocation7 + $0xe0] sm:$0xff]
    %v620 = vld [vmem:[#allocation7 + $0xe8] sm:$0xff]
    %v621 = vld [vmem:[#allocation7 + $0xf0] sm:$0xff]
    %v622 = vld [vmem:[#allocation7 + $0xf8] sm:$0xff]
    %v623 = vld [vmem:[#allocation7 + $0x100] sm:$0xff]
    %v624 = vld [vmem:[#allocation7 + $0x108] sm:$0xff]
    %v625 = vld [vmem:[#allocation7 + $0x110] sm:$0xff]
    %v626 = vld [vmem:[#allocation7 + $0x118] sm:$0xff]
    %v627 = vld [vmem:[#allocation7 + $0x120] sm:$0xff]
    %v628 = vld [vmem:[#allocation7 + $0x128] sm:$0xff]
    %v629 = vld [vmem:[#allocation7 + $0x130] sm:$0xff]
    %v630 = vld [vmem:[#allocation7 + $0x138] sm:$0xff]
    %v631 = vld [vmem:[#allocation7 + $0x140] sm:$0xff]
    %v632 = vld [vmem:[#allocation7 + $0x148] sm:$0xff]
    %v633 = vld [vmem:[#allocation7 + $0x150] sm:$0xff]
    %v634 = vld [vmem:[#allocation7 + $0x158] sm:$0xff]
    %v635 = vld [vmem:[#allocation7 + $0x160] sm:$0xff]
    %v636 = vld [vmem:[#allocation7 + $0x168] sm:$0xff]
    %v637 = vld [vmem:[#allocation7 + $0x170] sm:$0xff]
    %v638 = vld [vmem:[#allocation7 + $0x178] sm:$0xff]
    %v639 = vld [vmem:[#allocation7 + $0x180] sm:$0xff]
    %v640 = vld [vmem:[#allocation7 + $0x188] sm:$0xff]
    %v641 = vld [vmem:[#allocation7 + $0x190] sm:$0xff]
    %v642 = vld [vmem:[#allocation7 + $0x198] sm:$0xff]
    %v643 = vld [vmem:[#allocation7 + $0x1a0] sm:$0xff]
    %v644 = vld [vmem:[#allocation7 + $0x1a8] sm:$0xff]
    %v645 = vld [vmem:[#allocation7 + $0x1b0] sm:$0xff]
    %v646 = vld [vmem:[#allocation7 + $0x1b8] sm:$0xff]
    %v647 = vld [vmem:[#allocation7 + $0x1c0] sm:$0xff]
    %v648 = vld [vmem:[#allocation7 + $0x1c8] sm:$0xff]
    %v649 = vld [vmem:[#allocation7 + $0x1d0] sm:$0xff]
    %v650 = vld [vmem:[#allocation7 + $0x1d8] sm:$0xff]
    %v651 = vld [vmem:[#allocation7 + $0x1e0] sm:$0xff]
    %v652 = vld [vmem:[#allocation7 + $0x1e8] sm:$0xff]
    %v653 = vld [vmem:[#allocation7 + $0x1f0] sm:$0xff]
    %v654 = vld [vmem:[#allocation7 + $0x1f8] sm:$0xff]
    %v655 = vld [vmem:[#allocation7 + $0x200] sm:$0xff]
    %v656 = vld [vmem:[#allocation7 + $0x208] sm:$0xff]
    %v657 = vld [vmem:[#allocation7 + $0x210] sm:$0xff]
    %v658 = vld [vmem:[#allocation7 + $0x218] sm:$0xff]
    %v659 = vld [vmem:[#allocation7 + $0x220] sm:$0xff]
    %v660 = vld [vmem:[#allocation7 + $0x228] sm:$0xff]
    %v661 = vld [vmem:[#allocation7 + $0x230] sm:$0xff]
    %v662 = vld [vmem:[#allocation7 + $0x238] sm:$0xff]
    %v663 = vld [vmem:[#allocation7 + $0x240] sm:$0xff]
    %v664 = vld [vmem:[#allocation7 + $0x248] sm:$0xff]
    %v665 = vld [vmem:[#allocation7 + $0x250] sm:$0xff]
    %v666 = vld [vmem:[#allocation7 + $0x258] sm:$0xff]
    %v667 = vld [vmem:[#allocation7 + $0x260] sm:$0xff]
    %v668 = vld [vmem:[#allocation7 + $0x268] sm:$0xff]
    %v669 = vld [vmem:[#allocation7 + $0x270] sm:$0xff]
    %v670 = vld [vmem:[#allocation7 + $0x278] sm:$0xff]
    %v671 = vld [vmem:[#allocation7 + $0x280] sm:$0xff]
    %v672 = vld [vmem:[#allocation7 + $0x288] sm:$0xff]
    %v673 = vld [vmem:[#allocation7 + $0x290] sm:$0xff]
    %v674 = vld [vmem:[#allocation7 + $0x298] sm:$0xff]
    %v675 = vld [vmem:[#allocation7 + $0x2a0] sm:$0xff]
    %v676 = vld [vmem:[#allocation7 + $0x2a8] sm:$0xff]
    %v677 = vld [vmem:[#allocation7 + $0x2b0] sm:$0xff]
    %v678 = vld [vmem:[#allocation7 + $0x2b8] sm:$0xff]
    %v679 = vld [vmem:[#allocation7 + $0x2c0] sm:$0xff]
    %v680 = vld [vmem:[#allocation7 + $0x2c8] sm:$0xff]
    %v681 = vld [vmem:[#allocation7 + $0x2d0] sm:$0xff]
    %v682 = vld [vmem:[#allocation7 + $0x2d8] sm:$0xff]
    %v683 = vld [vmem:[#allocation7 + $0x2e0] sm:$0xff]
    %v684 = vld [vmem:[#allocation7 + $0x2e8] sm:$0xff]
    %v685 = vld [vmem:[#allocation7 + $0x2f0] sm:$0xff]
    %v686 = vld [vmem:[#allocation7 + $0x2f8] sm:$0xff]
    %v687 = vld [vmem:[#allocation7 + $0x300] sm:$0xff]
    %v688 = vld [vmem:[#allocation7 + $0x308] sm:$0xff]
    %v689 = vld [vmem:[#allocation7 + $0x310] sm:$0xff]
    %v690 = vld [vmem:[#allocation7 + $0x318] sm:$0xff]
    %v691 = vld [vmem:[#allocation7 + $0x320] sm:$0xff]
    %v692 = vld [vmem:[#allocation7 + $0x328] sm:$0xff]
    %v693 = vld [vmem:[#allocation7 + $0x330] sm:$0xff]
    %v694 = vld [vmem:[#allocation7 + $0x338] sm:$0xff]
    %v695 = vld [vmem:[#allocation7 + $0x340] sm:$0xff]
    %v696 = vld [vmem:[#allocation7 + $0x348] sm:$0xff]
    %v697 = vld [vmem:[#allocation7 + $0x350] sm:$0xff]
    %v698 = vld [vmem:[#allocation7 + $0x358] sm:$0xff]
    %v699 = vld [vmem:[#allocation7 + $0x360] sm:$0xff]
    %v700 = vld [vmem:[#allocation7 + $0x368] sm:$0xff]
    %v701 = vld [vmem:[#allocation7 + $0x370] sm:$0xff]
    %v702 = vld [vmem:[#allocation7 + $0x378] sm:$0xff]
    %v703 = vld [vmem:[#allocation7 + $0x380] sm:$0xff]
    %v704 = vld [vmem:[#allocation7 + $0x388] sm:$0xff]
    %v705 = vld [vmem:[#allocation7 + $0x390] sm:$0xff]
    %v706 = vld [vmem:[#allocation7 + $0x398] sm:$0xff]
    %v707 = vld [vmem:[#allocation7 + $0x3a0] sm:$0xff]
    %v708 = vld [vmem:[#allocation7 + $0x3a8] sm:$0xff]
    %v709 = vld [vmem:[#allocation7 + $0x3b0] sm:$0xff]
    %v710 = vld [vmem:[#allocation7 + $0x3b8] sm:$0xff]
    %v711 = vld [vmem:[#allocation7 + $0x3c0] sm:$0xff]
    %v712 = vld [vmem:[#allocation7 + $0x3c8] sm:$0xff]
    %v713 = vld [vmem:[#allocation7 + $0x3d0] sm:$0xff]
    %v714 = vld [vmem:[#allocation7 + $0x3d8] sm:$0xff]
    %v715 = vld [vmem:[#allocation7 + $0x3e0] sm:$0xff]
    %v716 = vld [vmem:[#allocation7 + $0x3e8] sm:$0xff]
    %v717 = vld [vmem:[#allocation7 + $0x3f0] sm:$0xff]
    %v718 = vld [vmem:[#allocation7 + $0x3f8] sm:$0xff]
    %719 = vmatpush.msra.mxu0 %v711
    %720 = vmatpush.msra.mxu0 %v703
    %721 = vmatpush.msra.mxu0 %v695
    %722 = vmatpush.msra.mxu0 %v687
    %723 = vmatpush.msra.mxu0 %v679
    %724 = vmatpush.msra.mxu0 %v671
    %725 = vmatpush.msra.mxu0 %v663
    %726 = vmatpush.msra.mxu0 %v655
    %727 = vmatpush.msra.mxu0 %v647
    %728 = vmatpush.msra.mxu0 %v639
    %729 = vmatpush.msra.mxu0 %v631
    %730 = vmatpush.msra.mxu0 %v623
    %731 = vmatpush.msra.mxu0 %v615
    %732 = vmatpush.msra.mxu0 %v607
    %733 = vmatpush.msra.mxu0 %v599
    %734 = vmatpush.msra.mxu0 %v591
    %735 = vmatmul.f32.gmra.mxu0 %v590
    %v736 = vpop.f32.mrf.mxu0
    %v737 = vadd.f32 0.0, %v736
    %738 = vdwg.mxu0
    %739 = vmatpush.msra.mxu0 %v712
    %740 = vmatpush.msra.mxu0 %v704
    %741 = vmatpush.msra.mxu0 %v696
    %742 = vmatpush.msra.mxu0 %v688
    %743 = vmatpush.msra.mxu0 %v680
    %744 = vmatpush.msra.mxu0 %v672
    %745 = vmatpush.msra.mxu0 %v664
    %746 = vmatpush.msra.mxu0 %v656
    %747 = vmatpush.msra.mxu0 %v648
    %748 = vmatpush.msra.mxu0 %v640
    %749 = vmatpush.msra.mxu0 %v632
    %750 = vmatpush.msra.mxu0 %v624
    %751 = vmatpush.msra.mxu0 %v616
    %752 = vmatpush.msra.mxu0 %v608
    %753 = vmatpush.msra.mxu0 %v600
    %754 = vmatpush.msra.mxu0 %v592
    %755 = vmatmul.f32.gmra.mxu0 %v590
    %v756 = vpop.f32.mrf.mxu0
    %v757 = vadd.f32 0.0, %v756
    %758 = vdwg.mxu0
    %759 = vmatpush.msra.mxu0 %v713
    %760 = vmatpush.msra.mxu0 %v705
    %761 = vmatpush.msra.mxu0 %v697
    %762 = vmatpush.msra.mxu0 %v689
    %763 = vmatpush.msra.mxu0 %v681
    %764 = vmatpush.msra.mxu0 %v673
    %765 = vmatpush.msra.mxu0 %v665
    %766 = vmatpush.msra.mxu0 %v657
    %767 = vmatpush.msra.mxu0 %v649
    %768 = vmatpush.msra.mxu0 %v641
    %769 = vmatpush.msra.mxu0 %v633
    %770 = vmatpush.msra.mxu0 %v625
    %771 = vmatpush.msra.mxu0 %v617
    %772 = vmatpush.msra.mxu0 %v609
    %773 = vmatpush.msra.mxu0 %v601
    %774 = vmatpush.msra.mxu0 %v593
    %775 = vmatmul.f32.gmra.mxu0 %v590
    %v776 = vpop.f32.mrf.mxu0
    %v777 = vadd.f32 0.0, %v776
    %778 = vdwg.mxu0
    %779 = vmatpush.msra.mxu0 %v714
    %780 = vmatpush.msra.mxu0 %v706
    %781 = vmatpush.msra.mxu0 %v698
    %782 = vmatpush.msra.mxu0 %v690
    %783 = vmatpush.msra.mxu0 %v682
    %784 = vmatpush.msra.mxu0 %v674
    %785 = vmatpush.msra.mxu0 %v666
    %786 = vmatpush.msra.mxu0 %v658
    %787 = vmatpush.msra.mxu0 %v650
    %788 = vmatpush.msra.mxu0 %v642
    %789 = vmatpush.msra.mxu0 %v634
    %790 = vmatpush.msra.mxu0 %v626
    %791 = vmatpush.msra.mxu0 %v618
    %792 = vmatpush.msra.mxu0 %v610
    %793 = vmatpush.msra.mxu0 %v602
    %794 = vmatpush.msra.mxu0 %v594
    %795 = vmatmul.f32.gmra.mxu0 %v590
    %v796 = vpop.f32.mrf.mxu0
    %v797 = vadd.f32 0.0, %v796
    %798 = vdwg.mxu0
    %799 = vmatpush.msra.mxu0 %v715
    %800 = vmatpush.msra.mxu0 %v707
    %801 = vmatpush.msra.mxu0 %v699
    %802 = vmatpush.msra.mxu0 %v691
    %803 = vmatpush.msra.mxu0 %v683
    %804 = vmatpush.msra.mxu0 %v675
    %805 = vmatpush.msra.mxu0 %v667
    %806 = vmatpush.msra.mxu0 %v659
    %807 = vmatpush.msra.mxu0 %v651
    %808 = vmatpush.msra.mxu0 %v643
    %809 = vmatpush.msra.mxu0 %v635
    %810 = vmatpush.msra.mxu0 %v627
    %811 = vmatpush.msra.mxu0 %v619
    %812 = vmatpush.msra.mxu0 %v611
    %813 = vmatpush.msra.mxu0 %v603
    %814 = vmatpush.msra.mxu0 %v595
    %815 = vmatmul.f32.gmra.mxu0 %v590
    %v816 = vpop.f32.mrf.mxu0
    %v817 = vadd.f32 0.0, %v816
    %818 = vdwg.mxu0
    %819 = vmatpush.msra.mxu0 %v716
    %820 = vmatpush.msra.mxu0 %v708
    %821 = vmatpush.msra.mxu0 %v700
    %822 = vmatpush.msra.mxu0 %v692
    %823 = vmatpush.msra.mxu0 %v684
    %824 = vmatpush.msra.mxu0 %v676
    %825 = vmatpush.msra.mxu0 %v668
    %826 = vmatpush.msra.mxu0 %v660
    %827 = vmatpush.msra.mxu0 %v652
    %828 = vmatpush.msra.mxu0 %v644
    %829 = vmatpush.msra.mxu0 %v636
    %830 = vmatpush.msra.mxu0 %v628
    %831 = vmatpush.msra.mxu0 %v620
    %832 = vmatpush.msra.mxu0 %v612
    %833 = vmatpush.msra.mxu0 %v604
    %834 = vmatpush.msra.mxu0 %v596
    %835 = vmatmul.f32.gmra.mxu0 %v590
    %v836 = vpop.f32.mrf.mxu0
    %v837 = vadd.f32 0.0, %v836
    %838 = vdwg.mxu0
    %839 = vmatpush.msra.mxu0 %v717
    %840 = vmatpush.msra.mxu0 %v709
    %841 = vmatpush.msra.mxu0 %v701
    %842 = vmatpush.msra.mxu0 %v693
    %843 = vmatpush.msra.mxu0 %v685
    %844 = vmatpush.msra.mxu0 %v677
    %845 = vmatpush.msra.mxu0 %v669
    %846 = vmatpush.msra.mxu0 %v661
    %847 = vmatpush.msra.mxu0 %v653
    %848 = vmatpush.msra.mxu0 %v645
    %849 = vmatpush.msra.mxu0 %v637
    %850 = vmatpush.msra.mxu0 %v629
    %851 = vmatpush.msra.mxu0 %v621
    %852 = vmatpush.msra.mxu0 %v613
    %853 = vmatpush.msra.mxu0 %v605
    %854 = vmatpush.msra.mxu0 %v597
    %855 = vmatmul.f32.gmra.mxu0 %v590
    %v856 = vpop.f32.mrf.mxu0
    %v857 = vadd.f32 0.0, %v856
    %858 = vdwg.mxu0
    %859 = vmatpush.msra.mxu0 %v718
    %860 = vmatpush.msra.mxu0 %v710
    %861 = vmatpush.msra.mxu0 %v702
    %862 = vmatpush.msra.mxu0 %v694
    %863 = vmatpush.msra.mxu0 %v686
    %864 = vmatpush.msra.mxu0 %v678
    %865 = vmatpush.msra.mxu0 %v670
    %866 = vmatpush.msra.mxu0 %v662
    %867 = vmatpush.msra.mxu0 %v654
    %868 = vmatpush.msra.mxu0 %v646
    %869 = vmatpush.msra.mxu0 %v638
    %870 = vmatpush.msra.mxu0 %v630
    %871 = vmatpush.msra.mxu0 %v622
    %872 = vmatpush.msra.mxu0 %v614
    %873 = vmatpush.msra.mxu0 %v606
    %874 = vmatpush.msra.mxu0 %v598
    %875 = vmatmul.f32.gmra.mxu0 %v590
    %v876 = vpop.f32.mrf.mxu0
    %v877 = vadd.f32 0.0, %v876
    %878 = vdwg.mxu0
    %v879 = vperm.slane %v737, 0
    %v880 = vperm.slane %v757, 0
    %v881 = vperm.slane %v777, 0
    %v882 = vperm.slane %v797, 0
    %v883 = vperm.slane %v817, 0
    %v884 = vperm.slane %v837, 0
    %v885 = vperm.slane %v857, 0
    %v886 = vperm.slane %v877, 0
    %v895 = vrot.slane %v880, 6
    %v896 = vrot.slane %v881, 4
    %v897 = vrot.slane %v882, 2
    %v898 = vrot.slane %v884, 6
    %v899 = vrot.slane %v885, 4
    %v900 = vrot.slane %v886, 2
    %v901 = vsel %vm245, %v879, %v895
    %vm902 = vcmask 1045508
    %v903 = vsel %vm902, %v896, %v897
    %vm904 = vcmask 1043456
    %v905 = vsel %vm904, %v901, %v903
    %v906 = vsel %vm245, %v883, %v898
    %v907 = vsel %vm902, %v899, %v900
    %v908 = vsel %vm904, %v906, %v907
    %v911 = vsub.f32 %v222, %v905
    %v912 = vsub.f32 %v223, %v908
    %v913 = vmul.f32 %v911, %v911
    %v914 = vmul.f32 %v912, %v912
    %917 = vst [vmem:[#allocation1] ss:$4 sm:$0xff] %v913
    %s918 = scalar_lea.vmem [#allocation1], 32
    %919 = vst [vmem:[%s918] ss:$4 sm:$0xff] %v914
    %v920 = vld.sshfl [vmem:[#allocation1] sm:$0xff pattern:$0x73625140]
    %v921 = vld.sshfl [vmem:[#allocation1 + $0x8] sm:$0xff pattern:$0x73625140]
    %v922 = vld.sshfl [vmem:[#allocation1 + $0x10] sm:$0xff pattern:$0x73625140]
    %v923 = vld.sshfl [vmem:[#allocation1 + $0x18] sm:$0xff pattern:$0x73625140]
    %v924 = vld.sshfl [vmem:[#allocation1 + $0x20] sm:$0xff pattern:$0x73625140]
    %v925 = vld.sshfl [vmem:[#allocation1 + $0x28] sm:$0xff pattern:$0x73625140]
    %v926 = vld.sshfl [vmem:[#allocation1 + $0x30] sm:$0xff pattern:$0x73625140]
    %v927 = vld.sshfl [vmem:[#allocation1 + $0x38] sm:$0xff pattern:$0x73625140]
    %v936 = vsel %vm245, %v920, 0.0
    %v937 = vrot.slane %v936, 4
    %v938 = vadd.f32 %v936, %v937
    %v939 = vrot.slane %v938, 2
    %v940 = vadd.f32 %v938, %v939
    %v941 = vrot.slane %v940, 1
    %v942 = vadd.f32 %v940, %v941
    %v943 = vsel %vm245, %v921, 0.0
    %v944 = vrot.slane %v943, 4
    %v945 = vadd.f32 %v943, %v944
    %v946 = vrot.slane %v945, 2
    %v947 = vadd.f32 %v945, %v946
    %v948 = vrot.slane %v947, 1
    %v949 = vadd.f32 %v947, %v948
    %v950 = vsel %vm245, %v922, 0.0
    %v951 = vrot.slane %v950, 4
    %v952 = vadd.f32 %v950, %v951
    %v953 = vrot.slane %v952, 2
    %v954 = vadd.f32 %v952, %v953
    %v955 = vrot.slane %v954, 1
    %v956 = vadd.f32 %v954, %v955
    %v957 = vsel %vm245, %v923, 0.0
    %v958 = vrot.slane %v957, 4
    %v959 = vadd.f32 %v957, %v958
    %v960 = vrot.slane %v959, 2
    %v961 = vadd.f32 %v959, %v960
    %v962 = vrot.slane %v961, 1
    %v963 = vadd.f32 %v961, %v962
    %v964 = vsel %vm245, %v924, 0.0
    %v965 = vrot.slane %v964, 4
    %v966 = vadd.f32 %v964, %v965
    %v967 = vrot.slane %v966, 2
    %v968 = vadd.f32 %v966, %v967
    %v969 = vrot.slane %v968, 1
    %v970 = vadd.f32 %v968, %v969
    %v971 = vsel %vm245, %v925, 0.0
    %v972 = vrot.slane %v971, 4
    %v973 = vadd.f32 %v971, %v972
    %v974 = vrot.slane %v973, 2
    %v975 = vadd.f32 %v973, %v974
    %v976 = vrot.slane %v975, 1
    %v977 = vadd.f32 %v975, %v976
    %v978 = vsel %vm245, %v926, 0.0
    %v979 = vrot.slane %v978, 4
    %v980 = vadd.f32 %v978, %v979
    %v981 = vrot.slane %v980, 2
    %v982 = vadd.f32 %v980, %v981
    %v983 = vrot.slane %v982, 1
    %v984 = vadd.f32 %v982, %v983
    %v985 = vsel %vm245, %v927, 0.0
    %v986 = vrot.slane %v985, 4
    %v987 = vadd.f32 %v985, %v986
    %v988 = vrot.slane %v987, 2
    %v989 = vadd.f32 %v987, %v988
    %v990 = vrot.slane %v989, 1
    %v991 = vadd.f32 %v989, %v990
    %992 = vmatpush.msra.mxu0 %v317
    %993 = vmatpush.msra.mxu0 %v316
    %994 = vmatpush.msra.mxu0 %v315
    %995 = vmatpush.msra.mxu0 %v314
    %996 = vmatpush.msra.mxu0 %v313
    %997 = vmatpush.msra.mxu0 %v312
    %998 = vmatpush.msra.mxu0 %v311
    %999 = vmatpush.msra.mxu0 %v310
    %1000 = vmatpush.msra.mxu0 %v309
    %1001 = vmatpush.msra.mxu0 %v308
    %1002 = vmatpush.msra.mxu0 %v307
    %1003 = vmatpush.msra.mxu0 %v306
    %1004 = vmatpush.msra.mxu0 %v305
    %1005 = vmatpush.msra.mxu0 %v304
    %1006 = vmatpush.msra.mxu0 %v303
    %1007 = vmatpush.msra.mxu0 %v302
    %1008 = vmatmul.f32.gmra.mxu0 %v942
    %v1009 = vpop.f32.mrf.mxu0
    %v1010 = vadd.f32 0.0, %v1009
    %1011 = vdwg.mxu0
    %1012 = vmatpush.msra.mxu0 %v333
    %1013 = vmatpush.msra.mxu0 %v332
    %1014 = vmatpush.msra.mxu0 %v331
    %1015 = vmatpush.msra.mxu0 %v330
    %1016 = vmatpush.msra.mxu0 %v329
    %1017 = vmatpush.msra.mxu0 %v328
    %1018 = vmatpush.msra.mxu0 %v327
    %1019 = vmatpush.msra.mxu0 %v326
    %1020 = vmatpush.msra.mxu0 %v325
    %1021 = vmatpush.msra.mxu0 %v324
    %1022 = vmatpush.msra.mxu0 %v323
    %1023 = vmatpush.msra.mxu0 %v322
    %1024 = vmatpush.msra.mxu0 %v321
    %1025 = vmatpush.msra.mxu0 %v320
    %1026 = vmatpush.msra.mxu0 %v319
    %1027 = vmatpush.msra.mxu0 %v318
    %1028 = vmatmul.f32.gmra.mxu0 %v949
    %v1029 = vpop.f32.mrf.mxu0
    %v1030 = vadd.f32 %v1010, %v1029
    %1031 = vdwg.mxu0
    %1032 = vmatpush.msra.mxu0 %v349
    %1033 = vmatpush.msra.mxu0 %v348
    %1034 = vmatpush.msra.mxu0 %v347
    %1035 = vmatpush.msra.mxu0 %v346
    %1036 = vmatpush.msra.mxu0 %v345
    %1037 = vmatpush.msra.mxu0 %v344
    %1038 = vmatpush.msra.mxu0 %v343
    %1039 = vmatpush.msra.mxu0 %v342
    %1040 = vmatpush.msra.mxu0 %v341
    %1041 = vmatpush.msra.mxu0 %v340
    %1042 = vmatpush.msra.mxu0 %v339
    %1043 = vmatpush.msra.mxu0 %v338
    %1044 = vmatpush.msra.mxu0 %v337
    %1045 = vmatpush.msra.mxu0 %v336
    %1046 = vmatpush.msra.mxu0 %v335
    %1047 = vmatpush.msra.mxu0 %v334
    %1048 = vmatmul.f32.gmra.mxu0 %v956
    %v1049 = vpop.f32.mrf.mxu0
    %v1050 = vadd.f32 %v1030, %v1049
    %1051 = vdwg.mxu0
    %1052 = vmatpush.msra.mxu0 %v365
    %1053 = vmatpush.msra.mxu0 %v364
    %1054 = vmatpush.msra.mxu0 %v363
    %1055 = vmatpush.msra.mxu0 %v362
    %1056 = vmatpush.msra.mxu0 %v361
    %1057 = vmatpush.msra.mxu0 %v360
    %1058 = vmatpush.msra.mxu0 %v359
    %1059 = vmatpush.msra.mxu0 %v358
    %1060 = vmatpush.msra.mxu0 %v357
    %1061 = vmatpush.msra.mxu0 %v356
    %1062 = vmatpush.msra.mxu0 %v355
    %1063 = vmatpush.msra.mxu0 %v354
    %1064 = vmatpush.msra.mxu0 %v353
    %1065 = vmatpush.msra.mxu0 %v352
    %1066 = vmatpush.msra.mxu0 %v351
    %1067 = vmatpush.msra.mxu0 %v350
    %1068 = vmatmul.f32.gmra.mxu0 %v963
    %v1069 = vpop.f32.mrf.mxu0
    %v1070 = vadd.f32 %v1050, %v1069
    %1071 = vdwg.mxu0
    %1072 = vmatpush.msra.mxu0 %v381
    %1073 = vmatpush.msra.mxu0 %v380
    %1074 = vmatpush.msra.mxu0 %v379
    %1075 = vmatpush.msra.mxu0 %v378
    %1076 = vmatpush.msra.mxu0 %v377
    %1077 = vmatpush.msra.mxu0 %v376
    %1078 = vmatpush.msra.mxu0 %v375
    %1079 = vmatpush.msra.mxu0 %v374
    %1080 = vmatpush.msra.mxu0 %v373
    %1081 = vmatpush.msra.mxu0 %v372
    %1082 = vmatpush.msra.mxu0 %v371
    %1083 = vmatpush.msra.mxu0 %v370
    %1084 = vmatpush.msra.mxu0 %v369
    %1085 = vmatpush.msra.mxu0 %v368
    %1086 = vmatpush.msra.mxu0 %v367
    %1087 = vmatpush.msra.mxu0 %v366
    %1088 = vmatmul.f32.gmra.mxu0 %v970
    %v1089 = vpop.f32.mrf.mxu0
    %v1090 = vadd.f32 %v1070, %v1089
    %1091 = vdwg.mxu0
    %1092 = vmatpush.msra.mxu0 %v397
    %1093 = vmatpush.msra.mxu0 %v396
    %1094 = vmatpush.msra.mxu0 %v395
    %1095 = vmatpush.msra.mxu0 %v394
    %1096 = vmatpush.msra.mxu0 %v393
    %1097 = vmatpush.msra.mxu0 %v392
    %1098 = vmatpush.msra.mxu0 %v391
    %1099 = vmatpush.msra.mxu0 %v390
    %1100 = vmatpush.msra.mxu0 %v389
    %1101 = vmatpush.msra.mxu0 %v388
    %1102 = vmatpush.msra.mxu0 %v387
    %1103 = vmatpush.msra.mxu0 %v386
    %1104 = vmatpush.msra.mxu0 %v385
    %1105 = vmatpush.msra.mxu0 %v384
    %1106 = vmatpush.msra.mxu0 %v383
    %1107 = vmatpush.msra.mxu0 %v382
    %1108 = vmatmul.f32.gmra.mxu0 %v977
    %v1109 = vpop.f32.mrf.mxu0
    %v1110 = vadd.f32 %v1090, %v1109
    %1111 = vdwg.mxu0
    %1112 = vmatpush.msra.mxu0 %v413
    %1113 = vmatpush.msra.mxu0 %v412
    %1114 = vmatpush.msra.mxu0 %v411
    %1115 = vmatpush.msra.mxu0 %v410
    %1116 = vmatpush.msra.mxu0 %v409
    %1117 = vmatpush.msra.mxu0 %v408
    %1118 = vmatpush.msra.mxu0 %v407
    %1119 = vmatpush.msra.mxu0 %v406
    %1120 = vmatpush.msra.mxu0 %v405
    %1121 = vmatpush.msra.mxu0 %v404
    %1122 = vmatpush.msra.mxu0 %v403
    %1123 = vmatpush.msra.mxu0 %v402
    %1124 = vmatpush.msra.mxu0 %v401
    %1125 = vmatpush.msra.mxu0 %v400
    %1126 = vmatpush.msra.mxu0 %v399
    %1127 = vmatpush.msra.mxu0 %v398
    %1128 = vmatmul.f32.gmra.mxu0 %v984
    %v1129 = vpop.f32.mrf.mxu0
    %v1130 = vadd.f32 %v1110, %v1129
    %1131 = vdwg.mxu0
    %1132 = vmatpush.msra.mxu0 %v429
    %1133 = vmatpush.msra.mxu0 %v428
    %1134 = vmatpush.msra.mxu0 %v427
    %1135 = vmatpush.msra.mxu0 %v426
    %1136 = vmatpush.msra.mxu0 %v425
    %1137 = vmatpush.msra.mxu0 %v424
    %1138 = vmatpush.msra.mxu0 %v423
    %1139 = vmatpush.msra.mxu0 %v422
    %1140 = vmatpush.msra.mxu0 %v421
    %1141 = vmatpush.msra.mxu0 %v420
    %1142 = vmatpush.msra.mxu0 %v419
    %1143 = vmatpush.msra.mxu0 %v418
    %1144 = vmatpush.msra.mxu0 %v417
    %1145 = vmatpush.msra.mxu0 %v416
    %1146 = vmatpush.msra.mxu0 %v415
    %1147 = vmatpush.msra.mxu0 %v414
    %1148 = vmatmul.f32.gmra.mxu0 %v991
    %v1149 = vpop.f32.mrf.mxu0
    %v1150 = vadd.f32 %v1130, %v1149
    %1151 = vdwg.mxu0
    %v1152 = vmul.f32 %v1150, 0.0078125
    %v1153 = vmax.f32 %v1152, 0.0
    %v1154 = vadd.f32 %v1153, 1e-05
    %v1155 = vrsqrt.pop %v1154
    %v1156 = vmul.f32 %v1155, %v1154
    %v1157 = vmul.f32 %v1156, %v1155
    %v1158 = vmul.f32 0.5, %v1157
    %v1159 = vsub.f32 1.5, %v1158
    %v1160 = vmul.f32 %v1155, %v1159
    %vm1161 = vweird.f32 %v1154
    %vm1162 = vweird.f32 %v1155
    %vm1163 = vmor %vm1161, %vm1162
    %v1164 = vsel %vm1163, %v1155, %v1160
    %1165 = vmatpush.msra.mxu0 %v711
    %1166 = vmatpush.msra.mxu0 %v703
    %1167 = vmatpush.msra.mxu0 %v695
    %1168 = vmatpush.msra.mxu0 %v687
    %1169 = vmatpush.msra.mxu0 %v679
    %1170 = vmatpush.msra.mxu0 %v671
    %1171 = vmatpush.msra.mxu0 %v663
    %1172 = vmatpush.msra.mxu0 %v655
    %1173 = vmatpush.msra.mxu0 %v647
    %1174 = vmatpush.msra.mxu0 %v639
    %1175 = vmatpush.msra.mxu0 %v631
    %1176 = vmatpush.msra.mxu0 %v623
    %1177 = vmatpush.msra.mxu0 %v615
    %1178 = vmatpush.msra.mxu0 %v607
    %1179 = vmatpush.msra.mxu0 %v599
    %1180 = vmatpush.msra.mxu0 %v591
    %1181 = vmatmul.f32.gmra.mxu0 %v1164
    %v1182 = vpop.f32.mrf.mxu0
    %v1183 = vadd.f32 0.0, %v1182
    %1184 = vdwg.mxu0
    %1185 = vmatpush.msra.mxu0 %v712
    %1186 = vmatpush.msra.mxu0 %v704
    %1187 = vmatpush.msra.mxu0 %v696
    %1188 = vmatpush.msra.mxu0 %v688
    %1189 = vmatpush.msra.mxu0 %v680
    %1190 = vmatpush.msra.mxu0 %v672
    %1191 = vmatpush.msra.mxu0 %v664
    %1192 = vmatpush.msra.mxu0 %v656
    %1193 = vmatpush.msra.mxu0 %v648
    %1194 = vmatpush.msra.mxu0 %v640
    %1195 = vmatpush.msra.mxu0 %v632
    %1196 = vmatpush.msra.mxu0 %v624
    %1197 = vmatpush.msra.mxu0 %v616
    %1198 = vmatpush.msra.mxu0 %v608
    %1199 = vmatpush.msra.mxu0 %v600
    %1200 = vmatpush.msra.mxu0 %v592
    %1201 = vmatmul.f32.gmra.mxu0 %v1164
    %v1202 = vpop.f32.mrf.mxu0
    %v1203 = vadd.f32 0.0, %v1202
    %1204 = vdwg.mxu0
    %1205 = vmatpush.msra.mxu0 %v713
    %1206 = vmatpush.msra.mxu0 %v705
    %1207 = vmatpush.msra.mxu0 %v697
    %1208 = vmatpush.msra.mxu0 %v689
    %1209 = vmatpush.msra.mxu0 %v681
    %1210 = vmatpush.msra.mxu0 %v673
    %1211 = vmatpush.msra.mxu0 %v665
    %1212 = vmatpush.msra.mxu0 %v657
    %1213 = vmatpush.msra.mxu0 %v649
    %1214 = vmatpush.msra.mxu0 %v641
    %1215 = vmatpush.msra.mxu0 %v633
    %1216 = vmatpush.msra.mxu0 %v625
    %1217 = vmatpush.msra.mxu0 %v617
    %1218 = vmatpush.msra.mxu0 %v609
    %1219 = vmatpush.msra.mxu0 %v601
    %1220 = vmatpush.msra.mxu0 %v593
    %1221 = vmatmul.f32.gmra.mxu0 %v1164
    %v1222 = vpop.f32.mrf.mxu0
    %v1223 = vadd.f32 0.0, %v1222
    %1224 = vdwg.mxu0
    %1225 = vmatpush.msra.mxu0 %v714
    %1226 = vmatpush.msra.mxu0 %v706
    %1227 = vmatpush.msra.mxu0 %v698
    %1228 = vmatpush.msra.mxu0 %v690
    %1229 = vmatpush.msra.mxu0 %v682
    %1230 = vmatpush.msra.mxu0 %v674
    %1231 = vmatpush.msra.mxu0 %v666
    %1232 = vmatpush.msra.mxu0 %v658
    %1233 = vmatpush.msra.mxu0 %v650
    %1234 = vmatpush.msra.mxu0 %v642
    %1235 = vmatpush.msra.mxu0 %v634
    %1236 = vmatpush.msra.mxu0 %v626
    %1237 = vmatpush.msra.mxu0 %v618
    %1238 = vmatpush.msra.mxu0 %v610
    %1239 = vmatpush.msra.mxu0 %v602
    %1240 = vmatpush.msra.mxu0 %v594
    %1241 = vmatmul.f32.gmra.mxu0 %v1164
    %v1242 = vpop.f32.mrf.mxu0
    %v1243 = vadd.f32 0.0, %v1242
    %1244 = vdwg.mxu0
    %1245 = vmatpush.msra.mxu0 %v715
    %1246 = vmatpush.msra.mxu0 %v707
    %1247 = vmatpush.msra.mxu0 %v699
    %1248 = vmatpush.msra.mxu0 %v691
    %1249 = vmatpush.msra.mxu0 %v683
    %1250 = vmatpush.msra.mxu0 %v675
    %1251 = vmatpush.msra.mxu0 %v667
    %1252 = vmatpush.msra.mxu0 %v659
    %1253 = vmatpush.msra.mxu0 %v651
    %1254 = vmatpush.msra.mxu0 %v643
    %1255 = vmatpush.msra.mxu0 %v635
    %1256 = vmatpush.msra.mxu0 %v627
    %1257 = vmatpush.msra.mxu0 %v619
    %1258 = vmatpush.msra.mxu0 %v611
    %1259 = vmatpush.msra.mxu0 %v603
    %1260 = vmatpush.msra.mxu0 %v595
    %1261 = vmatmul.f32.gmra.mxu0 %v1164
    %v1262 = vpop.f32.mrf.mxu0
    %v1263 = vadd.f32 0.0, %v1262
    %1264 = vdwg.mxu0
    %1265 = vmatpush.msra.mxu0 %v716
    %1266 = vmatpush.msra.mxu0 %v708
    %1267 = vmatpush.msra.mxu0 %v700
    %1268 = vmatpush.msra.mxu0 %v692
    %1269 = vmatpush.msra.mxu0 %v684
    %1270 = vmatpush.msra.mxu0 %v676
    %1271 = vmatpush.msra.mxu0 %v668
    %1272 = vmatpush.msra.mxu0 %v660
    %1273 = vmatpush.msra.mxu0 %v652
    %1274 = vmatpush.msra.mxu0 %v644
    %1275 = vmatpush.msra.mxu0 %v636
    %1276 = vmatpush.msra.mxu0 %v628
    %1277 = vmatpush.msra.mxu0 %v620
    %1278 = vmatpush.msra.mxu0 %v612
    %1279 = vmatpush.msra.mxu0 %v604
    %1280 = vmatpush.msra.mxu0 %v596
    %1281 = vmatmul.f32.gmra.mxu0 %v1164
    %v1282 = vpop.f32.mrf.mxu0
    %v1283 = vadd.f32 0.0, %v1282
    %1284 = vdwg.mxu0
    %1285 = vmatpush.msra.mxu0 %v717
    %1286 = vmatpush.msra.mxu0 %v709
    %1287 = vmatpush.msra.mxu0 %v701
    %1288 = vmatpush.msra.mxu0 %v693
    %1289 = vmatpush.msra.mxu0 %v685
    %1290 = vmatpush.msra.mxu0 %v677
    %1291 = vmatpush.msra.mxu0 %v669
    %1292 = vmatpush.msra.mxu0 %v661
    %1293 = vmatpush.msra.mxu0 %v653
    %1294 = vmatpush.msra.mxu0 %v645
    %1295 = vmatpush.msra.mxu0 %v637
    %1296 = vmatpush.msra.mxu0 %v629
    %1297 = vmatpush.msra.mxu0 %v621
    %1298 = vmatpush.msra.mxu0 %v613
    %1299 = vmatpush.msra.mxu0 %v605
    %1300 = vmatpush.msra.mxu0 %v597
    %1301 = vmatmul.f32.gmra.mxu0 %v1164
    %v1302 = vpop.f32.mrf.mxu0
    %v1303 = vadd.f32 0.0, %v1302
    %1304 = vdwg.mxu0
    %1305 = vmatpush.msra.mxu0 %v718
    %1306 = vmatpush.msra.mxu0 %v710
    %1307 = vmatpush.msra.mxu0 %v702
    %1308 = vmatpush.msra.mxu0 %v694
    %1309 = vmatpush.msra.mxu0 %v686
    %1310 = vmatpush.msra.mxu0 %v678
    %1311 = vmatpush.msra.mxu0 %v670
    %1312 = vmatpush.msra.mxu0 %v662
    %1313 = vmatpush.msra.mxu0 %v654
    %1314 = vmatpush.msra.mxu0 %v646
    %1315 = vmatpush.msra.mxu0 %v638
    %1316 = vmatpush.msra.mxu0 %v630
    %1317 = vmatpush.msra.mxu0 %v622
    %1318 = vmatpush.msra.mxu0 %v614
    %1319 = vmatpush.msra.mxu0 %v606
    %1320 = vmatpush.msra.mxu0 %v598
    %1321 = vmatmul.f32.gmra.mxu0 %v1164
    %v1322 = vpop.f32.mrf.mxu0
    %v1323 = vadd.f32 0.0, %v1322
    %1324 = vdwg.mxu0
    %v1325 = vld [vmem:[#allocation2] sm:$0xff]
    %v1334 = vrot.slane %v1203, 7
    %v1335 = vrot.slane %v1223, 6
    %v1336 = vrot.slane %v1243, 5
    %v1337 = vrot.slane %v1263, 4
    %v1338 = vrot.slane %v1283, 3
    %v1339 = vrot.slane %v1303, 2
    %v1340 = vrot.slane %v1323, 1
    %vm1341 = vcmask 1040384
    %v1342 = vsel %vm1341, %v1183, %v1334
    %vm1343 = vcmask 1042434
    %v1344 = vsel %vm1343, %v1335, %v1336
    %v1345 = vsel %vm245, %v1342, %v1344
    %vm1346 = vcmask 1044484
    %v1347 = vsel %vm1346, %v1337, %v1338
    %vm1348 = vcmask 1046534
    %v1349 = vsel %vm1348, %v1339, %v1340
    %v1350 = vsel %vm902, %v1347, %v1349
    %v1351 = vsel %vm904, %v1345, %v1350
    %v1353 = vmul.f32 %v1325, %v1351
    %v1355 = vperm.slane %v1353, 0
    %v1356 = vperm.slane %v1353, 1
    %v1357 = vperm.slane %v1353, 2
    %v1358 = vperm.slane %v1353, 3
    %v1359 = vperm.slane %v1353, 4
    %v1360 = vperm.slane %v1353, 5
    %v1361 = vperm.slane %v1353, 6
    %v1362 = vperm.slane %v1353, 7
    %v1363 = vrot.slane %v1356, 6
    %v1364 = vrot.slane %v1357, 4
    %v1365 = vrot.slane %v1358, 2
    %v1366 = vrot.slane %v1360, 6
    %v1367 = vrot.slane %v1361, 4
    %v1368 = vrot.slane %v1362, 2
    %v1369 = vsel %vm245, %v1355, %v1363
    %v1370 = vsel %vm902, %v1364, %v1365
    %v1371 = vsel %vm904, %v1369, %v1370
    %v1372 = vsel %vm245, %v1359, %v1366
    %v1373 = vsel %vm902, %v1367, %v1368
    %v1374 = vsel %vm904, %v1372, %v1373
    %v1377 = vmul.f32 %v911, %v1371
    %v1378 = vmul.f32 %v912, %v1374
    %v1379 = vld [vmem:[#allocation5] sm:$0xff]
    %v1381 = vperm.slane %v1379, 0
    %v1382 = vperm.slane %v1379, 1
    %v1383 = vperm.slane %v1379, 2
    %v1384 = vperm.slane %v1379, 3
    %v1385 = vperm.slane %v1379, 4
    %v1386 = vperm.slane %v1379, 5
    %v1387 = vperm.slane %v1379, 6
    %v1388 = vperm.slane %v1379, 7
    %v1389 = vrot.slane %v1382, 6
    %v1390 = vrot.slane %v1383, 4
    %v1391 = vrot.slane %v1384, 2
    %v1392 = vrot.slane %v1386, 6
    %v1393 = vrot.slane %v1387, 4
    %v1394 = vrot.slane %v1388, 2
    %v1395 = vsel %vm245, %v1381, %v1389
    %v1396 = vsel %vm902, %v1390, %v1391
    %v1397 = vsel %vm904, %v1395, %v1396
    %v1398 = vsel %vm245, %v1385, %v1392
    %v1399 = vsel %vm902, %v1393, %v1394
    %v1400 = vsel %vm904, %v1398, %v1399
    %v1403 = vadd.f32 %v1377, %v1397
    %v1404 = vadd.f32 %v1378, %v1400
    %1407 = vst [vmem:[#allocation1] ss:$4 sm:$0xff] %v1403
    %s1408 = scalar_lea.vmem [#allocation1], 32
    %1409 = vst [vmem:[%s1408] ss:$4 sm:$0xff] %v1404
    %v1410 = vld.sshfl [vmem:[#allocation1] sm:$0xff pattern:$0x73625140]
    %v1411 = vld.sshfl [vmem:[#allocation1 + $0x8] sm:$0xff pattern:$0x73625140]
    %v1412 = vld.sshfl [vmem:[#allocation1 + $0x10] sm:$0xff pattern:$0x73625140]
    %v1413 = vld.sshfl [vmem:[#allocation1 + $0x18] sm:$0xff pattern:$0x73625140]
    %v1414 = vld.sshfl [vmem:[#allocation1 + $0x20] sm:$0xff pattern:$0x73625140]
    %v1415 = vld.sshfl [vmem:[#allocation1 + $0x28] sm:$0xff pattern:$0x73625140]
    %v1416 = vld.sshfl [vmem:[#allocation1 + $0x30] sm:$0xff pattern:$0x73625140]
    %v1417 = vld.sshfl [vmem:[#allocation1 + $0x38] sm:$0xff pattern:$0x73625140]
    %v1426 = vpack.c.bf16 %v1410, %v1410
    %v1427 = vpack.c.bf16 %v1411, %v1411
    %v1428 = vpack.c.bf16 %v1412, %v1412
    %v1429 = vpack.c.bf16 %v1413, %v1413
    %v1430 = vpack.c.bf16 %v1414, %v1414
    %v1431 = vpack.c.bf16 %v1415, %v1415
    %v1432 = vpack.c.bf16 %v1416, %v1416
    %v1433 = vpack.c.bf16 %v1417, %v1417
    %v1434 = vld [vmem:[#allocation10] sm:$0xff]
    %v1435 = vld [vmem:[#allocation10 + $0x8] sm:$0xff]
    %v1436 = vld [vmem:[#allocation10 + $0x10] sm:$0xff]
    %v1437 = vld [vmem:[#allocation10 + $0x18] sm:$0xff]
    %v1438 = vld [vmem:[#allocation10 + $0x20] sm:$0xff]
    %v1439 = vld [vmem:[#allocation10 + $0x28] sm:$0xff]
    %v1440 = vld [vmem:[#allocation10 + $0x30] sm:$0xff]
    %v1441 = vld [vmem:[#allocation10 + $0x38] sm:$0xff]
    %v1442 = vld [vmem:[#allocation10 + $0x40] sm:$0xff]
    %v1443 = vld [vmem:[#allocation10 + $0x48] sm:$0xff]
    %v1444 = vld [vmem:[#allocation10 + $0x50] sm:$0xff]
    %v1445 = vld [vmem:[#allocation10 + $0x58] sm:$0xff]
    %v1446 = vld [vmem:[#allocation10 + $0x60] sm:$0xff]
    %v1447 = vld [vmem:[#allocation10 + $0x68] sm:$0xff]
    %v1448 = vld [vmem:[#allocation10 + $0x70] sm:$0xff]
    %v1449 = vld [vmem:[#allocation10 + $0x78] sm:$0xff]
    %v1450 = vld [vmem:[#allocation10 + $0x80] sm:$0xff]
    %v1451 = vld [vmem:[#allocation10 + $0x88] sm:$0xff]
    %v1452 = vld [vmem:[#allocation10 + $0x90] sm:$0xff]
    %v1453 = vld [vmem:[#allocation10 + $0x98] sm:$0xff]
    %v1454 = vld [vmem:[#allocation10 + $0xa0] sm:$0xff]
    %v1455 = vld [vmem:[#allocation10 + $0xa8] sm:$0xff]
    %v1456 = vld [vmem:[#allocation10 + $0xb0] sm:$0xff]
    %v1457 = vld [vmem:[#allocation10 + $0xb8] sm:$0xff]
    %v1458 = vld [vmem:[#allocation10 + $0xc0] sm:$0xff]
    %v1459 = vld [vmem:[#allocation10 + $0xc8] sm:$0xff]
    %v1460 = vld [vmem:[#allocation10 + $0xd0] sm:$0xff]
    %v1461 = vld [vmem:[#allocation10 + $0xd8] sm:$0xff]
    %v1462 = vld [vmem:[#allocation10 + $0xe0] sm:$0xff]
    %v1463 = vld [vmem:[#allocation10 + $0xe8] sm:$0xff]
    %v1464 = vld [vmem:[#allocation10 + $0xf0] sm:$0xff]
    %v1465 = vld [vmem:[#allocation10 + $0xf8] sm:$0xff]
    %v1466 = vld [vmem:[#allocation10 + $0x100] sm:$0xff]
    %v1467 = vld [vmem:[#allocation10 + $0x108] sm:$0xff]
    %v1468 = vld [vmem:[#allocation10 + $0x110] sm:$0xff]
    %v1469 = vld [vmem:[#allocation10 + $0x118] sm:$0xff]
    %v1470 = vld [vmem:[#allocation10 + $0x120] sm:$0xff]
    %v1471 = vld [vmem:[#allocation10 + $0x128] sm:$0xff]
    %v1472 = vld [vmem:[#allocation10 + $0x130] sm:$0xff]
    %v1473 = vld [vmem:[#allocation10 + $0x138] sm:$0xff]
    %v1474 = vld [vmem:[#allocation10 + $0x140] sm:$0xff]
    %v1475 = vld [vmem:[#allocation10 + $0x148] sm:$0xff]
    %v1476 = vld [vmem:[#allocation10 + $0x150] sm:$0xff]
    %v1477 = vld [vmem:[#allocation10 + $0x158] sm:$0xff]
    %v1478 = vld [vmem:[#allocation10 + $0x160] sm:$0xff]
    %v1479 = vld [vmem:[#allocation10 + $0x168] sm:$0xff]
    %v1480 = vld [vmem:[#allocation10 + $0x170] sm:$0xff]
    %v1481 = vld [vmem:[#allocation10 + $0x178] sm:$0xff]
    %v1482 = vld [vmem:[#allocation10 + $0x180] sm:$0xff]
    %v1483 = vld [vmem:[#allocation10 + $0x188] sm:$0xff]
    %v1484 = vld [vmem:[#allocation10 + $0x190] sm:$0xff]
    %v1485 = vld [vmem:[#allocation10 + $0x198] sm:$0xff]
    %v1486 = vld [vmem:[#allocation10 + $0x1a0] sm:$0xff]
    %v1487 = vld [vmem:[#allocation10 + $0x1a8] sm:$0xff]
    %v1488 = vld [vmem:[#allocation10 + $0x1b0] sm:$0xff]
    %v1489 = vld [vmem:[#allocation10 + $0x1b8] sm:$0xff]
    %v1490 = vld [vmem:[#allocation10 + $0x1c0] sm:$0xff]
    %v1491 = vld [vmem:[#allocation10 + $0x1c8] sm:$0xff]
    %v1492 = vld [vmem:[#allocation10 + $0x1d0] sm:$0xff]
    %v1493 = vld [vmem:[#allocation10 + $0x1d8] sm:$0xff]
    %v1494 = vld [vmem:[#allocation10 + $0x1e0] sm:$0xff]
    %v1495 = vld [vmem:[#allocation10 + $0x1e8] sm:$0xff]
    %v1496 = vld [vmem:[#allocation10 + $0x1f0] sm:$0xff]
    %v1497 = vld [vmem:[#allocation10 + $0x1f8] sm:$0xff]
    %v1498 = vld [vmem:[#allocation10 + $0x200] sm:$0xff]
    %v1499 = vld [vmem:[#allocation10 + $0x208] sm:$0xff]
    %v1500 = vld [vmem:[#allocation10 + $0x210] sm:$0xff]
    %v1501 = vld [vmem:[#allocation10 + $0x218] sm:$0xff]
    %v1502 = vld [vmem:[#allocation10 + $0x220] sm:$0xff]
    %v1503 = vld [vmem:[#allocation10 + $0x228] sm:$0xff]
    %v1504 = vld [vmem:[#allocation10 + $0x230] sm:$0xff]
    %v1505 = vld [vmem:[#allocation10 + $0x238] sm:$0xff]
    %v1506 = vld [vmem:[#allocation10 + $0x240] sm:$0xff]
    %v1507 = vld [vmem:[#allocation10 + $0x248] sm:$0xff]
    %v1508 = vld [vmem:[#allocation10 + $0x250] sm:$0xff]
    %v1509 = vld [vmem:[#allocation10 + $0x258] sm:$0xff]
    %v1510 = vld [vmem:[#allocation10 + $0x260] sm:$0xff]
    %v1511 = vld [vmem:[#allocation10 + $0x268] sm:$0xff]
    %v1512 = vld [vmem:[#allocation10 + $0x270] sm:$0xff]
    %v1513 = vld [vmem:[#allocation10 + $0x278] sm:$0xff]
    %v1514 = vld [vmem:[#allocation10 + $0x280] sm:$0xff]
    %v1515 = vld [vmem:[#allocation10 + $0x288] sm:$0xff]
    %v1516 = vld [vmem:[#allocation10 + $0x290] sm:$0xff]
    %v1517 = vld [vmem:[#allocation10 + $0x298] sm:$0xff]
    %v1518 = vld [vmem:[#allocation10 + $0x2a0] sm:$0xff]
    %v1519 = vld [vmem:[#allocation10 + $0x2a8] sm:$0xff]
    %v1520 = vld [vmem:[#allocation10 + $0x2b0] sm:$0xff]
    %v1521 = vld [vmem:[#allocation10 + $0x2b8] sm:$0xff]
    %v1522 = vld [vmem:[#allocation10 + $0x2c0] sm:$0xff]
    %v1523 = vld [vmem:[#allocation10 + $0x2c8] sm:$0xff]
    %v1524 = vld [vmem:[#allocation10 + $0x2d0] sm:$0xff]
    %v1525 = vld [vmem:[#allocation10 + $0x2d8] sm:$0xff]
    %v1526 = vld [vmem:[#allocation10 + $0x2e0] sm:$0xff]
    %v1527 = vld [vmem:[#allocation10 + $0x2e8] sm:$0xff]
    %v1528 = vld [vmem:[#allocation10 + $0x2f0] sm:$0xff]
    %v1529 = vld [vmem:[#allocation10 + $0x2f8] sm:$0xff]
    %v1530 = vld [vmem:[#allocation10 + $0x300] sm:$0xff]
    %v1531 = vld [vmem:[#allocation10 + $0x308] sm:$0xff]
    %v1532 = vld [vmem:[#allocation10 + $0x310] sm:$0xff]
    %v1533 = vld [vmem:[#allocation10 + $0x318] sm:$0xff]
    %v1534 = vld [vmem:[#allocation10 + $0x320] sm:$0xff]
    %v1535 = vld [vmem:[#allocation10 + $0x328] sm:$0xff]
    %v1536 = vld [vmem:[#allocation10 + $0x330] sm:$0xff]
    %v1537 = vld [vmem:[#allocation10 + $0x338] sm:$0xff]
    %v1538 = vld [vmem:[#allocation10 + $0x340] sm:$0xff]
    %v1539 = vld [vmem:[#allocation10 + $0x348] sm:$0xff]
    %v1540 = vld [vmem:[#allocation10 + $0x350] sm:$0xff]
    %v1541 = vld [vmem:[#allocation10 + $0x358] sm:$0xff]
    %v1542 = vld [vmem:[#allocation10 + $0x360] sm:$0xff]
    %v1543 = vld [vmem:[#allocation10 + $0x368] sm:$0xff]
    %v1544 = vld [vmem:[#allocation10 + $0x370] sm:$0xff]
    %v1545 = vld [vmem:[#allocation10 + $0x378] sm:$0xff]
    %v1546 = vld [vmem:[#allocation10 + $0x380] sm:$0xff]
    %v1547 = vld [vmem:[#allocation10 + $0x388] sm:$0xff]
    %v1548 = vld [vmem:[#allocation10 + $0x390] sm:$0xff]
    %v1549 = vld [vmem:[#allocation10 + $0x398] sm:$0xff]
    %v1550 = vld [vmem:[#allocation10 + $0x3a0] sm:$0xff]
    %v1551 = vld [vmem:[#allocation10 + $0x3a8] sm:$0xff]
    %v1552 = vld [vmem:[#allocation10 + $0x3b0] sm:$0xff]
    %v1553 = vld [vmem:[#allocation10 + $0x3b8] sm:$0xff]
    %v1554 = vld [vmem:[#allocation10 + $0x3c0] sm:$0xff]
    %v1555 = vld [vmem:[#allocation10 + $0x3c8] sm:$0xff]
    %v1556 = vld [vmem:[#allocation10 + $0x3d0] sm:$0xff]
    %v1557 = vld [vmem:[#allocation10 + $0x3d8] sm:$0xff]
    %v1558 = vld [vmem:[#allocation10 + $0x3e0] sm:$0xff]
    %v1559 = vld [vmem:[#allocation10 + $0x3e8] sm:$0xff]
    %v1560 = vld [vmem:[#allocation10 + $0x3f0] sm:$0xff]
    %v1561 = vld [vmem:[#allocation10 + $0x3f8] sm:$0xff]
    %v1562 = vld [vmem:[#allocation10 + $0x400] sm:$0xff]
    %v1563 = vld [vmem:[#allocation10 + $0x408] sm:$0xff]
    %v1564 = vld [vmem:[#allocation10 + $0x410] sm:$0xff]
    %v1565 = vld [vmem:[#allocation10 + $0x418] sm:$0xff]
    %v1566 = vld [vmem:[#allocation10 + $0x420] sm:$0xff]
    %v1567 = vld [vmem:[#allocation10 + $0x428] sm:$0xff]
    %v1568 = vld [vmem:[#allocation10 + $0x430] sm:$0xff]
    %v1569 = vld [vmem:[#allocation10 + $0x438] sm:$0xff]
    %v1570 = vld [vmem:[#allocation10 + $0x440] sm:$0xff]
    %v1571 = vld [vmem:[#allocation10 + $0x448] sm:$0xff]
    %v1572 = vld [vmem:[#allocation10 + $0x450] sm:$0xff]
    %v1573 = vld [vmem:[#allocation10 + $0x458] sm:$0xff]
    %v1574 = vld [vmem:[#allocation10 + $0x460] sm:$0xff]
    %v1575 = vld [vmem:[#allocation10 + $0x468] sm:$0xff]
    %v1576 = vld [vmem:[#allocation10 + $0x470] sm:$0xff]
    %v1577 = vld [vmem:[#allocation10 + $0x478] sm:$0xff]
    %v1578 = vld [vmem:[#allocation10 + $0x480] sm:$0xff]
    %v1579 = vld [vmem:[#allocation10 + $0x488] sm:$0xff]
    %v1580 = vld [vmem:[#allocation10 + $0x490] sm:$0xff]
    %v1581 = vld [vmem:[#allocation10 + $0x498] sm:$0xff]
    %v1582 = vld [vmem:[#allocation10 + $0x4a0] sm:$0xff]
    %v1583 = vld [vmem:[#allocation10 + $0x4a8] sm:$0xff]
    %v1584 = vld [vmem:[#allocation10 + $0x4b0] sm:$0xff]
    %v1585 = vld [vmem:[#allocation10 + $0x4b8] sm:$0xff]
    %v1586 = vld [vmem:[#allocation10 + $0x4c0] sm:$0xff]
    %v1587 = vld [vmem:[#allocation10 + $0x4c8] sm:$0xff]
    %v1588 = vld [vmem:[#allocation10 + $0x4d0] sm:$0xff]
    %v1589 = vld [vmem:[#allocation10 + $0x4d8] sm:$0xff]
    %v1590 = vld [vmem:[#allocation10 + $0x4e0] sm:$0xff]
    %v1591 = vld [vmem:[#allocation10 + $0x4e8] sm:$0xff]
    %v1592 = vld [vmem:[#allocation10 + $0x4f0] sm:$0xff]
    %v1593 = vld [vmem:[#allocation10 + $0x4f8] sm:$0xff]
    %v1594 = vld [vmem:[#allocation10 + $0x500] sm:$0xff]
    %v1595 = vld [vmem:[#allocation10 + $0x508] sm:$0xff]
    %v1596 = vld [vmem:[#allocation10 + $0x510] sm:$0xff]
    %v1597 = vld [vmem:[#allocation10 + $0x518] sm:$0xff]
    %v1598 = vld [vmem:[#allocation10 + $0x520] sm:$0xff]
    %v1599 = vld [vmem:[#allocation10 + $0x528] sm:$0xff]
    %v1600 = vld [vmem:[#allocation10 + $0x530] sm:$0xff]
    %v1601 = vld [vmem:[#allocation10 + $0x538] sm:$0xff]
    %v1602 = vld [vmem:[#allocation10 + $0x540] sm:$0xff]
    %v1603 = vld [vmem:[#allocation10 + $0x548] sm:$0xff]
    %v1604 = vld [vmem:[#allocation10 + $0x550] sm:$0xff]
    %v1605 = vld [vmem:[#allocation10 + $0x558] sm:$0xff]
    %v1606 = vld [vmem:[#allocation10 + $0x560] sm:$0xff]
    %v1607 = vld [vmem:[#allocation10 + $0x568] sm:$0xff]
    %v1608 = vld [vmem:[#allocation10 + $0x570] sm:$0xff]
    %v1609 = vld [vmem:[#allocation10 + $0x578] sm:$0xff]
    %v1610 = vld [vmem:[#allocation10 + $0x580] sm:$0xff]
    %v1611 = vld [vmem:[#allocation10 + $0x588] sm:$0xff]
    %v1612 = vld [vmem:[#allocation10 + $0x590] sm:$0xff]
    %v1613 = vld [vmem:[#allocation10 + $0x598] sm:$0xff]
    %v1614 = vld [vmem:[#allocation10 + $0x5a0] sm:$0xff]
    %v1615 = vld [vmem:[#allocation10 + $0x5a8] sm:$0xff]
    %v1616 = vld [vmem:[#allocation10 + $0x5b0] sm:$0xff]
    %v1617 = vld [vmem:[#allocation10 + $0x5b8] sm:$0xff]
    %v1618 = vld [vmem:[#allocation10 + $0x5c0] sm:$0xff]
    %v1619 = vld [vmem:[#allocation10 + $0x5c8] sm:$0xff]
    %v1620 = vld [vmem:[#allocation10 + $0x5d0] sm:$0xff]
    %v1621 = vld [vmem:[#allocation10 + $0x5d8] sm:$0xff]
    %v1622 = vld [vmem:[#allocation10 + $0x5e0] sm:$0xff]
    %v1623 = vld [vmem:[#allocation10 + $0x5e8] sm:$0xff]
    %v1624 = vld [vmem:[#allocation10 + $0x5f0] sm:$0xff]
    %v1625 = vld [vmem:[#allocation10 + $0x5f8] sm:$0xff]
    %v1626 = vld [vmem:[#allocation10 + $0x600] sm:$0xff]
    %v1627 = vld [vmem:[#allocation10 + $0x608] sm:$0xff]
    %v1628 = vld [vmem:[#allocation10 + $0x610] sm:$0xff]
    %v1629 = vld [vmem:[#allocation10 + $0x618] sm:$0xff]
    %v1630 = vld [vmem:[#allocation10 + $0x620] sm:$0xff]
    %v1631 = vld [vmem:[#allocation10 + $0x628] sm:$0xff]
    %v1632 = vld [vmem:[#allocation10 + $0x630] sm:$0xff]
    %v1633 = vld [vmem:[#allocation10 + $0x638] sm:$0xff]
    %v1634 = vld [vmem:[#allocation10 + $0x640] sm:$0xff]
    %v1635 = vld [vmem:[#allocation10 + $0x648] sm:$0xff]
    %v1636 = vld [vmem:[#allocation10 + $0x650] sm:$0xff]
    %v1637 = vld [vmem:[#allocation10 + $0x658] sm:$0xff]
    %v1638 = vld [vmem:[#allocation10 + $0x660] sm:$0xff]
    %v1639 = vld [vmem:[#allocation10 + $0x668] sm:$0xff]
    %v1640 = vld [vmem:[#allocation10 + $0x670] sm:$0xff]
    %v1641 = vld [vmem:[#allocation10 + $0x678] sm:$0xff]
    %v1642 = vld [vmem:[#allocation10 + $0x680] sm:$0xff]
    %v1643 = vld [vmem:[#allocation10 + $0x688] sm:$0xff]
    %v1644 = vld [vmem:[#allocation10 + $0x690] sm:$0xff]
    %v1645 = vld [vmem:[#allocation10 + $0x698] sm:$0xff]
    %v1646 = vld [vmem:[#allocation10 + $0x6a0] sm:$0xff]
    %v1647 = vld [vmem:[#allocation10 + $0x6a8] sm:$0xff]
    %v1648 = vld [vmem:[#allocation10 + $0x6b0] sm:$0xff]
    %v1649 = vld [vmem:[#allocation10 + $0x6b8] sm:$0xff]
    %v1650 = vld [vmem:[#allocation10 + $0x6c0] sm:$0xff]
    %v1651 = vld [vmem:[#allocation10 + $0x6c8] sm:$0xff]
    %v1652 = vld [vmem:[#allocation10 + $0x6d0] sm:$0xff]
    %v1653 = vld [vmem:[#allocation10 + $0x6d8] sm:$0xff]
    %v1654 = vld [vmem:[#allocation10 + $0x6e0] sm:$0xff]
    %v1655 = vld [vmem:[#allocation10 + $0x6e8] sm:$0xff]
    %v1656 = vld [vmem:[#allocation10 + $0x6f0] sm:$0xff]
    %v1657 = vld [vmem:[#allocation10 + $0x6f8] sm:$0xff]
    %v1658 = vld [vmem:[#allocation10 + $0x700] sm:$0xff]
    %v1659 = vld [vmem:[#allocation10 + $0x708] sm:$0xff]
    %v1660 = vld [vmem:[#allocation10 + $0x710] sm:$0xff]
    %v1661 = vld [vmem:[#allocation10 + $0x718] sm:$0xff]
    %v1662 = vld [vmem:[#allocation10 + $0x720] sm:$0xff]
    %v1663 = vld [vmem:[#allocation10 + $0x728] sm:$0xff]
    %v1664 = vld [vmem:[#allocation10 + $0x730] sm:$0xff]
    %v1665 = vld [vmem:[#allocation10 + $0x738] sm:$0xff]
    %v1666 = vld [vmem:[#allocation10 + $0x740] sm:$0xff]
    %v1667 = vld [vmem:[#allocation10 + $0x748] sm:$0xff]
    %v1668 = vld [vmem:[#allocation10 + $0x750] sm:$0xff]
    %v1669 = vld [vmem:[#allocation10 + $0x758] sm:$0xff]
    %v1670 = vld [vmem:[#allocation10 + $0x760] sm:$0xff]
    %v1671 = vld [vmem:[#allocation10 + $0x768] sm:$0xff]
    %v1672 = vld [vmem:[#allocation10 + $0x770] sm:$0xff]
    %v1673 = vld [vmem:[#allocation10 + $0x778] sm:$0xff]
    %v1674 = vld [vmem:[#allocation10 + $0x780] sm:$0xff]
    %v1675 = vld [vmem:[#allocation10 + $0x788] sm:$0xff]
    %v1676 = vld [vmem:[#allocation10 + $0x790] sm:$0xff]
    %v1677 = vld [vmem:[#allocation10 + $0x798] sm:$0xff]
    %v1678 = vld [vmem:[#allocation10 + $0x7a0] sm:$0xff]
    %v1679 = vld [vmem:[#allocation10 + $0x7a8] sm:$0xff]
    %v1680 = vld [vmem:[#allocation10 + $0x7b0] sm:$0xff]
    %v1681 = vld [vmem:[#allocation10 + $0x7b8] sm:$0xff]
    %v1682 = vld [vmem:[#allocation10 + $0x7c0] sm:$0xff]
    %v1683 = vld [vmem:[#allocation10 + $0x7c8] sm:$0xff]
    %v1684 = vld [vmem:[#allocation10 + $0x7d0] sm:$0xff]
    %v1685 = vld [vmem:[#allocation10 + $0x7d8] sm:$0xff]
    %v1686 = vld [vmem:[#allocation10 + $0x7e0] sm:$0xff]
    %v1687 = vld [vmem:[#allocation10 + $0x7e8] sm:$0xff]
    %v1688 = vld [vmem:[#allocation10 + $0x7f0] sm:$0xff]
    %v1689 = vld [vmem:[#allocation10 + $0x7f8] sm:$0xff]
    %v1690 = vld [vmem:[#allocation10 + $0x800] sm:$0xff]
    %v1691 = vld [vmem:[#allocation10 + $0x808] sm:$0xff]
    %v1692 = vld [vmem:[#allocation10 + $0x810] sm:$0xff]
    %v1693 = vld [vmem:[#allocation10 + $0x818] sm:$0xff]
    %v1694 = vld [vmem:[#allocation10 + $0x820] sm:$0xff]
    %v1695 = vld [vmem:[#allocation10 + $0x828] sm:$0xff]
    %v1696 = vld [vmem:[#allocation10 + $0x830] sm:$0xff]
    %v1697 = vld [vmem:[#allocation10 + $0x838] sm:$0xff]
    %v1698 = vld [vmem:[#allocation10 + $0x840] sm:$0xff]
    %v1699 = vld [vmem:[#allocation10 + $0x848] sm:$0xff]
    %v1700 = vld [vmem:[#allocation10 + $0x850] sm:$0xff]
    %v1701 = vld [vmem:[#allocation10 + $0x858] sm:$0xff]
    %v1702 = vld [vmem:[#allocation10 + $0x860] sm:$0xff]
    %v1703 = vld [vmem:[#allocation10 + $0x868] sm:$0xff]
    %v1704 = vld [vmem:[#allocation10 + $0x870] sm:$0xff]
    %v1705 = vld [vmem:[#allocation10 + $0x878] sm:$0xff]
    %v1706 = vld [vmem:[#allocation10 + $0x880] sm:$0xff]
    %v1707 = vld [vmem:[#allocation10 + $0x888] sm:$0xff]
    %v1708 = vld [vmem:[#allocation10 + $0x890] sm:$0xff]
    %v1709 = vld [vmem:[#allocation10 + $0x898] sm:$0xff]
    %v1710 = vld [vmem:[#allocation10 + $0x8a0] sm:$0xff]
    %v1711 = vld [vmem:[#allocation10 + $0x8a8] sm:$0xff]
    %v1712 = vld [vmem:[#allocation10 + $0x8b0] sm:$0xff]
    %v1713 = vld [vmem:[#allocation10 + $0x8b8] sm:$0xff]
    %v1714 = vld [vmem:[#allocation10 + $0x8c0] sm:$0xff]
    %v1715 = vld [vmem:[#allocation10 + $0x8c8] sm:$0xff]
    %v1716 = vld [vmem:[#allocation10 + $0x8d0] sm:$0xff]
    %v1717 = vld [vmem:[#allocation10 + $0x8d8] sm:$0xff]
    %v1718 = vld [vmem:[#allocation10 + $0x8e0] sm:$0xff]
    %v1719 = vld [vmem:[#allocation10 + $0x8e8] sm:$0xff]
    %v1720 = vld [vmem:[#allocation10 + $0x8f0] sm:$0xff]
    %v1721 = vld [vmem:[#allocation10 + $0x8f8] sm:$0xff]
    %v1722 = vld [vmem:[#allocation10 + $0x900] sm:$0xff]
    %v1723 = vld [vmem:[#allocation10 + $0x908] sm:$0xff]
    %v1724 = vld [vmem:[#allocation10 + $0x910] sm:$0xff]
    %v1725 = vld [vmem:[#allocation10 + $0x918] sm:$0xff]
    %v1726 = vld [vmem:[#allocation10 + $0x920] sm:$0xff]
    %v1727 = vld [vmem:[#allocation10 + $0x928] sm:$0xff]
    %v1728 = vld [vmem:[#allocation10 + $0x930] sm:$0xff]
    %v1729 = vld [vmem:[#allocation10 + $0x938] sm:$0xff]
    %v1730 = vld [vmem:[#allocation10 + $0x940] sm:$0xff]
    %v1731 = vld [vmem:[#allocation10 + $0x948] sm:$0xff]
    %v1732 = vld [vmem:[#allocation10 + $0x950] sm:$0xff]
    %v1733 = vld [vmem:[#allocation10 + $0x958] sm:$0xff]
    %v1734 = vld [vmem:[#allocation10 + $0x960] sm:$0xff]
    %v1735 = vld [vmem:[#allocation10 + $0x968] sm:$0xff]
    %v1736 = vld [vmem:[#allocation10 + $0x970] sm:$0xff]
    %v1737 = vld [vmem:[#allocation10 + $0x978] sm:$0xff]
    %v1738 = vld [vmem:[#allocation10 + $0x980] sm:$0xff]
    %v1739 = vld [vmem:[#allocation10 + $0x988] sm:$0xff]
    %v1740 = vld [vmem:[#allocation10 + $0x990] sm:$0xff]
    %v1741 = vld [vmem:[#allocation10 + $0x998] sm:$0xff]
    %v1742 = vld [vmem:[#allocation10 + $0x9a0] sm:$0xff]
    %v1743 = vld [vmem:[#allocation10 + $0x9a8] sm:$0xff]
    %v1744 = vld [vmem:[#allocation10 + $0x9b0] sm:$0xff]
    %v1745 = vld [vmem:[#allocation10 + $0x9b8] sm:$0xff]
    %v1746 = vld [vmem:[#allocation10 + $0x9c0] sm:$0xff]
    %v1747 = vld [vmem:[#allocation10 + $0x9c8] sm:$0xff]
    %v1748 = vld [vmem:[#allocation10 + $0x9d0] sm:$0xff]
    %v1749 = vld [vmem:[#allocation10 + $0x9d8] sm:$0xff]
    %v1750 = vld [vmem:[#allocation10 + $0x9e0] sm:$0xff]
    %v1751 = vld [vmem:[#allocation10 + $0x9e8] sm:$0xff]
    %v1752 = vld [vmem:[#allocation10 + $0x9f0] sm:$0xff]
    %v1753 = vld [vmem:[#allocation10 + $0x9f8] sm:$0xff]
    %v1754 = vld [vmem:[#allocation10 + $0xa00] sm:$0xff]
    %v1755 = vld [vmem:[#allocation10 + $0xa08] sm:$0xff]
    %v1756 = vld [vmem:[#allocation10 + $0xa10] sm:$0xff]
    %v1757 = vld [vmem:[#allocation10 + $0xa18] sm:$0xff]
    %v1758 = vld [vmem:[#allocation10 + $0xa20] sm:$0xff]
    %v1759 = vld [vmem:[#allocation10 + $0xa28] sm:$0xff]
    %v1760 = vld [vmem:[#allocation10 + $0xa30] sm:$0xff]
    %v1761 = vld [vmem:[#allocation10 + $0xa38] sm:$0xff]
    %v1762 = vld [vmem:[#allocation10 + $0xa40] sm:$0xff]
    %v1763 = vld [vmem:[#allocation10 + $0xa48] sm:$0xff]
    %v1764 = vld [vmem:[#allocation10 + $0xa50] sm:$0xff]
    %v1765 = vld [vmem:[#allocation10 + $0xa58] sm:$0xff]
    %v1766 = vld [vmem:[#allocation10 + $0xa60] sm:$0xff]
    %v1767 = vld [vmem:[#allocation10 + $0xa68] sm:$0xff]
    %v1768 = vld [vmem:[#allocation10 + $0xa70] sm:$0xff]
    %v1769 = vld [vmem:[#allocation10 + $0xa78] sm:$0xff]
    %v1770 = vld [vmem:[#allocation10 + $0xa80] sm:$0xff]
    %v1771 = vld [vmem:[#allocation10 + $0xa88] sm:$0xff]
    %v1772 = vld [vmem:[#allocation10 + $0xa90] sm:$0xff]
    %v1773 = vld [vmem:[#allocation10 + $0xa98] sm:$0xff]
    %v1774 = vld [vmem:[#allocation10 + $0xaa0] sm:$0xff]
    %v1775 = vld [vmem:[#allocation10 + $0xaa8] sm:$0xff]
    %v1776 = vld [vmem:[#allocation10 + $0xab0] sm:$0xff]
    %v1777 = vld [vmem:[#allocation10 + $0xab8] sm:$0xff]
    %v1778 = vld [vmem:[#allocation10 + $0xac0] sm:$0xff]
    %v1779 = vld [vmem:[#allocation10 + $0xac8] sm:$0xff]
    %v1780 = vld [vmem:[#allocation10 + $0xad0] sm:$0xff]
    %v1781 = vld [vmem:[#allocation10 + $0xad8] sm:$0xff]
    %v1782 = vld [vmem:[#allocation10 + $0xae0] sm:$0xff]
    %v1783 = vld [vmem:[#allocation10 + $0xae8] sm:$0xff]
    %v1784 = vld [vmem:[#allocation10 + $0xaf0] sm:$0xff]
    %v1785 = vld [vmem:[#allocation10 + $0xaf8] sm:$0xff]
    %v1786 = vld [vmem:[#allocation10 + $0xb00] sm:$0xff]
    %v1787 = vld [vmem:[#allocation10 + $0xb08] sm:$0xff]
    %v1788 = vld [vmem:[#allocation10 + $0xb10] sm:$0xff]
    %v1789 = vld [vmem:[#allocation10 + $0xb18] sm:$0xff]
    %v1790 = vld [vmem:[#allocation10 + $0xb20] sm:$0xff]
    %v1791 = vld [vmem:[#allocation10 + $0xb28] sm:$0xff]
    %v1792 = vld [vmem:[#allocation10 + $0xb30] sm:$0xff]
    %v1793 = vld [vmem:[#allocation10 + $0xb38] sm:$0xff]
    %v1794 = vld [vmem:[#allocation10 + $0xb40] sm:$0xff]
    %v1795 = vld [vmem:[#allocation10 + $0xb48] sm:$0xff]
    %v1796 = vld [vmem:[#allocation10 + $0xb50] sm:$0xff]
    %v1797 = vld [vmem:[#allocation10 + $0xb58] sm:$0xff]
    %v1798 = vld [vmem:[#allocation10 + $0xb60] sm:$0xff]
    %v1799 = vld [vmem:[#allocation10 + $0xb68] sm:$0xff]
    %v1800 = vld [vmem:[#allocation10 + $0xb70] sm:$0xff]
    %v1801 = vld [vmem:[#allocation10 + $0xb78] sm:$0xff]
    %v1802 = vld [vmem:[#allocation10 + $0xb80] sm:$0xff]
    %v1803 = vld [vmem:[#allocation10 + $0xb88] sm:$0xff]
    %v1804 = vld [vmem:[#allocation10 + $0xb90] sm:$0xff]
    %v1805 = vld [vmem:[#allocation10 + $0xb98] sm:$0xff]
    %v1806 = vld [vmem:[#allocation10 + $0xba0] sm:$0xff]
    %v1807 = vld [vmem:[#allocation10 + $0xba8] sm:$0xff]
    %v1808 = vld [vmem:[#allocation10 + $0xbb0] sm:$0xff]
    %v1809 = vld [vmem:[#allocation10 + $0xbb8] sm:$0xff]
    %v1810 = vld [vmem:[#allocation10 + $0xbc0] sm:$0xff]
    %v1811 = vld [vmem:[#allocation10 + $0xbc8] sm:$0xff]
    %v1812 = vld [vmem:[#allocation10 + $0xbd0] sm:$0xff]
    %v1813 = vld [vmem:[#allocation10 + $0xbd8] sm:$0xff]
    %v1814 = vld [vmem:[#allocation10 + $0xbe0] sm:$0xff]
    %v1815 = vld [vmem:[#allocation10 + $0xbe8] sm:$0xff]
    %v1816 = vld [vmem:[#allocation10 + $0xbf0] sm:$0xff]
    %v1817 = vld [vmem:[#allocation10 + $0xbf8] sm:$0xff]
    %v1818 = vld [vmem:[#allocation10 + $0xc00] sm:$0xff]
    %v1819 = vld [vmem:[#allocation10 + $0xc08] sm:$0xff]
    %v1820 = vld [vmem:[#allocation10 + $0xc10] sm:$0xff]
    %v1821 = vld [vmem:[#allocation10 + $0xc18] sm:$0xff]
    %v1822 = vld [vmem:[#allocation10 + $0xc20] sm:$0xff]
    %v1823 = vld [vmem:[#allocation10 + $0xc28] sm:$0xff]
    %v1824 = vld [vmem:[#allocation10 + $0xc30] sm:$0xff]
    %v1825 = vld [vmem:[#allocation10 + $0xc38] sm:$0xff]
    %v1826 = vld [vmem:[#allocation10 + $0xc40] sm:$0xff]
    %v1827 = vld [vmem:[#allocation10 + $0xc48] sm:$0xff]
    %v1828 = vld [vmem:[#allocation10 + $0xc50] sm:$0xff]
    %v1829 = vld [vmem:[#allocation10 + $0xc58] sm:$0xff]
    %v1830 = vld [vmem:[#allocation10 + $0xc60] sm:$0xff]
    %v1831 = vld [vmem:[#allocation10 + $0xc68] sm:$0xff]
    %v1832 = vld [vmem:[#allocation10 + $0xc70] sm:$0xff]
    %v1833 = vld [vmem:[#allocation10 + $0xc78] sm:$0xff]
    %v1834 = vld [vmem:[#allocation10 + $0xc80] sm:$0xff]
    %v1835 = vld [vmem:[#allocation10 + $0xc88] sm:$0xff]
    %v1836 = vld [vmem:[#allocation10 + $0xc90] sm:$0xff]
    %v1837 = vld [vmem:[#allocation10 + $0xc98] sm:$0xff]
    %v1838 = vld [vmem:[#allocation10 + $0xca0] sm:$0xff]
    %v1839 = vld [vmem:[#allocation10 + $0xca8] sm:$0xff]
    %v1840 = vld [vmem:[#allocation10 + $0xcb0] sm:$0xff]
    %v1841 = vld [vmem:[#allocation10 + $0xcb8] sm:$0xff]
    %v1842 = vld [vmem:[#allocation10 + $0xcc0] sm:$0xff]
    %v1843 = vld [vmem:[#allocation10 + $0xcc8] sm:$0xff]
    %v1844 = vld [vmem:[#allocation10 + $0xcd0] sm:$0xff]
    %v1845 = vld [vmem:[#allocation10 + $0xcd8] sm:$0xff]
    %v1846 = vld [vmem:[#allocation10 + $0xce0] sm:$0xff]
    %v1847 = vld [vmem:[#allocation10 + $0xce8] sm:$0xff]
    %v1848 = vld [vmem:[#allocation10 + $0xcf0] sm:$0xff]
    %v1849 = vld [vmem:[#allocation10 + $0xcf8] sm:$0xff]
    %v1850 = vld [vmem:[#allocation10 + $0xd00] sm:$0xff]
    %v1851 = vld [vmem:[#allocation10 + $0xd08] sm:$0xff]
    %v1852 = vld [vmem:[#allocation10 + $0xd10] sm:$0xff]
    %v1853 = vld [vmem:[#allocation10 + $0xd18] sm:$0xff]
    %v1854 = vld [vmem:[#allocation10 + $0xd20] sm:$0xff]
    %v1855 = vld [vmem:[#allocation10 + $0xd28] sm:$0xff]
    %v1856 = vld [vmem:[#allocation10 + $0xd30] sm:$0xff]
    %v1857 = vld [vmem:[#allocation10 + $0xd38] sm:$0xff]
    %v1858 = vld [vmem:[#allocation10 + $0xd40] sm:$0xff]
    %v1859 = vld [vmem:[#allocation10 + $0xd48] sm:$0xff]
    %v1860 = vld [vmem:[#allocation10 + $0xd50] sm:$0xff]
    %v1861 = vld [vmem:[#allocation10 + $0xd58] sm:$0xff]
    %v1862 = vld [vmem:[#allocation10 + $0xd60] sm:$0xff]
    %v1863 = vld [vmem:[#allocation10 + $0xd68] sm:$0xff]
    %v1864 = vld [vmem:[#allocation10 + $0xd70] sm:$0xff]
    %v1865 = vld [vmem:[#allocation10 + $0xd78] sm:$0xff]
    %v1866 = vld [vmem:[#allocation10 + $0xd80] sm:$0xff]
    %v1867 = vld [vmem:[#allocation10 + $0xd88] sm:$0xff]
    %v1868 = vld [vmem:[#allocation10 + $0xd90] sm:$0xff]
    %v1869 = vld [vmem:[#allocation10 + $0xd98] sm:$0xff]
    %v1870 = vld [vmem:[#allocation10 + $0xda0] sm:$0xff]
    %v1871 = vld [vmem:[#allocation10 + $0xda8] sm:$0xff]
    %v1872 = vld [vmem:[#allocation10 + $0xdb0] sm:$0xff]
    %v1873 = vld [vmem:[#allocation10 + $0xdb8] sm:$0xff]
    %v1874 = vld [vmem:[#allocation10 + $0xdc0] sm:$0xff]
    %v1875 = vld [vmem:[#allocation10 + $0xdc8] sm:$0xff]
    %v1876 = vld [vmem:[#allocation10 + $0xdd0] sm:$0xff]
    %v1877 = vld [vmem:[#allocation10 + $0xdd8] sm:$0xff]
    %v1878 = vld [vmem:[#allocation10 + $0xde0] sm:$0xff]
    %v1879 = vld [vmem:[#allocation10 + $0xde8] sm:$0xff]
    %v1880 = vld [vmem:[#allocation10 + $0xdf0] sm:$0xff]
    %v1881 = vld [vmem:[#allocation10 + $0xdf8] sm:$0xff]
    %v1882 = vld [vmem:[#allocation10 + $0xe00] sm:$0xff]
    %v1883 = vld [vmem:[#allocation10 + $0xe08] sm:$0xff]
    %v1884 = vld [vmem:[#allocation10 + $0xe10] sm:$0xff]
    %v1885 = vld [vmem:[#allocation10 + $0xe18] sm:$0xff]
    %v1886 = vld [vmem:[#allocation10 + $0xe20] sm:$0xff]
    %v1887 = vld [vmem:[#allocation10 + $0xe28] sm:$0xff]
    %v1888 = vld [vmem:[#allocation10 + $0xe30] sm:$0xff]
    %v1889 = vld [vmem:[#allocation10 + $0xe38] sm:$0xff]
    %v1890 = vld [vmem:[#allocation10 + $0xe40] sm:$0xff]
    %v1891 = vld [vmem:[#allocation10 + $0xe48] sm:$0xff]
    %v1892 = vld [vmem:[#allocation10 + $0xe50] sm:$0xff]
    %v1893 = vld [vmem:[#allocation10 + $0xe58] sm:$0xff]
    %v1894 = vld [vmem:[#allocation10 + $0xe60] sm:$0xff]
    %v1895 = vld [vmem:[#allocation10 + $0xe68] sm:$0xff]
    %v1896 = vld [vmem:[#allocation10 + $0xe70] sm:$0xff]
    %v1897 = vld [vmem:[#allocation10 + $0xe78] sm:$0xff]
    %v1898 = vld [vmem:[#allocation10 + $0xe80] sm:$0xff]
    %v1899 = vld [vmem:[#allocation10 + $0xe88] sm:$0xff]
    %v1900 = vld [vmem:[#allocation10 + $0xe90] sm:$0xff]
    %v1901 = vld [vmem:[#allocation10 + $0xe98] sm:$0xff]
    %v1902 = vld [vmem:[#allocation10 + $0xea0] sm:$0xff]
    %v1903 = vld [vmem:[#allocation10 + $0xea8] sm:$0xff]
    %v1904 = vld [vmem:[#allocation10 + $0xeb0] sm:$0xff]
    %v1905 = vld [vmem:[#allocation10 + $0xeb8] sm:$0xff]
    %v1906 = vld [vmem:[#allocation10 + $0xec0] sm:$0xff]
    %v1907 = vld [vmem:[#allocation10 + $0xec8] sm:$0xff]
    %v1908 = vld [vmem:[#allocation10 + $0xed0] sm:$0xff]
    %v1909 = vld [vmem:[#allocation10 + $0xed8] sm:$0xff]
    %v1910 = vld [vmem:[#allocation10 + $0xee0] sm:$0xff]
    %v1911 = vld [vmem:[#allocation10 + $0xee8] sm:$0xff]
    %v1912 = vld [vmem:[#allocation10 + $0xef0] sm:$0xff]
    %v1913 = vld [vmem:[#allocation10 + $0xef8] sm:$0xff]
    %v1914 = vld [vmem:[#allocation10 + $0xf00] sm:$0xff]
    %v1915 = vld [vmem:[#allocation10 + $0xf08] sm:$0xff]
    %v1916 = vld [vmem:[#allocation10 + $0xf10] sm:$0xff]
    %v1917 = vld [vmem:[#allocation10 + $0xf18] sm:$0xff]
    %v1918 = vld [vmem:[#allocation10 + $0xf20] sm:$0xff]
    %v1919 = vld [vmem:[#allocation10 + $0xf28] sm:$0xff]
    %v1920 = vld [vmem:[#allocation10 + $0xf30] sm:$0xff]
    %v1921 = vld [vmem:[#allocation10 + $0xf38] sm:$0xff]
    %v1922 = vld [vmem:[#allocation10 + $0xf40] sm:$0xff]
    %v1923 = vld [vmem:[#allocation10 + $0xf48] sm:$0xff]
    %v1924 = vld [vmem:[#allocation10 + $0xf50] sm:$0xff]
    %v1925 = vld [vmem:[#allocation10 + $0xf58] sm:$0xff]
    %v1926 = vld [vmem:[#allocation10 + $0xf60] sm:$0xff]
    %v1927 = vld [vmem:[#allocation10 + $0xf68] sm:$0xff]
    %v1928 = vld [vmem:[#allocation10 + $0xf70] sm:$0xff]
    %v1929 = vld [vmem:[#allocation10 + $0xf78] sm:$0xff]
    %v1930 = vld [vmem:[#allocation10 + $0xf80] sm:$0xff]
    %v1931 = vld [vmem:[#allocation10 + $0xf88] sm:$0xff]
    %v1932 = vld [vmem:[#allocation10 + $0xf90] sm:$0xff]
    %v1933 = vld [vmem:[#allocation10 + $0xf98] sm:$0xff]
    %v1934 = vld [vmem:[#allocation10 + $0xfa0] sm:$0xff]
    %v1935 = vld [vmem:[#allocation10 + $0xfa8] sm:$0xff]
    %v1936 = vld [vmem:[#allocation10 + $0xfb0] sm:$0xff]
    %v1937 = vld [vmem:[#allocation10 + $0xfb8] sm:$0xff]
    %v1938 = vld [vmem:[#allocation10 + $0xfc0] sm:$0xff]
    %v1939 = vld [vmem:[#allocation10 + $0xfc8] sm:$0xff]
    %v1940 = vld [vmem:[#allocation10 + $0xfd0] sm:$0xff]
    %v1941 = vld [vmem:[#allocation10 + $0xfd8] sm:$0xff]
    %v1942 = vld [vmem:[#allocation10 + $0xfe0] sm:$0xff]
    %v1943 = vld [vmem:[#allocation10 + $0xfe8] sm:$0xff]
    %v1944 = vld [vmem:[#allocation10 + $0xff0] sm:$0xff]
    %v1945 = vld [vmem:[#allocation10 + $0xff8] sm:$0xff]
    %v1946 = vld [vmem:[#allocation11] sm:$0xff]
    %v1948 = vperm.slane %v1946, 0
    %v1949 = vperm.slane %v1946, 1
    %v1950 = vperm.slane %v1946, 2
    %v1951 = vperm.slane %v1946, 3
    %v1952 = vperm.slane %v1946, 4
    %v1953 = vperm.slane %v1946, 5
    %v1954 = vperm.slane %v1946, 6
    %v1955 = vperm.slane %v1946, 7
    %v2476 = vunpack.c.l.b16 %v1434
    %v2477 = vunpack.c.h.b16 %v1434
    %v2478 = vunpack.c.l.b16 %v1435
    %v2479 = vunpack.c.h.b16 %v1435
    %v2480 = vunpack.c.l.b16 %v1436
    %v2481 = vunpack.c.h.b16 %v1436
    %v2482 = vunpack.c.l.b16 %v1437
    %v2483 = vunpack.c.h.b16 %v1437
    %v2484 = vunpack.c.l.b16 %v1438
    %v2485 = vunpack.c.h.b16 %v1438
    %v2486 = vunpack.c.l.b16 %v1439
    %v2487 = vunpack.c.h.b16 %v1439
    %v2488 = vunpack.c.l.b16 %v1440
    %v2489 = vunpack.c.h.b16 %v1440
    %v2490 = vunpack.c.l.b16 %v1441
    %v2491 = vunpack.c.h.b16 %v1441
    %v2492 = vunpack.c.l.b16 %v1442
    %v2493 = vunpack.c.h.b16 %v1442
    %v2494 = vunpack.c.l.b16 %v1443
    %v2495 = vunpack.c.h.b16 %v1443
    %v2496 = vunpack.c.l.b16 %v1444
    %v2497 = vunpack.c.h.b16 %v1444
    %v2498 = vunpack.c.l.b16 %v1445
    %v2499 = vunpack.c.h.b16 %v1445
    %v2500 = vunpack.c.l.b16 %v1446
    %v2501 = vunpack.c.h.b16 %v1446
    %v2502 = vunpack.c.l.b16 %v1447
    %v2503 = vunpack.c.h.b16 %v1447
    %v2504 = vunpack.c.l.b16 %v1448
    %v2505 = vunpack.c.h.b16 %v1448
    %v2506 = vunpack.c.l.b16 %v1449
    %v2507 = vunpack.c.h.b16 %v1449
    %v2508 = vunpack.c.l.b16 %v1450
    %v2509 = vunpack.c.h.b16 %v1450
    %v2510 = vunpack.c.l.b16 %v1451
    %v2511 = vunpack.c.h.b16 %v1451
    %v2512 = vunpack.c.l.b16 %v1452
    %v2513 = vunpack.c.h.b16 %v1452
    %v2514 = vunpack.c.l.b16 %v1453
    %v2515 = vunpack.c.h.b16 %v1453
    %v2516 = vunpack.c.l.b16 %v1454
    %v2517 = vunpack.c.h.b16 %v1454
    %v2518 = vunpack.c.l.b16 %v1455
    %v2519 = vunpack.c.h.b16 %v1455
    %v2520 = vunpack.c.l.b16 %v1456
    %v2521 = vunpack.c.h.b16 %v1456
    %v2522 = vunpack.c.l.b16 %v1457
    %v2523 = vunpack.c.h.b16 %v1457
    %v2524 = vunpack.c.l.b16 %v1458
    %v2525 = vunpack.c.h.b16 %v1458
    %v2526 = vunpack.c.l.b16 %v1459
    %v2527 = vunpack.c.h.b16 %v1459
    %v2528 = vunpack.c.l.b16 %v1460
    %v2529 = vunpack.c.h.b16 %v1460
    %v2530 = vunpack.c.l.b16 %v1461
    %v2531 = vunpack.c.h.b16 %v1461
    %v2532 = vunpack.c.l.b16 %v1462
    %v2533 = vunpack.c.h.b16 %v1462
    %v2534 = vunpack.c.l.b16 %v1463
    %v2535 = vunpack.c.h.b16 %v1463
    %v2536 = vunpack.c.l.b16 %v1464
    %v2537 = vunpack.c.h.b16 %v1464
    %v2538 = vunpack.c.l.b16 %v1465
    %v2539 = vunpack.c.h.b16 %v1465
    %v2540 = vunpack.c.l.b16 %v1466
    %v2541 = vunpack.c.h.b16 %v1466
    %v2542 = vunpack.c.l.b16 %v1467
    %v2543 = vunpack.c.h.b16 %v1467
    %v2544 = vunpack.c.l.b16 %v1468
    %v2545 = vunpack.c.h.b16 %v1468
    %v2546 = vunpack.c.l.b16 %v1469
    %v2547 = vunpack.c.h.b16 %v1469
    %v2548 = vunpack.c.l.b16 %v1470
    %v2549 = vunpack.c.h.b16 %v1470
    %v2550 = vunpack.c.l.b16 %v1471
    %v2551 = vunpack.c.h.b16 %v1471
    %v2552 = vunpack.c.l.b16 %v1472
    %v2553 = vunpack.c.h.b16 %v1472
    %v2554 = vunpack.c.l.b16 %v1473
    %v2555 = vunpack.c.h.b16 %v1473
    %v2556 = vunpack.c.l.b16 %v1474
    %v2557 = vunpack.c.h.b16 %v1474
    %v2558 = vunpack.c.l.b16 %v1475
    %v2559 = vunpack.c.h.b16 %v1475
    %v2560 = vunpack.c.l.b16 %v1476
    %v2561 = vunpack.c.h.b16 %v1476
    %v2562 = vunpack.c.l.b16 %v1477
    %v2563 = vunpack.c.h.b16 %v1477
    %v2564 = vunpack.c.l.b16 %v1478
    %v2565 = vunpack.c.h.b16 %v1478
    %v2566 = vunpack.c.l.b16 %v1479
    %v2567 = vunpack.c.h.b16 %v1479
    %v2568 = vunpack.c.l.b16 %v1480
    %v2569 = vunpack.c.h.b16 %v1480
    %v2570 = vunpack.c.l.b16 %v1481
    %v2571 = vunpack.c.h.b16 %v1481
    %v2572 = vunpack.c.l.b16 %v1482
    %v2573 = vunpack.c.h.b16 %v1482
    %v2574 = vunpack.c.l.b16 %v1483
    %v2575 = vunpack.c.h.b16 %v1483
    %v2576 = vunpack.c.l.b16 %v1484
    %v2577 = vunpack.c.h.b16 %v1484
    %v2578 = vunpack.c.l.b16 %v1485
    %v2579 = vunpack.c.h.b16 %v1485
    %v2580 = vunpack.c.l.b16 %v1486
    %v2581 = vunpack.c.h.b16 %v1486
    %v2582 = vunpack.c.l.b16 %v1487
    %v2583 = vunpack.c.h.b16 %v1487
    %v2584 = vunpack.c.l.b16 %v1488
    %v2585 = vunpack.c.h.b16 %v1488
    %v2586 = vunpack.c.l.b16 %v1489
    %v2587 = vunpack.c.h.b16 %v1489
    %v2588 = vunpack.c.l.b16 %v1490
    %v2589 = vunpack.c.h.b16 %v1490
    %v2590 = vunpack.c.l.b16 %v1491
    %v2591 = vunpack.c.h.b16 %v1491
    %v2592 = vunpack.c.l.b16 %v1492
    %v2593 = vunpack.c.h.b16 %v1492
    %v2594 = vunpack.c.l.b16 %v1493
    %v2595 = vunpack.c.h.b16 %v1493
    %v2596 = vunpack.c.l.b16 %v1494
    %v2597 = vunpack.c.h.b16 %v1494
    %v2598 = vunpack.c.l.b16 %v1495
    %v2599 = vunpack.c.h.b16 %v1495
    %v2600 = vunpack.c.l.b16 %v1496
    %v2601 = vunpack.c.h.b16 %v1496
    %v2602 = vunpack.c.l.b16 %v1497
    %v2603 = vunpack.c.h.b16 %v1497
    %v2604 = vunpack.c.l.b16 %v1498
    %v2605 = vunpack.c.h.b16 %v1498
    %v2606 = vunpack.c.l.b16 %v1499
    %v2607 = vunpack.c.h.b16 %v1499
    %v2608 = vunpack.c.l.b16 %v1500
    %v2609 = vunpack.c.h.b16 %v1500
    %v2610 = vunpack.c.l.b16 %v1501
    %v2611 = vunpack.c.h.b16 %v1501
    %v2612 = vunpack.c.l.b16 %v1502
    %v2613 = vunpack.c.h.b16 %v1502
    %v2614 = vunpack.c.l.b16 %v1503
    %v2615 = vunpack.c.h.b16 %v1503
    %v2616 = vunpack.c.l.b16 %v1504
    %v2617 = vunpack.c.h.b16 %v1504
    %v2618 = vunpack.c.l.b16 %v1505
    %v2619 = vunpack.c.h.b16 %v1505
    %v2620 = vunpack.c.l.b16 %v1506
    %v2621 = vunpack.c.h.b16 %v1506
    %v2622 = vunpack.c.l.b16 %v1507
    %v2623 = vunpack.c.h.b16 %v1507
    %v2624 = vunpack.c.l.b16 %v1508
    %v2625 = vunpack.c.h.b16 %v1508
    %v2626 = vunpack.c.l.b16 %v1509
    %v2627 = vunpack.c.h.b16 %v1509
    %v2628 = vunpack.c.l.b16 %v1510
    %v2629 = vunpack.c.h.b16 %v1510
    %v2630 = vunpack.c.l.b16 %v1511
    %v2631 = vunpack.c.h.b16 %v1511
    %v2632 = vunpack.c.l.b16 %v1512
    %v2633 = vunpack.c.h.b16 %v1512
    %v2634 = vunpack.c.l.b16 %v1513
    %v2635 = vunpack.c.h.b16 %v1513
    %v2636 = vunpack.c.l.b16 %v1514
    %v2637 = vunpack.c.h.b16 %v1514
    %v2638 = vunpack.c.l.b16 %v1515
    %v2639 = vunpack.c.h.b16 %v1515
    %v2640 = vunpack.c.l.b16 %v1516
    %v2641 = vunpack.c.h.b16 %v1516
    %v2642 = vunpack.c.l.b16 %v1517
    %v2643 = vunpack.c.h.b16 %v1517
    %v2644 = vunpack.c.l.b16 %v1518
    %v2645 = vunpack.c.h.b16 %v1518
    %v2646 = vunpack.c.l.b16 %v1519
    %v2647 = vunpack.c.h.b16 %v1519
    %v2648 = vunpack.c.l.b16 %v1520
    %v2649 = vunpack.c.h.b16 %v1520
    %v2650 = vunpack.c.l.b16 %v1521
    %v2651 = vunpack.c.h.b16 %v1521
    %v2652 = vunpack.c.l.b16 %v1522
    %v2653 = vunpack.c.h.b16 %v1522
    %v2654 = vunpack.c.l.b16 %v1523
    %v2655 = vunpack.c.h.b16 %v1523
    %v2656 = vunpack.c.l.b16 %v1524
    %v2657 = vunpack.c.h.b16 %v1524
    %v2658 = vunpack.c.l.b16 %v1525
    %v2659 = vunpack.c.h.b16 %v1525
    %v2660 = vunpack.c.l.b16 %v1526
    %v2661 = vunpack.c.h.b16 %v1526
    %v2662 = vunpack.c.l.b16 %v1527
    %v2663 = vunpack.c.h.b16 %v1527
    %v2664 = vunpack.c.l.b16 %v1528
    %v2665 = vunpack.c.h.b16 %v1528
    %v2666 = vunpack.c.l.b16 %v1529
    %v2667 = vunpack.c.h.b16 %v1529
    %v2668 = vunpack.c.l.b16 %v1530
    %v2669 = vunpack.c.h.b16 %v1530
    %v2670 = vunpack.c.l.b16 %v1531
    %v2671 = vunpack.c.h.b16 %v1531
    %v2672 = vunpack.c.l.b16 %v1532
    %v2673 = vunpack.c.h.b16 %v1532
    %v2674 = vunpack.c.l.b16 %v1533
    %v2675 = vunpack.c.h.b16 %v1533
    %v2676 = vunpack.c.l.b16 %v1534
    %v2677 = vunpack.c.h.b16 %v1534
    %v2678 = vunpack.c.l.b16 %v1535
    %v2679 = vunpack.c.h.b16 %v1535
    %v2680 = vunpack.c.l.b16 %v1536
    %v2681 = vunpack.c.h.b16 %v1536
    %v2682 = vunpack.c.l.b16 %v1537
    %v2683 = vunpack.c.h.b16 %v1537
    %v2684 = vunpack.c.l.b16 %v1538
    %v2685 = vunpack.c.h.b16 %v1538
    %v2686 = vunpack.c.l.b16 %v1539
    %v2687 = vunpack.c.h.b16 %v1539
    %v2688 = vunpack.c.l.b16 %v1540
    %v2689 = vunpack.c.h.b16 %v1540
    %v2690 = vunpack.c.l.b16 %v1541
    %v2691 = vunpack.c.h.b16 %v1541
    %v2692 = vunpack.c.l.b16 %v1542
    %v2693 = vunpack.c.h.b16 %v1542
    %v2694 = vunpack.c.l.b16 %v1543
    %v2695 = vunpack.c.h.b16 %v1543
    %v2696 = vunpack.c.l.b16 %v1544
    %v2697 = vunpack.c.h.b16 %v1544
    %v2698 = vunpack.c.l.b16 %v1545
    %v2699 = vunpack.c.h.b16 %v1545
    %v2700 = vunpack.c.l.b16 %v1546
    %v2701 = vunpack.c.h.b16 %v1546
    %v2702 = vunpack.c.l.b16 %v1547
    %v2703 = vunpack.c.h.b16 %v1547
    %v2704 = vunpack.c.l.b16 %v1548
    %v2705 = vunpack.c.h.b16 %v1548
    %v2706 = vunpack.c.l.b16 %v1549
    %v2707 = vunpack.c.h.b16 %v1549
    %v2708 = vunpack.c.l.b16 %v1550
    %v2709 = vunpack.c.h.b16 %v1550
    %v2710 = vunpack.c.l.b16 %v1551
    %v2711 = vunpack.c.h.b16 %v1551
    %v2712 = vunpack.c.l.b16 %v1552
    %v2713 = vunpack.c.h.b16 %v1552
    %v2714 = vunpack.c.l.b16 %v1553
    %v2715 = vunpack.c.h.b16 %v1553
    %v2716 = vunpack.c.l.b16 %v1554
    %v2717 = vunpack.c.h.b16 %v1554
    %v2718 = vunpack.c.l.b16 %v1555
    %v2719 = vunpack.c.h.b16 %v1555
    %v2720 = vunpack.c.l.b16 %v1556
    %v2721 = vunpack.c.h.b16 %v1556
    %v2722 = vunpack.c.l.b16 %v1557
    %v2723 = vunpack.c.h.b16 %v1557
    %v2724 = vunpack.c.l.b16 %v1558
    %v2725 = vunpack.c.h.b16 %v1558
    %v2726 = vunpack.c.l.b16 %v1559
    %v2727 = vunpack.c.h.b16 %v1559
    %v2728 = vunpack.c.l.b16 %v1560
    %v2729 = vunpack.c.h.b16 %v1560
    %v2730 = vunpack.c.l.b16 %v1561
    %v2731 = vunpack.c.h.b16 %v1561
    %v2732 = vunpack.c.l.b16 %v1562
    %v2733 = vunpack.c.h.b16 %v1562
    %v2734 = vunpack.c.l.b16 %v1563
    %v2735 = vunpack.c.h.b16 %v1563
    %v2736 = vunpack.c.l.b16 %v1564
    %v2737 = vunpack.c.h.b16 %v1564
    %v2738 = vunpack.c.l.b16 %v1565
    %v2739 = vunpack.c.h.b16 %v1565
    %v2740 = vunpack.c.l.b16 %v1566
    %v2741 = vunpack.c.h.b16 %v1566
    %v2742 = vunpack.c.l.b16 %v1567
    %v2743 = vunpack.c.h.b16 %v1567
    %v2744 = vunpack.c.l.b16 %v1568
    %v2745 = vunpack.c.h.b16 %v1568
    %v2746 = vunpack.c.l.b16 %v1569
    %v2747 = vunpack.c.h.b16 %v1569
    %v2748 = vunpack.c.l.b16 %v1570
    %v2749 = vunpack.c.h.b16 %v1570
    %v2750 = vunpack.c.l.b16 %v1571
    %v2751 = vunpack.c.h.b16 %v1571
    %v2752 = vunpack.c.l.b16 %v1572
    %v2753 = vunpack.c.h.b16 %v1572
    %v2754 = vunpack.c.l.b16 %v1573
    %v2755 = vunpack.c.h.b16 %v1573
    %v2756 = vunpack.c.l.b16 %v1574
    %v2757 = vunpack.c.h.b16 %v1574
    %v2758 = vunpack.c.l.b16 %v1575
    %v2759 = vunpack.c.h.b16 %v1575
    %v2760 = vunpack.c.l.b16 %v1576
    %v2761 = vunpack.c.h.b16 %v1576
    %v2762 = vunpack.c.l.b16 %v1577
    %v2763 = vunpack.c.h.b16 %v1577
    %v2764 = vunpack.c.l.b16 %v1578
    %v2765 = vunpack.c.h.b16 %v1578
    %v2766 = vunpack.c.l.b16 %v1579
    %v2767 = vunpack.c.h.b16 %v1579
    %v2768 = vunpack.c.l.b16 %v1580
    %v2769 = vunpack.c.h.b16 %v1580
    %v2770 = vunpack.c.l.b16 %v1581
    %v2771 = vunpack.c.h.b16 %v1581
    %v2772 = vunpack.c.l.b16 %v1582
    %v2773 = vunpack.c.h.b16 %v1582
    %v2774 = vunpack.c.l.b16 %v1583
    %v2775 = vunpack.c.h.b16 %v1583
    %v2776 = vunpack.c.l.b16 %v1584
    %v2777 = vunpack.c.h.b16 %v1584
    %v2778 = vunpack.c.l.b16 %v1585
    %v2779 = vunpack.c.h.b16 %v1585
    %v2780 = vunpack.c.l.b16 %v1586
    %v2781 = vunpack.c.h.b16 %v1586
    %v2782 = vunpack.c.l.b16 %v1587
    %v2783 = vunpack.c.h.b16 %v1587
    %v2784 = vunpack.c.l.b16 %v1588
    %v2785 = vunpack.c.h.b16 %v1588
    %v2786 = vunpack.c.l.b16 %v1589
    %v2787 = vunpack.c.h.b16 %v1589
    %v2788 = vunpack.c.l.b16 %v1590
    %v2789 = vunpack.c.h.b16 %v1590
    %v2790 = vunpack.c.l.b16 %v1591
    %v2791 = vunpack.c.h.b16 %v1591
    %v2792 = vunpack.c.l.b16 %v1592
    %v2793 = vunpack.c.h.b16 %v1592
    %v2794 = vunpack.c.l.b16 %v1593
    %v2795 = vunpack.c.h.b16 %v1593
    %v2796 = vunpack.c.l.b16 %v1594
    %v2797 = vunpack.c.h.b16 %v1594
    %v2798 = vunpack.c.l.b16 %v1595
    %v2799 = vunpack.c.h.b16 %v1595
    %v2800 = vunpack.c.l.b16 %v1596
    %v2801 = vunpack.c.h.b16 %v1596
    %v2802 = vunpack.c.l.b16 %v1597
    %v2803 = vunpack.c.h.b16 %v1597
    %v2804 = vunpack.c.l.b16 %v1598
    %v2805 = vunpack.c.h.b16 %v1598
    %v2806 = vunpack.c.l.b16 %v1599
    %v2807 = vunpack.c.h.b16 %v1599
    %v2808 = vunpack.c.l.b16 %v1600
    %v2809 = vunpack.c.h.b16 %v1600
    %v2810 = vunpack.c.l.b16 %v1601
    %v2811 = vunpack.c.h.b16 %v1601
    %v2812 = vunpack.c.l.b16 %v1602
    %v2813 = vunpack.c.h.b16 %v1602
    %v2814 = vunpack.c.l.b16 %v1603
    %v2815 = vunpack.c.h.b16 %v1603
    %v2816 = vunpack.c.l.b16 %v1604
    %v2817 = vunpack.c.h.b16 %v1604
    %v2818 = vunpack.c.l.b16 %v1605
    %v2819 = vunpack.c.h.b16 %v1605
    %v2820 = vunpack.c.l.b16 %v1606
    %v2821 = vunpack.c.h.b16 %v1606
    %v2822 = vunpack.c.l.b16 %v1607
    %v2823 = vunpack.c.h.b16 %v1607
    %v2824 = vunpack.c.l.b16 %v1608
    %v2825 = vunpack.c.h.b16 %v1608
    %v2826 = vunpack.c.l.b16 %v1609
    %v2827 = vunpack.c.h.b16 %v1609
    %v2828 = vunpack.c.l.b16 %v1610
    %v2829 = vunpack.c.h.b16 %v1610
    %v2830 = vunpack.c.l.b16 %v1611
    %v2831 = vunpack.c.h.b16 %v1611
    %v2832 = vunpack.c.l.b16 %v1612
    %v2833 = vunpack.c.h.b16 %v1612
    %v2834 = vunpack.c.l.b16 %v1613
    %v2835 = vunpack.c.h.b16 %v1613
    %v2836 = vunpack.c.l.b16 %v1614
    %v2837 = vunpack.c.h.b16 %v1614
    %v2838 = vunpack.c.l.b16 %v1615
    %v2839 = vunpack.c.h.b16 %v1615
    %v2840 = vunpack.c.l.b16 %v1616
    %v2841 = vunpack.c.h.b16 %v1616
    %v2842 = vunpack.c.l.b16 %v1617
    %v2843 = vunpack.c.h.b16 %v1617
    %v2844 = vunpack.c.l.b16 %v1618
    %v2845 = vunpack.c.h.b16 %v1618
    %v2846 = vunpack.c.l.b16 %v1619
    %v2847 = vunpack.c.h.b16 %v1619
    %v2848 = vunpack.c.l.b16 %v1620
    %v2849 = vunpack.c.h.b16 %v1620
    %v2850 = vunpack.c.l.b16 %v1621
    %v2851 = vunpack.c.h.b16 %v1621
    %v2852 = vunpack.c.l.b16 %v1622
    %v2853 = vunpack.c.h.b16 %v1622
    %v2854 = vunpack.c.l.b16 %v1623
    %v2855 = vunpack.c.h.b16 %v1623
    %v2856 = vunpack.c.l.b16 %v1624
    %v2857 = vunpack.c.h.b16 %v1624
    %v2858 = vunpack.c.l.b16 %v1625
    %v2859 = vunpack.c.h.b16 %v1625
    %v2860 = vunpack.c.l.b16 %v1626
    %v2861 = vunpack.c.h.b16 %v1626
    %v2862 = vunpack.c.l.b16 %v1627
    %v2863 = vunpack.c.h.b16 %v1627
    %v2864 = vunpack.c.l.b16 %v1628
    %v2865 = vunpack.c.h.b16 %v1628
    %v2866 = vunpack.c.l.b16 %v1629
    %v2867 = vunpack.c.h.b16 %v1629
    %v2868 = vunpack.c.l.b16 %v1630
    %v2869 = vunpack.c.h.b16 %v1630
    %v2870 = vunpack.c.l.b16 %v1631
    %v2871 = vunpack.c.h.b16 %v1631
    %v2872 = vunpack.c.l.b16 %v1632
    %v2873 = vunpack.c.h.b16 %v1632
    %v2874 = vunpack.c.l.b16 %v1633
    %v2875 = vunpack.c.h.b16 %v1633
    %v2876 = vunpack.c.l.b16 %v1634
    %v2877 = vunpack.c.h.b16 %v1634
    %v2878 = vunpack.c.l.b16 %v1635
    %v2879 = vunpack.c.h.b16 %v1635
    %v2880 = vunpack.c.l.b16 %v1636
    %v2881 = vunpack.c.h.b16 %v1636
    %v2882 = vunpack.c.l.b16 %v1637
    %v2883 = vunpack.c.h.b16 %v1637
    %v2884 = vunpack.c.l.b16 %v1638
    %v2885 = vunpack.c.h.b16 %v1638
    %v2886 = vunpack.c.l.b16 %v1639
    %v2887 = vunpack.c.h.b16 %v1639
    %v2888 = vunpack.c.l.b16 %v1640
    %v2889 = vunpack.c.h.b16 %v1640
    %v2890 = vunpack.c.l.b16 %v1641
    %v2891 = vunpack.c.h.b16 %v1641
    %v2892 = vunpack.c.l.b16 %v1642
    %v2893 = vunpack.c.h.b16 %v1642
    %v2894 = vunpack.c.l.b16 %v1643
    %v2895 = vunpack.c.h.b16 %v1643
    %v2896 = vunpack.c.l.b16 %v1644
    %v2897 = vunpack.c.h.b16 %v1644
    %v2898 = vunpack.c.l.b16 %v1645
    %v2899 = vunpack.c.h.b16 %v1645
    %v2900 = vunpack.c.l.b16 %v1646
    %v2901 = vunpack.c.h.b16 %v1646
    %v2902 = vunpack.c.l.b16 %v1647
    %v2903 = vunpack.c.h.b16 %v1647
    %v2904 = vunpack.c.l.b16 %v1648
    %v2905 = vunpack.c.h.b16 %v1648
    %v2906 = vunpack.c.l.b16 %v1649
    %v2907 = vunpack.c.h.b16 %v1649
    %v2908 = vunpack.c.l.b16 %v1650
    %v2909 = vunpack.c.h.b16 %v1650
    %v2910 = vunpack.c.l.b16 %v1651
    %v2911 = vunpack.c.h.b16 %v1651
    %v2912 = vunpack.c.l.b16 %v1652
    %v2913 = vunpack.c.h.b16 %v1652
    %v2914 = vunpack.c.l.b16 %v1653
    %v2915 = vunpack.c.h.b16 %v1653
    %v2916 = vunpack.c.l.b16 %v1654
    %v2917 = vunpack.c.h.b16 %v1654
    %v2918 = vunpack.c.l.b16 %v1655
    %v2919 = vunpack.c.h.b16 %v1655
    %v2920 = vunpack.c.l.b16 %v1656
    %v2921 = vunpack.c.h.b16 %v1656
    %v2922 = vunpack.c.l.b16 %v1657
    %v2923 = vunpack.c.h.b16 %v1657
    %v2924 = vunpack.c.l.b16 %v1658
    %v2925 = vunpack.c.h.b16 %v1658
    %v2926 = vunpack.c.l.b16 %v1659
    %v2927 = vunpack.c.h.b16 %v1659
    %v2928 = vunpack.c.l.b16 %v1660
    %v2929 = vunpack.c.h.b16 %v1660
    %v2930 = vunpack.c.l.b16 %v1661
    %v2931 = vunpack.c.h.b16 %v1661
    %v2932 = vunpack.c.l.b16 %v1662
    %v2933 = vunpack.c.h.b16 %v1662
    %v2934 = vunpack.c.l.b16 %v1663
    %v2935 = vunpack.c.h.b16 %v1663
    %v2936 = vunpack.c.l.b16 %v1664
    %v2937 = vunpack.c.h.b16 %v1664
    %v2938 = vunpack.c.l.b16 %v1665
    %v2939 = vunpack.c.h.b16 %v1665
    %v2940 = vunpack.c.l.b16 %v1666
    %v2941 = vunpack.c.h.b16 %v1666
    %v2942 = vunpack.c.l.b16 %v1667
    %v2943 = vunpack.c.h.b16 %v1667
    %v2944 = vunpack.c.l.b16 %v1668
    %v2945 = vunpack.c.h.b16 %v1668
    %v2946 = vunpack.c.l.b16 %v1669
    %v2947 = vunpack.c.h.b16 %v1669
    %v2948 = vunpack.c.l.b16 %v1670
    %v2949 = vunpack.c.h.b16 %v1670
    %v2950 = vunpack.c.l.b16 %v1671
    %v2951 = vunpack.c.h.b16 %v1671
    %v2952 = vunpack.c.l.b16 %v1672
    %v2953 = vunpack.c.h.b16 %v1672
    %v2954 = vunpack.c.l.b16 %v1673
    %v2955 = vunpack.c.h.b16 %v1673
    %v2956 = vunpack.c.l.b16 %v1674
    %v2957 = vunpack.c.h.b16 %v1674
    %v2958 = vunpack.c.l.b16 %v1675
    %v2959 = vunpack.c.h.b16 %v1675
    %v2960 = vunpack.c.l.b16 %v1676
    %v2961 = vunpack.c.h.b16 %v1676
    %v2962 = vunpack.c.l.b16 %v1677
    %v2963 = vunpack.c.h.b16 %v1677
    %v2964 = vunpack.c.l.b16 %v1678
    %v2965 = vunpack.c.h.b16 %v1678
    %v2966 = vunpack.c.l.b16 %v1679
    %v2967 = vunpack.c.h.b16 %v1679
    %v2968 = vunpack.c.l.b16 %v1680
    %v2969 = vunpack.c.h.b16 %v1680
    %v2970 = vunpack.c.l.b16 %v1681
    %v2971 = vunpack.c.h.b16 %v1681
    %v2972 = vunpack.c.l.b16 %v1682
    %v2973 = vunpack.c.h.b16 %v1682
    %v2974 = vunpack.c.l.b16 %v1683
    %v2975 = vunpack.c.h.b16 %v1683
    %v2976 = vunpack.c.l.b16 %v1684
    %v2977 = vunpack.c.h.b16 %v1684
    %v2978 = vunpack.c.l.b16 %v1685
    %v2979 = vunpack.c.h.b16 %v1685
    %v2980 = vunpack.c.l.b16 %v1686
    %v2981 = vunpack.c.h.b16 %v1686
    %v2982 = vunpack.c.l.b16 %v1687
    %v2983 = vunpack.c.h.b16 %v1687
    %v2984 = vunpack.c.l.b16 %v1688
    %v2985 = vunpack.c.h.b16 %v1688
    %v2986 = vunpack.c.l.b16 %v1689
    %v2987 = vunpack.c.h.b16 %v1689
    %v2988 = vunpack.c.l.b16 %v1690
    %v2989 = vunpack.c.h.b16 %v1690
    %v2990 = vunpack.c.l.b16 %v1691
    %v2991 = vunpack.c.h.b16 %v1691
    %v2992 = vunpack.c.l.b16 %v1692
    %v2993 = vunpack.c.h.b16 %v1692
    %v2994 = vunpack.c.l.b16 %v1693
    %v2995 = vunpack.c.h.b16 %v1693
    %v2996 = vunpack.c.l.b16 %v1694
    %v2997 = vunpack.c.h.b16 %v1694
    %v2998 = vunpack.c.l.b16 %v1695
    %v2999 = vunpack.c.h.b16 %v1695
    %v3000 = vunpack.c.l.b16 %v1696
    %v3001 = vunpack.c.h.b16 %v1696
    %v3002 = vunpack.c.l.b16 %v1697
    %v3003 = vunpack.c.h.b16 %v1697
    %v3004 = vunpack.c.l.b16 %v1698
    %v3005 = vunpack.c.h.b16 %v1698
    %v3006 = vunpack.c.l.b16 %v1699
    %v3007 = vunpack.c.h.b16 %v1699
    %v3008 = vunpack.c.l.b16 %v1700
    %v3009 = vunpack.c.h.b16 %v1700
    %v3010 = vunpack.c.l.b16 %v1701
    %v3011 = vunpack.c.h.b16 %v1701
    %v3012 = vunpack.c.l.b16 %v1702
    %v3013 = vunpack.c.h.b16 %v1702
    %v3014 = vunpack.c.l.b16 %v1703
    %v3015 = vunpack.c.h.b16 %v1703
    %v3016 = vunpack.c.l.b16 %v1704
    %v3017 = vunpack.c.h.b16 %v1704
    %v3018 = vunpack.c.l.b16 %v1705
    %v3019 = vunpack.c.h.b16 %v1705
    %v3020 = vunpack.c.l.b16 %v1706
    %v3021 = vunpack.c.h.b16 %v1706
    %v3022 = vunpack.c.l.b16 %v1707
    %v3023 = vunpack.c.h.b16 %v1707
    %v3024 = vunpack.c.l.b16 %v1708
    %v3025 = vunpack.c.h.b16 %v1708
    %v3026 = vunpack.c.l.b16 %v1709
    %v3027 = vunpack.c.h.b16 %v1709
    %v3028 = vunpack.c.l.b16 %v1710
    %v3029 = vunpack.c.h.b16 %v1710
    %v3030 = vunpack.c.l.b16 %v1711
    %v3031 = vunpack.c.h.b16 %v1711
    %v3032 = vunpack.c.l.b16 %v1712
    %v3033 = vunpack.c.h.b16 %v1712
    %v3034 = vunpack.c.l.b16 %v1713
    %v3035 = vunpack.c.h.b16 %v1713
    %v3036 = vunpack.c.l.b16 %v1714
    %v3037 = vunpack.c.h.b16 %v1714
    %v3038 = vunpack.c.l.b16 %v1715
    %v3039 = vunpack.c.h.b16 %v1715
    %v3040 = vunpack.c.l.b16 %v1716
    %v3041 = vunpack.c.h.b16 %v1716
    %v3042 = vunpack.c.l.b16 %v1717
    %v3043 = vunpack.c.h.b16 %v1717
    %v3044 = vunpack.c.l.b16 %v1718
    %v3045 = vunpack.c.h.b16 %v1718
    %v3046 = vunpack.c.l.b16 %v1719
    %v3047 = vunpack.c.h.b16 %v1719
    %v3048 = vunpack.c.l.b16 %v1720
    %v3049 = vunpack.c.h.b16 %v1720
    %v3050 = vunpack.c.l.b16 %v1721
    %v3051 = vunpack.c.h.b16 %v1721
    %v3052 = vunpack.c.l.b16 %v1722
    %v3053 = vunpack.c.h.b16 %v1722
    %v3054 = vunpack.c.l.b16 %v1723
    %v3055 = vunpack.c.h.b16 %v1723
    %v3056 = vunpack.c.l.b16 %v1724
    %v3057 = vunpack.c.h.b16 %v1724
    %v3058 = vunpack.c.l.b16 %v1725
    %v3059 = vunpack.c.h.b16 %v1725
    %v3060 = vunpack.c.l.b16 %v1726
    %v3061 = vunpack.c.h.b16 %v1726
    %v3062 = vunpack.c.l.b16 %v1727
    %v3063 = vunpack.c.h.b16 %v1727
    %v3064 = vunpack.c.l.b16 %v1728
    %v3065 = vunpack.c.h.b16 %v1728
    %v3066 = vunpack.c.l.b16 %v1729
    %v3067 = vunpack.c.h.b16 %v1729
    %v3068 = vunpack.c.l.b16 %v1730
    %v3069 = vunpack.c.h.b16 %v1730
    %v3070 = vunpack.c.l.b16 %v1731
    %v3071 = vunpack.c.h.b16 %v1731
    %v3072 = vunpack.c.l.b16 %v1732
    %v3073 = vunpack.c.h.b16 %v1732
    %v3074 = vunpack.c.l.b16 %v1733
    %v3075 = vunpack.c.h.b16 %v1733
    %v3076 = vunpack.c.l.b16 %v1734
    %v3077 = vunpack.c.h.b16 %v1734
    %v3078 = vunpack.c.l.b16 %v1735
    %v3079 = vunpack.c.h.b16 %v1735
    %v3080 = vunpack.c.l.b16 %v1736
    %v3081 = vunpack.c.h.b16 %v1736
    %v3082 = vunpack.c.l.b16 %v1737
    %v3083 = vunpack.c.h.b16 %v1737
    %v3084 = vunpack.c.l.b16 %v1738
    %v3085 = vunpack.c.h.b16 %v1738
    %v3086 = vunpack.c.l.b16 %v1739
    %v3087 = vunpack.c.h.b16 %v1739
    %v3088 = vunpack.c.l.b16 %v1740
    %v3089 = vunpack.c.h.b16 %v1740
    %v3090 = vunpack.c.l.b16 %v1741
    %v3091 = vunpack.c.h.b16 %v1741
    %v3092 = vunpack.c.l.b16 %v1742
    %v3093 = vunpack.c.h.b16 %v1742
    %v3094 = vunpack.c.l.b16 %v1743
    %v3095 = vunpack.c.h.b16 %v1743
    %v3096 = vunpack.c.l.b16 %v1744
    %v3097 = vunpack.c.h.b16 %v1744
    %v3098 = vunpack.c.l.b16 %v1745
    %v3099 = vunpack.c.h.b16 %v1745
    %v3100 = vunpack.c.l.b16 %v1746
    %v3101 = vunpack.c.h.b16 %v1746
    %v3102 = vunpack.c.l.b16 %v1747
    %v3103 = vunpack.c.h.b16 %v1747
    %v3104 = vunpack.c.l.b16 %v1748
    %v3105 = vunpack.c.h.b16 %v1748
    %v3106 = vunpack.c.l.b16 %v1749
    %v3107 = vunpack.c.h.b16 %v1749
    %v3108 = vunpack.c.l.b16 %v1750
    %v3109 = vunpack.c.h.b16 %v1750
    %v3110 = vunpack.c.l.b16 %v1751
    %v3111 = vunpack.c.h.b16 %v1751
    %v3112 = vunpack.c.l.b16 %v1752
    %v3113 = vunpack.c.h.b16 %v1752
    %v3114 = vunpack.c.l.b16 %v1753
    %v3115 = vunpack.c.h.b16 %v1753
    %v3116 = vunpack.c.l.b16 %v1754
    %v3117 = vunpack.c.h.b16 %v1754
    %v3118 = vunpack.c.l.b16 %v1755
    %v3119 = vunpack.c.h.b16 %v1755
    %v3120 = vunpack.c.l.b16 %v1756
    %v3121 = vunpack.c.h.b16 %v1756
    %v3122 = vunpack.c.l.b16 %v1757
    %v3123 = vunpack.c.h.b16 %v1757
    %v3124 = vunpack.c.l.b16 %v1758
    %v3125 = vunpack.c.h.b16 %v1758
    %v3126 = vunpack.c.l.b16 %v1759
    %v3127 = vunpack.c.h.b16 %v1759
    %v3128 = vunpack.c.l.b16 %v1760
    %v3129 = vunpack.c.h.b16 %v1760
    %v3130 = vunpack.c.l.b16 %v1761
    %v3131 = vunpack.c.h.b16 %v1761
    %v3132 = vunpack.c.l.b16 %v1762
    %v3133 = vunpack.c.h.b16 %v1762
    %v3134 = vunpack.c.l.b16 %v1763
    %v3135 = vunpack.c.h.b16 %v1763
    %v3136 = vunpack.c.l.b16 %v1764
    %v3137 = vunpack.c.h.b16 %v1764
    %v3138 = vunpack.c.l.b16 %v1765
    %v3139 = vunpack.c.h.b16 %v1765
    %v3140 = vunpack.c.l.b16 %v1766
    %v3141 = vunpack.c.h.b16 %v1766
    %v3142 = vunpack.c.l.b16 %v1767
    %v3143 = vunpack.c.h.b16 %v1767
    %v3144 = vunpack.c.l.b16 %v1768
    %v3145 = vunpack.c.h.b16 %v1768
    %v3146 = vunpack.c.l.b16 %v1769
    %v3147 = vunpack.c.h.b16 %v1769
    %v3148 = vunpack.c.l.b16 %v1770
    %v3149 = vunpack.c.h.b16 %v1770
    %v3150 = vunpack.c.l.b16 %v1771
    %v3151 = vunpack.c.h.b16 %v1771
    %v3152 = vunpack.c.l.b16 %v1772
    %v3153 = vunpack.c.h.b16 %v1772
    %v3154 = vunpack.c.l.b16 %v1773
    %v3155 = vunpack.c.h.b16 %v1773
    %v3156 = vunpack.c.l.b16 %v1774
    %v3157 = vunpack.c.h.b16 %v1774
    %v3158 = vunpack.c.l.b16 %v1775
    %v3159 = vunpack.c.h.b16 %v1775
    %v3160 = vunpack.c.l.b16 %v1776
    %v3161 = vunpack.c.h.b16 %v1776
    %v3162 = vunpack.c.l.b16 %v1777
    %v3163 = vunpack.c.h.b16 %v1777
    %v3164 = vunpack.c.l.b16 %v1778
    %v3165 = vunpack.c.h.b16 %v1778
    %v3166 = vunpack.c.l.b16 %v1779
    %v3167 = vunpack.c.h.b16 %v1779
    %v3168 = vunpack.c.l.b16 %v1780
    %v3169 = vunpack.c.h.b16 %v1780
    %v3170 = vunpack.c.l.b16 %v1781
    %v3171 = vunpack.c.h.b16 %v1781
    %v3172 = vunpack.c.l.b16 %v1782
    %v3173 = vunpack.c.h.b16 %v1782
    %v3174 = vunpack.c.l.b16 %v1783
    %v3175 = vunpack.c.h.b16 %v1783
    %v3176 = vunpack.c.l.b16 %v1784
    %v3177 = vunpack.c.h.b16 %v1784
    %v3178 = vunpack.c.l.b16 %v1785
    %v3179 = vunpack.c.h.b16 %v1785
    %v3180 = vunpack.c.l.b16 %v1786
    %v3181 = vunpack.c.h.b16 %v1786
    %v3182 = vunpack.c.l.b16 %v1787
    %v3183 = vunpack.c.h.b16 %v1787
    %v3184 = vunpack.c.l.b16 %v1788
    %v3185 = vunpack.c.h.b16 %v1788
    %v3186 = vunpack.c.l.b16 %v1789
    %v3187 = vunpack.c.h.b16 %v1789
    %v3188 = vunpack.c.l.b16 %v1790
    %v3189 = vunpack.c.h.b16 %v1790
    %v3190 = vunpack.c.l.b16 %v1791
    %v3191 = vunpack.c.h.b16 %v1791
    %v3192 = vunpack.c.l.b16 %v1792
    %v3193 = vunpack.c.h.b16 %v1792
    %v3194 = vunpack.c.l.b16 %v1793
    %v3195 = vunpack.c.h.b16 %v1793
    %v3196 = vunpack.c.l.b16 %v1794
    %v3197 = vunpack.c.h.b16 %v1794
    %v3198 = vunpack.c.l.b16 %v1795
    %v3199 = vunpack.c.h.b16 %v1795
    %v3200 = vunpack.c.l.b16 %v1796
    %v3201 = vunpack.c.h.b16 %v1796
    %v3202 = vunpack.c.l.b16 %v1797
    %v3203 = vunpack.c.h.b16 %v1797
    %v3204 = vunpack.c.l.b16 %v1798
    %v3205 = vunpack.c.h.b16 %v1798
    %v3206 = vunpack.c.l.b16 %v1799
    %v3207 = vunpack.c.h.b16 %v1799
    %v3208 = vunpack.c.l.b16 %v1800
    %v3209 = vunpack.c.h.b16 %v1800
    %v3210 = vunpack.c.l.b16 %v1801
    %v3211 = vunpack.c.h.b16 %v1801
    %v3212 = vunpack.c.l.b16 %v1802
    %v3213 = vunpack.c.h.b16 %v1802
    %v3214 = vunpack.c.l.b16 %v1803
    %v3215 = vunpack.c.h.b16 %v1803
    %v3216 = vunpack.c.l.b16 %v1804
    %v3217 = vunpack.c.h.b16 %v1804
    %v3218 = vunpack.c.l.b16 %v1805
    %v3219 = vunpack.c.h.b16 %v1805
    %v3220 = vunpack.c.l.b16 %v1806
    %v3221 = vunpack.c.h.b16 %v1806
    %v3222 = vunpack.c.l.b16 %v1807
    %v3223 = vunpack.c.h.b16 %v1807
    %v3224 = vunpack.c.l.b16 %v1808
    %v3225 = vunpack.c.h.b16 %v1808
    %v3226 = vunpack.c.l.b16 %v1809
    %v3227 = vunpack.c.h.b16 %v1809
    %v3228 = vunpack.c.l.b16 %v1810
    %v3229 = vunpack.c.h.b16 %v1810
    %v3230 = vunpack.c.l.b16 %v1811
    %v3231 = vunpack.c.h.b16 %v1811
    %v3232 = vunpack.c.l.b16 %v1812
    %v3233 = vunpack.c.h.b16 %v1812
    %v3234 = vunpack.c.l.b16 %v1813
    %v3235 = vunpack.c.h.b16 %v1813
    %v3236 = vunpack.c.l.b16 %v1814
    %v3237 = vunpack.c.h.b16 %v1814
    %v3238 = vunpack.c.l.b16 %v1815
    %v3239 = vunpack.c.h.b16 %v1815
    %v3240 = vunpack.c.l.b16 %v1816
    %v3241 = vunpack.c.h.b16 %v1816
    %v3242 = vunpack.c.l.b16 %v1817
    %v3243 = vunpack.c.h.b16 %v1817
    %v3244 = vunpack.c.l.b16 %v1818
    %v3245 = vunpack.c.h.b16 %v1818
    %v3246 = vunpack.c.l.b16 %v1819
    %v3247 = vunpack.c.h.b16 %v1819
    %v3248 = vunpack.c.l.b16 %v1820
    %v3249 = vunpack.c.h.b16 %v1820
    %v3250 = vunpack.c.l.b16 %v1821
    %v3251 = vunpack.c.h.b16 %v1821
    %v3252 = vunpack.c.l.b16 %v1822
    %v3253 = vunpack.c.h.b16 %v1822
    %v3254 = vunpack.c.l.b16 %v1823
    %v3255 = vunpack.c.h.b16 %v1823
    %v3256 = vunpack.c.l.b16 %v1824
    %v3257 = vunpack.c.h.b16 %v1824
    %v3258 = vunpack.c.l.b16 %v1825
    %v3259 = vunpack.c.h.b16 %v1825
    %v3260 = vunpack.c.l.b16 %v1826
    %v3261 = vunpack.c.h.b16 %v1826
    %v3262 = vunpack.c.l.b16 %v1827
    %v3263 = vunpack.c.h.b16 %v1827
    %v3264 = vunpack.c.l.b16 %v1828
    %v3265 = vunpack.c.h.b16 %v1828
    %v3266 = vunpack.c.l.b16 %v1829
    %v3267 = vunpack.c.h.b16 %v1829
    %v3268 = vunpack.c.l.b16 %v1830
    %v3269 = vunpack.c.h.b16 %v1830
    %v3270 = vunpack.c.l.b16 %v1831
    %v3271 = vunpack.c.h.b16 %v1831
    %v3272 = vunpack.c.l.b16 %v1832
    %v3273 = vunpack.c.h.b16 %v1832
    %v3274 = vunpack.c.l.b16 %v1833
    %v3275 = vunpack.c.h.b16 %v1833
    %v3276 = vunpack.c.l.b16 %v1834
    %v3277 = vunpack.c.h.b16 %v1834
    %v3278 = vunpack.c.l.b16 %v1835
    %v3279 = vunpack.c.h.b16 %v1835
    %v3280 = vunpack.c.l.b16 %v1836
    %v3281 = vunpack.c.h.b16 %v1836
    %v3282 = vunpack.c.l.b16 %v1837
    %v3283 = vunpack.c.h.b16 %v1837
    %v3284 = vunpack.c.l.b16 %v1838
    %v3285 = vunpack.c.h.b16 %v1838
    %v3286 = vunpack.c.l.b16 %v1839
    %v3287 = vunpack.c.h.b16 %v1839
    %v3288 = vunpack.c.l.b16 %v1840
    %v3289 = vunpack.c.h.b16 %v1840
    %v3290 = vunpack.c.l.b16 %v1841
    %v3291 = vunpack.c.h.b16 %v1841
    %v3292 = vunpack.c.l.b16 %v1842
    %v3293 = vunpack.c.h.b16 %v1842
    %v3294 = vunpack.c.l.b16 %v1843
    %v3295 = vunpack.c.h.b16 %v1843
    %v3296 = vunpack.c.l.b16 %v1844
    %v3297 = vunpack.c.h.b16 %v1844
    %v3298 = vunpack.c.l.b16 %v1845
    %v3299 = vunpack.c.h.b16 %v1845
    %v3300 = vunpack.c.l.b16 %v1846
    %v3301 = vunpack.c.h.b16 %v1846
    %v3302 = vunpack.c.l.b16 %v1847
    %v3303 = vunpack.c.h.b16 %v1847
    %v3304 = vunpack.c.l.b16 %v1848
    %v3305 = vunpack.c.h.b16 %v1848
    %v3306 = vunpack.c.l.b16 %v1849
    %v3307 = vunpack.c.h.b16 %v1849
    %v3308 = vunpack.c.l.b16 %v1850
    %v3309 = vunpack.c.h.b16 %v1850
    %v3310 = vunpack.c.l.b16 %v1851
    %v3311 = vunpack.c.h.b16 %v1851
    %v3312 = vunpack.c.l.b16 %v1852
    %v3313 = vunpack.c.h.b16 %v1852
    %v3314 = vunpack.c.l.b16 %v1853
    %v3315 = vunpack.c.h.b16 %v1853
    %v3316 = vunpack.c.l.b16 %v1854
    %v3317 = vunpack.c.h.b16 %v1854
    %v3318 = vunpack.c.l.b16 %v1855
    %v3319 = vunpack.c.h.b16 %v1855
    %v3320 = vunpack.c.l.b16 %v1856
    %v3321 = vunpack.c.h.b16 %v1856
    %v3322 = vunpack.c.l.b16 %v1857
    %v3323 = vunpack.c.h.b16 %v1857
    %v3324 = vunpack.c.l.b16 %v1858
    %v3325 = vunpack.c.h.b16 %v1858
    %v3326 = vunpack.c.l.b16 %v1859
    %v3327 = vunpack.c.h.b16 %v1859
    %v3328 = vunpack.c.l.b16 %v1860
    %v3329 = vunpack.c.h.b16 %v1860
    %v3330 = vunpack.c.l.b16 %v1861
    %v3331 = vunpack.c.h.b16 %v1861
    %v3332 = vunpack.c.l.b16 %v1862
    %v3333 = vunpack.c.h.b16 %v1862
    %v3334 = vunpack.c.l.b16 %v1863
    %v3335 = vunpack.c.h.b16 %v1863
    %v3336 = vunpack.c.l.b16 %v1864
    %v3337 = vunpack.c.h.b16 %v1864
    %v3338 = vunpack.c.l.b16 %v1865
    %v3339 = vunpack.c.h.b16 %v1865
    %v3340 = vunpack.c.l.b16 %v1866
    %v3341 = vunpack.c.h.b16 %v1866
    %v3342 = vunpack.c.l.b16 %v1867
    %v3343 = vunpack.c.h.b16 %v1867
    %v3344 = vunpack.c.l.b16 %v1868
    %v3345 = vunpack.c.h.b16 %v1868
    %v3346 = vunpack.c.l.b16 %v1869
    %v3347 = vunpack.c.h.b16 %v1869
    %v3348 = vunpack.c.l.b16 %v1870
    %v3349 = vunpack.c.h.b16 %v1870
    %v3350 = vunpack.c.l.b16 %v1871
    %v3351 = vunpack.c.h.b16 %v1871
    %v3352 = vunpack.c.l.b16 %v1872
    %v3353 = vunpack.c.h.b16 %v1872
    %v3354 = vunpack.c.l.b16 %v1873
    %v3355 = vunpack.c.h.b16 %v1873
    %v3356 = vunpack.c.l.b16 %v1874
    %v3357 = vunpack.c.h.b16 %v1874
    %v3358 = vunpack.c.l.b16 %v1875
    %v3359 = vunpack.c.h.b16 %v1875
    %v3360 = vunpack.c.l.b16 %v1876
    %v3361 = vunpack.c.h.b16 %v1876
    %v3362 = vunpack.c.l.b16 %v1877
    %v3363 = vunpack.c.h.b16 %v1877
    %v3364 = vunpack.c.l.b16 %v1878
    %v3365 = vunpack.c.h.b16 %v1878
    %v3366 = vunpack.c.l.b16 %v1879
    %v3367 = vunpack.c.h.b16 %v1879
    %v3368 = vunpack.c.l.b16 %v1880
    %v3369 = vunpack.c.h.b16 %v1880
    %v3370 = vunpack.c.l.b16 %v1881
    %v3371 = vunpack.c.h.b16 %v1881
    %v3372 = vunpack.c.l.b16 %v1882
    %v3373 = vunpack.c.h.b16 %v1882
    %v3374 = vunpack.c.l.b16 %v1883
    %v3375 = vunpack.c.h.b16 %v1883
    %v3376 = vunpack.c.l.b16 %v1884
    %v3377 = vunpack.c.h.b16 %v1884
    %v3378 = vunpack.c.l.b16 %v1885
    %v3379 = vunpack.c.h.b16 %v1885
    %v3380 = vunpack.c.l.b16 %v1886
    %v3381 = vunpack.c.h.b16 %v1886
    %v3382 = vunpack.c.l.b16 %v1887
    %v3383 = vunpack.c.h.b16 %v1887
    %v3384 = vunpack.c.l.b16 %v1888
    %v3385 = vunpack.c.h.b16 %v1888
    %v3386 = vunpack.c.l.b16 %v1889
    %v3387 = vunpack.c.h.b16 %v1889
    %v3388 = vunpack.c.l.b16 %v1890
    %v3389 = vunpack.c.h.b16 %v1890
    %v3390 = vunpack.c.l.b16 %v1891
    %v3391 = vunpack.c.h.b16 %v1891
    %v3392 = vunpack.c.l.b16 %v1892
    %v3393 = vunpack.c.h.b16 %v1892
    %v3394 = vunpack.c.l.b16 %v1893
    %v3395 = vunpack.c.h.b16 %v1893
    %v3396 = vunpack.c.l.b16 %v1894
    %v3397 = vunpack.c.h.b16 %v1894
    %v3398 = vunpack.c.l.b16 %v1895
    %v3399 = vunpack.c.h.b16 %v1895
    %v3400 = vunpack.c.l.b16 %v1896
    %v3401 = vunpack.c.h.b16 %v1896
    %v3402 = vunpack.c.l.b16 %v1897
    %v3403 = vunpack.c.h.b16 %v1897
    %v3404 = vunpack.c.l.b16 %v1898
    %v3405 = vunpack.c.h.b16 %v1898
    %v3406 = vunpack.c.l.b16 %v1899
    %v3407 = vunpack.c.h.b16 %v1899
    %v3408 = vunpack.c.l.b16 %v1900
    %v3409 = vunpack.c.h.b16 %v1900
    %v3410 = vunpack.c.l.b16 %v1901
    %v3411 = vunpack.c.h.b16 %v1901
    %v3412 = vunpack.c.l.b16 %v1902
    %v3413 = vunpack.c.h.b16 %v1902
    %v3414 = vunpack.c.l.b16 %v1903
    %v3415 = vunpack.c.h.b16 %v1903
    %v3416 = vunpack.c.l.b16 %v1904
    %v3417 = vunpack.c.h.b16 %v1904
    %v3418 = vunpack.c.l.b16 %v1905
    %v3419 = vunpack.c.h.b16 %v1905
    %v3420 = vunpack.c.l.b16 %v1906
    %v3421 = vunpack.c.h.b16 %v1906
    %v3422 = vunpack.c.l.b16 %v1907
    %v3423 = vunpack.c.h.b16 %v1907
    %v3424 = vunpack.c.l.b16 %v1908
    %v3425 = vunpack.c.h.b16 %v1908
    %v3426 = vunpack.c.l.b16 %v1909
    %v3427 = vunpack.c.h.b16 %v1909
    %v3428 = vunpack.c.l.b16 %v1910
    %v3429 = vunpack.c.h.b16 %v1910
    %v3430 = vunpack.c.l.b16 %v1911
    %v3431 = vunpack.c.h.b16 %v1911
    %v3432 = vunpack.c.l.b16 %v1912
    %v3433 = vunpack.c.h.b16 %v1912
    %v3434 = vunpack.c.l.b16 %v1913
    %v3435 = vunpack.c.h.b16 %v1913
    %v3436 = vunpack.c.l.b16 %v1914
    %v3437 = vunpack.c.h.b16 %v1914
    %v3438 = vunpack.c.l.b16 %v1915
    %v3439 = vunpack.c.h.b16 %v1915
    %v3440 = vunpack.c.l.b16 %v1916
    %v3441 = vunpack.c.h.b16 %v1916
    %v3442 = vunpack.c.l.b16 %v1917
    %v3443 = vunpack.c.h.b16 %v1917
    %v3444 = vunpack.c.l.b16 %v1918
    %v3445 = vunpack.c.h.b16 %v1918
    %v3446 = vunpack.c.l.b16 %v1919
    %v3447 = vunpack.c.h.b16 %v1919
    %v3448 = vunpack.c.l.b16 %v1920
    %v3449 = vunpack.c.h.b16 %v1920
    %v3450 = vunpack.c.l.b16 %v1921
    %v3451 = vunpack.c.h.b16 %v1921
    %v3452 = vunpack.c.l.b16 %v1922
    %v3453 = vunpack.c.h.b16 %v1922
    %v3454 = vunpack.c.l.b16 %v1923
    %v3455 = vunpack.c.h.b16 %v1923
    %v3456 = vunpack.c.l.b16 %v1924
    %v3457 = vunpack.c.h.b16 %v1924
    %v3458 = vunpack.c.l.b16 %v1925
    %v3459 = vunpack.c.h.b16 %v1925
    %v3460 = vunpack.c.l.b16 %v1926
    %v3461 = vunpack.c.h.b16 %v1926
    %v3462 = vunpack.c.l.b16 %v1927
    %v3463 = vunpack.c.h.b16 %v1927
    %v3464 = vunpack.c.l.b16 %v1928
    %v3465 = vunpack.c.h.b16 %v1928
    %v3466 = vunpack.c.l.b16 %v1929
    %v3467 = vunpack.c.h.b16 %v1929
    %v3468 = vunpack.c.l.b16 %v1930
    %v3469 = vunpack.c.h.b16 %v1930
    %v3470 = vunpack.c.l.b16 %v1931
    %v3471 = vunpack.c.h.b16 %v1931
    %v3472 = vunpack.c.l.b16 %v1932
    %v3473 = vunpack.c.h.b16 %v1932
    %v3474 = vunpack.c.l.b16 %v1933
    %v3475 = vunpack.c.h.b16 %v1933
    %v3476 = vunpack.c.l.b16 %v1934
    %v3477 = vunpack.c.h.b16 %v1934
    %v3478 = vunpack.c.l.b16 %v1935
    %v3479 = vunpack.c.h.b16 %v1935
    %v3480 = vunpack.c.l.b16 %v1936
    %v3481 = vunpack.c.h.b16 %v1936
    %v3482 = vunpack.c.l.b16 %v1937
    %v3483 = vunpack.c.h.b16 %v1937
    %v3484 = vunpack.c.l.b16 %v1938
    %v3485 = vunpack.c.h.b16 %v1938
    %v3486 = vunpack.c.l.b16 %v1939
    %v3487 = vunpack.c.h.b16 %v1939
    %v3488 = vunpack.c.l.b16 %v1940
    %v3489 = vunpack.c.h.b16 %v1940
    %v3490 = vunpack.c.l.b16 %v1941
    %v3491 = vunpack.c.h.b16 %v1941
    %v3492 = vunpack.c.l.b16 %v1942
    %v3493 = vunpack.c.h.b16 %v1942
    %v3494 = vunpack.c.l.b16 %v1943
    %v3495 = vunpack.c.h.b16 %v1943
    %v3496 = vunpack.c.l.b16 %v1944
    %v3497 = vunpack.c.h.b16 %v1944
    %v3498 = vunpack.c.l.b16 %v1945
    %v3499 = vunpack.c.h.b16 %v1945
    %v3500 = vpack.c.b16 %v2484, %v2476
    %v3501 = vpack.c.b16 %v2485, %v2477
    %v3502 = vpack.c.b16 %v2486, %v2478
    %v3503 = vpack.c.b16 %v2487, %v2479
    %v3504 = vpack.c.b16 %v2488, %v2480
    %v3505 = vpack.c.b16 %v2489, %v2481
    %v3506 = vpack.c.b16 %v2490, %v2482
    %v3507 = vpack.c.b16 %v2491, %v2483
    %v3508 = vpack.c.b16 %v2500, %v2492
    %v3509 = vpack.c.b16 %v2501, %v2493
    %v3510 = vpack.c.b16 %v2502, %v2494
    %v3511 = vpack.c.b16 %v2503, %v2495
    %v3512 = vpack.c.b16 %v2504, %v2496
    %v3513 = vpack.c.b16 %v2505, %v2497
    %v3514 = vpack.c.b16 %v2506, %v2498
    %v3515 = vpack.c.b16 %v2507, %v2499
    %v3516 = vpack.c.b16 %v2516, %v2508
    %v3517 = vpack.c.b16 %v2517, %v2509
    %v3518 = vpack.c.b16 %v2518, %v2510
    %v3519 = vpack.c.b16 %v2519, %v2511
    %v3520 = vpack.c.b16 %v2520, %v2512
    %v3521 = vpack.c.b16 %v2521, %v2513
    %v3522 = vpack.c.b16 %v2522, %v2514
    %v3523 = vpack.c.b16 %v2523, %v2515
    %v3524 = vpack.c.b16 %v2532, %v2524
    %v3525 = vpack.c.b16 %v2533, %v2525
    %v3526 = vpack.c.b16 %v2534, %v2526
    %v3527 = vpack.c.b16 %v2535, %v2527
    %v3528 = vpack.c.b16 %v2536, %v2528
    %v3529 = vpack.c.b16 %v2537, %v2529
    %v3530 = vpack.c.b16 %v2538, %v2530
    %v3531 = vpack.c.b16 %v2539, %v2531
    %v3532 = vpack.c.b16 %v2548, %v2540
    %v3533 = vpack.c.b16 %v2549, %v2541
    %v3534 = vpack.c.b16 %v2550, %v2542
    %v3535 = vpack.c.b16 %v2551, %v2543
    %v3536 = vpack.c.b16 %v2552, %v2544
    %v3537 = vpack.c.b16 %v2553, %v2545
    %v3538 = vpack.c.b16 %v2554, %v2546
    %v3539 = vpack.c.b16 %v2555, %v2547
    %v3540 = vpack.c.b16 %v2564, %v2556
    %v3541 = vpack.c.b16 %v2565, %v2557
    %v3542 = vpack.c.b16 %v2566, %v2558
    %v3543 = vpack.c.b16 %v2567, %v2559
    %v3544 = vpack.c.b16 %v2568, %v2560
    %v3545 = vpack.c.b16 %v2569, %v2561
    %v3546 = vpack.c.b16 %v2570, %v2562
    %v3547 = vpack.c.b16 %v2571, %v2563
    %v3548 = vpack.c.b16 %v2580, %v2572
    %v3549 = vpack.c.b16 %v2581, %v2573
    %v3550 = vpack.c.b16 %v2582, %v2574
    %v3551 = vpack.c.b16 %v2583, %v2575
    %v3552 = vpack.c.b16 %v2584, %v2576
    %v3553 = vpack.c.b16 %v2585, %v2577
    %v3554 = vpack.c.b16 %v2586, %v2578
    %v3555 = vpack.c.b16 %v2587, %v2579
    %v3556 = vpack.c.b16 %v2596, %v2588
    %v3557 = vpack.c.b16 %v2597, %v2589
    %v3558 = vpack.c.b16 %v2598, %v2590
    %v3559 = vpack.c.b16 %v2599, %v2591
    %v3560 = vpack.c.b16 %v2600, %v2592
    %v3561 = vpack.c.b16 %v2601, %v2593
    %v3562 = vpack.c.b16 %v2602, %v2594
    %v3563 = vpack.c.b16 %v2603, %v2595
    %v3564 = vpack.c.b16 %v2612, %v2604
    %v3565 = vpack.c.b16 %v2613, %v2605
    %v3566 = vpack.c.b16 %v2614, %v2606
    %v3567 = vpack.c.b16 %v2615, %v2607
    %v3568 = vpack.c.b16 %v2616, %v2608
    %v3569 = vpack.c.b16 %v2617, %v2609
    %v3570 = vpack.c.b16 %v2618, %v2610
    %v3571 = vpack.c.b16 %v2619, %v2611
    %v3572 = vpack.c.b16 %v2628, %v2620
    %v3573 = vpack.c.b16 %v2629, %v2621
    %v3574 = vpack.c.b16 %v2630, %v2622
    %v3575 = vpack.c.b16 %v2631, %v2623
    %v3576 = vpack.c.b16 %v2632, %v2624
    %v3577 = vpack.c.b16 %v2633, %v2625
    %v3578 = vpack.c.b16 %v2634, %v2626
    %v3579 = vpack.c.b16 %v2635, %v2627
    %v3580 = vpack.c.b16 %v2644, %v2636
    %v3581 = vpack.c.b16 %v2645, %v2637
    %v3582 = vpack.c.b16 %v2646, %v2638
    %v3583 = vpack.c.b16 %v2647, %v2639
    %v3584 = vpack.c.b16 %v2648, %v2640
    %v3585 = vpack.c.b16 %v2649, %v2641
    %v3586 = vpack.c.b16 %v2650, %v2642
    %v3587 = vpack.c.b16 %v2651, %v2643
    %v3588 = vpack.c.b16 %v2660, %v2652
    %v3589 = vpack.c.b16 %v2661, %v2653
    %v3590 = vpack.c.b16 %v2662, %v2654
    %v3591 = vpack.c.b16 %v2663, %v2655
    %v3592 = vpack.c.b16 %v2664, %v2656
    %v3593 = vpack.c.b16 %v2665, %v2657
    %v3594 = vpack.c.b16 %v2666, %v2658
    %v3595 = vpack.c.b16 %v2667, %v2659
    %v3596 = vpack.c.b16 %v2676, %v2668
    %v3597 = vpack.c.b16 %v2677, %v2669
    %v3598 = vpack.c.b16 %v2678, %v2670
    %v3599 = vpack.c.b16 %v2679, %v2671
    %v3600 = vpack.c.b16 %v2680, %v2672
    %v3601 = vpack.c.b16 %v2681, %v2673
    %v3602 = vpack.c.b16 %v2682, %v2674
    %v3603 = vpack.c.b16 %v2683, %v2675
    %v3604 = vpack.c.b16 %v2692, %v2684
    %v3605 = vpack.c.b16 %v2693, %v2685
    %v3606 = vpack.c.b16 %v2694, %v2686
    %v3607 = vpack.c.b16 %v2695, %v2687
    %v3608 = vpack.c.b16 %v2696, %v2688
    %v3609 = vpack.c.b16 %v2697, %v2689
    %v3610 = vpack.c.b16 %v2698, %v2690
    %v3611 = vpack.c.b16 %v2699, %v2691
    %v3612 = vpack.c.b16 %v2708, %v2700
    %v3613 = vpack.c.b16 %v2709, %v2701
    %v3614 = vpack.c.b16 %v2710, %v2702
    %v3615 = vpack.c.b16 %v2711, %v2703
    %v3616 = vpack.c.b16 %v2712, %v2704
    %v3617 = vpack.c.b16 %v2713, %v2705
    %v3618 = vpack.c.b16 %v2714, %v2706
    %v3619 = vpack.c.b16 %v2715, %v2707
    %v3620 = vpack.c.b16 %v2724, %v2716
    %v3621 = vpack.c.b16 %v2725, %v2717
    %v3622 = vpack.c.b16 %v2726, %v2718
    %v3623 = vpack.c.b16 %v2727, %v2719
    %v3624 = vpack.c.b16 %v2728, %v2720
    %v3625 = vpack.c.b16 %v2729, %v2721
    %v3626 = vpack.c.b16 %v2730, %v2722
    %v3627 = vpack.c.b16 %v2731, %v2723
    %v3628 = vpack.c.b16 %v2740, %v2732
    %v3629 = vpack.c.b16 %v2741, %v2733
    %v3630 = vpack.c.b16 %v2742, %v2734
    %v3631 = vpack.c.b16 %v2743, %v2735
    %v3632 = vpack.c.b16 %v2744, %v2736
    %v3633 = vpack.c.b16 %v2745, %v2737
    %v3634 = vpack.c.b16 %v2746, %v2738
    %v3635 = vpack.c.b16 %v2747, %v2739
    %v3636 = vpack.c.b16 %v2756, %v2748
    %v3637 = vpack.c.b16 %v2757, %v2749
    %v3638 = vpack.c.b16 %v2758, %v2750
    %v3639 = vpack.c.b16 %v2759, %v2751
    %v3640 = vpack.c.b16 %v2760, %v2752
    %v3641 = vpack.c.b16 %v2761, %v2753
    %v3642 = vpack.c.b16 %v2762, %v2754
    %v3643 = vpack.c.b16 %v2763, %v2755
    %v3644 = vpack.c.b16 %v2772, %v2764
    %v3645 = vpack.c.b16 %v2773, %v2765
    %v3646 = vpack.c.b16 %v2774, %v2766
    %v3647 = vpack.c.b16 %v2775, %v2767
    %v3648 = vpack.c.b16 %v2776, %v2768
    %v3649 = vpack.c.b16 %v2777, %v2769
    %v3650 = vpack.c.b16 %v2778, %v2770
    %v3651 = vpack.c.b16 %v2779, %v2771
    %v3652 = vpack.c.b16 %v2788, %v2780
    %v3653 = vpack.c.b16 %v2789, %v2781
    %v3654 = vpack.c.b16 %v2790, %v2782
    %v3655 = vpack.c.b16 %v2791, %v2783
    %v3656 = vpack.c.b16 %v2792, %v2784
    %v3657 = vpack.c.b16 %v2793, %v2785
    %v3658 = vpack.c.b16 %v2794, %v2786
    %v3659 = vpack.c.b16 %v2795, %v2787
    %v3660 = vpack.c.b16 %v2804, %v2796
    %v3661 = vpack.c.b16 %v2805, %v2797
    %v3662 = vpack.c.b16 %v2806, %v2798
    %v3663 = vpack.c.b16 %v2807, %v2799
    %v3664 = vpack.c.b16 %v2808, %v2800
    %v3665 = vpack.c.b16 %v2809, %v2801
    %v3666 = vpack.c.b16 %v2810, %v2802
    %v3667 = vpack.c.b16 %v2811, %v2803
    %v3668 = vpack.c.b16 %v2820, %v2812
    %v3669 = vpack.c.b16 %v2821, %v2813
    %v3670 = vpack.c.b16 %v2822, %v2814
    %v3671 = vpack.c.b16 %v2823, %v2815
    %v3672 = vpack.c.b16 %v2824, %v2816
    %v3673 = vpack.c.b16 %v2825, %v2817
    %v3674 = vpack.c.b16 %v2826, %v2818
    %v3675 = vpack.c.b16 %v2827, %v2819
    %v3676 = vpack.c.b16 %v2836, %v2828
    %v3677 = vpack.c.b16 %v2837, %v2829
    %v3678 = vpack.c.b16 %v2838, %v2830
    %v3679 = vpack.c.b16 %v2839, %v2831
    %v3680 = vpack.c.b16 %v2840, %v2832
    %v3681 = vpack.c.b16 %v2841, %v2833
    %v3682 = vpack.c.b16 %v2842, %v2834
    %v3683 = vpack.c.b16 %v2843, %v2835
    %v3684 = vpack.c.b16 %v2852, %v2844
    %v3685 = vpack.c.b16 %v2853, %v2845
    %v3686 = vpack.c.b16 %v2854, %v2846
    %v3687 = vpack.c.b16 %v2855, %v2847
    %v3688 = vpack.c.b16 %v2856, %v2848
    %v3689 = vpack.c.b16 %v2857, %v2849
    %v3690 = vpack.c.b16 %v2858, %v2850
    %v3691 = vpack.c.b16 %v2859, %v2851
    %v3692 = vpack.c.b16 %v2868, %v2860
    %v3693 = vpack.c.b16 %v2869, %v2861
    %v3694 = vpack.c.b16 %v2870, %v2862
    %v3695 = vpack.c.b16 %v2871, %v2863
    %v3696 = vpack.c.b16 %v2872, %v2864
    %v3697 = vpack.c.b16 %v2873, %v2865
    %v3698 = vpack.c.b16 %v2874, %v2866
    %v3699 = vpack.c.b16 %v2875, %v2867
    %v3700 = vpack.c.b16 %v2884, %v2876
    %v3701 = vpack.c.b16 %v2885, %v2877
    %v3702 = vpack.c.b16 %v2886, %v2878
    %v3703 = vpack.c.b16 %v2887, %v2879
    %v3704 = vpack.c.b16 %v2888, %v2880
    %v3705 = vpack.c.b16 %v2889, %v2881
    %v3706 = vpack.c.b16 %v2890, %v2882
    %v3707 = vpack.c.b16 %v2891, %v2883
    %v3708 = vpack.c.b16 %v2900, %v2892
    %v3709 = vpack.c.b16 %v2901, %v2893
    %v3710 = vpack.c.b16 %v2902, %v2894
    %v3711 = vpack.c.b16 %v2903, %v2895
    %v3712 = vpack.c.b16 %v2904, %v2896
    %v3713 = vpack.c.b16 %v2905, %v2897
    %v3714 = vpack.c.b16 %v2906, %v2898
    %v3715 = vpack.c.b16 %v2907, %v2899
    %v3716 = vpack.c.b16 %v2916, %v2908
    %v3717 = vpack.c.b16 %v2917, %v2909
    %v3718 = vpack.c.b16 %v2918, %v2910
    %v3719 = vpack.c.b16 %v2919, %v2911
    %v3720 = vpack.c.b16 %v2920, %v2912
    %v3721 = vpack.c.b16 %v2921, %v2913
    %v3722 = vpack.c.b16 %v2922, %v2914
    %v3723 = vpack.c.b16 %v2923, %v2915
    %v3724 = vpack.c.b16 %v2932, %v2924
    %v3725 = vpack.c.b16 %v2933, %v2925
    %v3726 = vpack.c.b16 %v2934, %v2926
    %v3727 = vpack.c.b16 %v2935, %v2927
    %v3728 = vpack.c.b16 %v2936, %v2928
    %v3729 = vpack.c.b16 %v2937, %v2929
    %v3730 = vpack.c.b16 %v2938, %v2930
    %v3731 = vpack.c.b16 %v2939, %v2931
    %v3732 = vpack.c.b16 %v2948, %v2940
    %v3733 = vpack.c.b16 %v2949, %v2941
    %v3734 = vpack.c.b16 %v2950, %v2942
    %v3735 = vpack.c.b16 %v2951, %v2943
    %v3736 = vpack.c.b16 %v2952, %v2944
    %v3737 = vpack.c.b16 %v2953, %v2945
    %v3738 = vpack.c.b16 %v2954, %v2946
    %v3739 = vpack.c.b16 %v2955, %v2947
    %v3740 = vpack.c.b16 %v2964, %v2956
    %v3741 = vpack.c.b16 %v2965, %v2957
    %v3742 = vpack.c.b16 %v2966, %v2958
    %v3743 = vpack.c.b16 %v2967, %v2959
    %v3744 = vpack.c.b16 %v2968, %v2960
    %v3745 = vpack.c.b16 %v2969, %v2961
    %v3746 = vpack.c.b16 %v2970, %v2962
    %v3747 = vpack.c.b16 %v2971, %v2963
    %v3748 = vpack.c.b16 %v2980, %v2972
    %v3749 = vpack.c.b16 %v2981, %v2973
    %v3750 = vpack.c.b16 %v2982, %v2974
    %v3751 = vpack.c.b16 %v2983, %v2975
    %v3752 = vpack.c.b16 %v2984, %v2976
    %v3753 = vpack.c.b16 %v2985, %v2977
    %v3754 = vpack.c.b16 %v2986, %v2978
    %v3755 = vpack.c.b16 %v2987, %v2979
    %v3756 = vpack.c.b16 %v2996, %v2988
    %v3757 = vpack.c.b16 %v2997, %v2989
    %v3758 = vpack.c.b16 %v2998, %v2990
    %v3759 = vpack.c.b16 %v2999, %v2991
    %v3760 = vpack.c.b16 %v3000, %v2992
    %v3761 = vpack.c.b16 %v3001, %v2993
    %v3762 = vpack.c.b16 %v3002, %v2994
    %v3763 = vpack.c.b16 %v3003, %v2995
    %v3764 = vpack.c.b16 %v3012, %v3004
    %v3765 = vpack.c.b16 %v3013, %v3005
    %v3766 = vpack.c.b16 %v3014, %v3006
    %v3767 = vpack.c.b16 %v3015, %v3007
    %v3768 = vpack.c.b16 %v3016, %v3008
    %v3769 = vpack.c.b16 %v3017, %v3009
    %v3770 = vpack.c.b16 %v3018, %v3010
    %v3771 = vpack.c.b16 %v3019, %v3011
    %v3772 = vpack.c.b16 %v3028, %v3020
    %v3773 = vpack.c.b16 %v3029, %v3021
    %v3774 = vpack.c.b16 %v3030, %v3022
    %v3775 = vpack.c.b16 %v3031, %v3023
    %v3776 = vpack.c.b16 %v3032, %v3024
    %v3777 = vpack.c.b16 %v3033, %v3025
    %v3778 = vpack.c.b16 %v3034, %v3026
    %v3779 = vpack.c.b16 %v3035, %v3027
    %v3780 = vpack.c.b16 %v3044, %v3036
    %v3781 = vpack.c.b16 %v3045, %v3037
    %v3782 = vpack.c.b16 %v3046, %v3038
    %v3783 = vpack.c.b16 %v3047, %v3039
    %v3784 = vpack.c.b16 %v3048, %v3040
    %v3785 = vpack.c.b16 %v3049, %v3041
    %v3786 = vpack.c.b16 %v3050, %v3042
    %v3787 = vpack.c.b16 %v3051, %v3043
    %v3788 = vpack.c.b16 %v3060, %v3052
    %v3789 = vpack.c.b16 %v3061, %v3053
    %v3790 = vpack.c.b16 %v3062, %v3054
    %v3791 = vpack.c.b16 %v3063, %v3055
    %v3792 = vpack.c.b16 %v3064, %v3056
    %v3793 = vpack.c.b16 %v3065, %v3057
    %v3794 = vpack.c.b16 %v3066, %v3058
    %v3795 = vpack.c.b16 %v3067, %v3059
    %v3796 = vpack.c.b16 %v3076, %v3068
    %v3797 = vpack.c.b16 %v3077, %v3069
    %v3798 = vpack.c.b16 %v3078, %v3070
    %v3799 = vpack.c.b16 %v3079, %v3071
    %v3800 = vpack.c.b16 %v3080, %v3072
    %v3801 = vpack.c.b16 %v3081, %v3073
    %v3802 = vpack.c.b16 %v3082, %v3074
    %v3803 = vpack.c.b16 %v3083, %v3075
    %v3804 = vpack.c.b16 %v3092, %v3084
    %v3805 = vpack.c.b16 %v3093, %v3085
    %v3806 = vpack.c.b16 %v3094, %v3086
    %v3807 = vpack.c.b16 %v3095, %v3087
    %v3808 = vpack.c.b16 %v3096, %v3088
    %v3809 = vpack.c.b16 %v3097, %v3089
    %v3810 = vpack.c.b16 %v3098, %v3090
    %v3811 = vpack.c.b16 %v3099, %v3091
    %v3812 = vpack.c.b16 %v3108, %v3100
    %v3813 = vpack.c.b16 %v3109, %v3101
    %v3814 = vpack.c.b16 %v3110, %v3102
    %v3815 = vpack.c.b16 %v3111, %v3103
    %v3816 = vpack.c.b16 %v3112, %v3104
    %v3817 = vpack.c.b16 %v3113, %v3105
    %v3818 = vpack.c.b16 %v3114, %v3106
    %v3819 = vpack.c.b16 %v3115, %v3107
    %v3820 = vpack.c.b16 %v3124, %v3116
    %v3821 = vpack.c.b16 %v3125, %v3117
    %v3822 = vpack.c.b16 %v3126, %v3118
    %v3823 = vpack.c.b16 %v3127, %v3119
    %v3824 = vpack.c.b16 %v3128, %v3120
    %v3825 = vpack.c.b16 %v3129, %v3121
    %v3826 = vpack.c.b16 %v3130, %v3122
    %v3827 = vpack.c.b16 %v3131, %v3123
    %v3828 = vpack.c.b16 %v3140, %v3132
    %v3829 = vpack.c.b16 %v3141, %v3133
    %v3830 = vpack.c.b16 %v3142, %v3134
    %v3831 = vpack.c.b16 %v3143, %v3135
    %v3832 = vpack.c.b16 %v3144, %v3136
    %v3833 = vpack.c.b16 %v3145, %v3137
    %v3834 = vpack.c.b16 %v3146, %v3138
    %v3835 = vpack.c.b16 %v3147, %v3139
    %v3836 = vpack.c.b16 %v3156, %v3148
    %v3837 = vpack.c.b16 %v3157, %v3149
    %v3838 = vpack.c.b16 %v3158, %v3150
    %v3839 = vpack.c.b16 %v3159, %v3151
    %v3840 = vpack.c.b16 %v3160, %v3152
    %v3841 = vpack.c.b16 %v3161, %v3153
    %v3842 = vpack.c.b16 %v3162, %v3154
    %v3843 = vpack.c.b16 %v3163, %v3155
    %v3844 = vpack.c.b16 %v3172, %v3164
    %v3845 = vpack.c.b16 %v3173, %v3165
    %v3846 = vpack.c.b16 %v3174, %v3166
    %v3847 = vpack.c.b16 %v3175, %v3167
    %v3848 = vpack.c.b16 %v3176, %v3168
    %v3849 = vpack.c.b16 %v3177, %v3169
    %v3850 = vpack.c.b16 %v3178, %v3170
    %v3851 = vpack.c.b16 %v3179, %v3171
    %v3852 = vpack.c.b16 %v3188, %v3180
    %v3853 = vpack.c.b16 %v3189, %v3181
    %v3854 = vpack.c.b16 %v3190, %v3182
    %v3855 = vpack.c.b16 %v3191, %v3183
    %v3856 = vpack.c.b16 %v3192, %v3184
    %v3857 = vpack.c.b16 %v3193, %v3185
    %v3858 = vpack.c.b16 %v3194, %v3186
    %v3859 = vpack.c.b16 %v3195, %v3187
    %v3860 = vpack.c.b16 %v3204, %v3196
    %v3861 = vpack.c.b16 %v3205, %v3197
    %v3862 = vpack.c.b16 %v3206, %v3198
    %v3863 = vpack.c.b16 %v3207, %v3199
    %v3864 = vpack.c.b16 %v3208, %v3200
    %v3865 = vpack.c.b16 %v3209, %v3201
    %v3866 = vpack.c.b16 %v3210, %v3202
    %v3867 = vpack.c.b16 %v3211, %v3203
    %v3868 = vpack.c.b16 %v3220, %v3212
    %v3869 = vpack.c.b16 %v3221, %v3213
    %v3870 = vpack.c.b16 %v3222, %v3214
    %v3871 = vpack.c.b16 %v3223, %v3215
    %v3872 = vpack.c.b16 %v3224, %v3216
    %v3873 = vpack.c.b16 %v3225, %v3217
    %v3874 = vpack.c.b16 %v3226, %v3218
    %v3875 = vpack.c.b16 %v3227, %v3219
    %v3876 = vpack.c.b16 %v3236, %v3228
    %v3877 = vpack.c.b16 %v3237, %v3229
    %v3878 = vpack.c.b16 %v3238, %v3230
    %v3879 = vpack.c.b16 %v3239, %v3231
    %v3880 = vpack.c.b16 %v3240, %v3232
    %v3881 = vpack.c.b16 %v3241, %v3233
    %v3882 = vpack.c.b16 %v3242, %v3234
    %v3883 = vpack.c.b16 %v3243, %v3235
    %v3884 = vpack.c.b16 %v3252, %v3244
    %v3885 = vpack.c.b16 %v3253, %v3245
    %v3886 = vpack.c.b16 %v3254, %v3246
    %v3887 = vpack.c.b16 %v3255, %v3247
    %v3888 = vpack.c.b16 %v3256, %v3248
    %v3889 = vpack.c.b16 %v3257, %v3249
    %v3890 = vpack.c.b16 %v3258, %v3250
    %v3891 = vpack.c.b16 %v3259, %v3251
    %v3892 = vpack.c.b16 %v3268, %v3260
    %v3893 = vpack.c.b16 %v3269, %v3261
    %v3894 = vpack.c.b16 %v3270, %v3262
    %v3895 = vpack.c.b16 %v3271, %v3263
    %v3896 = vpack.c.b16 %v3272, %v3264
    %v3897 = vpack.c.b16 %v3273, %v3265
    %v3898 = vpack.c.b16 %v3274, %v3266
    %v3899 = vpack.c.b16 %v3275, %v3267
    %v3900 = vpack.c.b16 %v3284, %v3276
    %v3901 = vpack.c.b16 %v3285, %v3277
    %v3902 = vpack.c.b16 %v3286, %v3278
    %v3903 = vpack.c.b16 %v3287, %v3279
    %v3904 = vpack.c.b16 %v3288, %v3280
    %v3905 = vpack.c.b16 %v3289, %v3281
    %v3906 = vpack.c.b16 %v3290, %v3282
    %v3907 = vpack.c.b16 %v3291, %v3283
    %v3908 = vpack.c.b16 %v3300, %v3292
    %v3909 = vpack.c.b16 %v3301, %v3293
    %v3910 = vpack.c.b16 %v3302, %v3294
    %v3911 = vpack.c.b16 %v3303, %v3295
    %v3912 = vpack.c.b16 %v3304, %v3296
    %v3913 = vpack.c.b16 %v3305, %v3297
    %v3914 = vpack.c.b16 %v3306, %v3298
    %v3915 = vpack.c.b16 %v3307, %v3299
    %v3916 = vpack.c.b16 %v3316, %v3308
    %v3917 = vpack.c.b16 %v3317, %v3309
    %v3918 = vpack.c.b16 %v3318, %v3310
    %v3919 = vpack.c.b16 %v3319, %v3311
    %v3920 = vpack.c.b16 %v3320, %v3312
    %v3921 = vpack.c.b16 %v3321, %v3313
    %v3922 = vpack.c.b16 %v3322, %v3314
    %v3923 = vpack.c.b16 %v3323, %v3315
    %v3924 = vpack.c.b16 %v3332, %v3324
    %v3925 = vpack.c.b16 %v3333, %v3325
    %v3926 = vpack.c.b16 %v3334, %v3326
    %v3927 = vpack.c.b16 %v3335, %v3327
    %v3928 = vpack.c.b16 %v3336, %v3328
    %v3929 = vpack.c.b16 %v3337, %v3329
    %v3930 = vpack.c.b16 %v3338, %v3330
    %v3931 = vpack.c.b16 %v3339, %v3331
    %v3932 = vpack.c.b16 %v3348, %v3340
    %v3933 = vpack.c.b16 %v3349, %v3341
    %v3934 = vpack.c.b16 %v3350, %v3342
    %v3935 = vpack.c.b16 %v3351, %v3343
    %v3936 = vpack.c.b16 %v3352, %v3344
    %v3937 = vpack.c.b16 %v3353, %v3345
    %v3938 = vpack.c.b16 %v3354, %v3346
    %v3939 = vpack.c.b16 %v3355, %v3347
    %v3940 = vpack.c.b16 %v3364, %v3356
    %v3941 = vpack.c.b16 %v3365, %v3357
    %v3942 = vpack.c.b16 %v3366, %v3358
    %v3943 = vpack.c.b16 %v3367, %v3359
    %v3944 = vpack.c.b16 %v3368, %v3360
    %v3945 = vpack.c.b16 %v3369, %v3361
    %v3946 = vpack.c.b16 %v3370, %v3362
    %v3947 = vpack.c.b16 %v3371, %v3363
    %v3948 = vpack.c.b16 %v3380, %v3372
    %v3949 = vpack.c.b16 %v3381, %v3373
    %v3950 = vpack.c.b16 %v3382, %v3374
    %v3951 = vpack.c.b16 %v3383, %v3375
    %v3952 = vpack.c.b16 %v3384, %v3376
    %v3953 = vpack.c.b16 %v3385, %v3377
    %v3954 = vpack.c.b16 %v3386, %v3378
    %v3955 = vpack.c.b16 %v3387, %v3379
    %v3956 = vpack.c.b16 %v3396, %v3388
    %v3957 = vpack.c.b16 %v3397, %v3389
    %v3958 = vpack.c.b16 %v3398, %v3390
    %v3959 = vpack.c.b16 %v3399, %v3391
    %v3960 = vpack.c.b16 %v3400, %v3392
    %v3961 = vpack.c.b16 %v3401, %v3393
    %v3962 = vpack.c.b16 %v3402, %v3394
    %v3963 = vpack.c.b16 %v3403, %v3395
    %v3964 = vpack.c.b16 %v3412, %v3404
    %v3965 = vpack.c.b16 %v3413, %v3405
    %v3966 = vpack.c.b16 %v3414, %v3406
    %v3967 = vpack.c.b16 %v3415, %v3407
    %v3968 = vpack.c.b16 %v3416, %v3408
    %v3969 = vpack.c.b16 %v3417, %v3409
    %v3970 = vpack.c.b16 %v3418, %v3410
    %v3971 = vpack.c.b16 %v3419, %v3411
    %v3972 = vpack.c.b16 %v3428, %v3420
    %v3973 = vpack.c.b16 %v3429, %v3421
    %v3974 = vpack.c.b16 %v3430, %v3422
    %v3975 = vpack.c.b16 %v3431, %v3423
    %v3976 = vpack.c.b16 %v3432, %v3424
    %v3977 = vpack.c.b16 %v3433, %v3425
    %v3978 = vpack.c.b16 %v3434, %v3426
    %v3979 = vpack.c.b16 %v3435, %v3427
    %v3980 = vpack.c.b16 %v3444, %v3436
    %v3981 = vpack.c.b16 %v3445, %v3437
    %v3982 = vpack.c.b16 %v3446, %v3438
    %v3983 = vpack.c.b16 %v3447, %v3439
    %v3984 = vpack.c.b16 %v3448, %v3440
    %v3985 = vpack.c.b16 %v3449, %v3441
    %v3986 = vpack.c.b16 %v3450, %v3442
    %v3987 = vpack.c.b16 %v3451, %v3443
    %v3988 = vpack.c.b16 %v3460, %v3452
    %v3989 = vpack.c.b16 %v3461, %v3453
    %v3990 = vpack.c.b16 %v3462, %v3454
    %v3991 = vpack.c.b16 %v3463, %v3455
    %v3992 = vpack.c.b16 %v3464, %v3456
    %v3993 = vpack.c.b16 %v3465, %v3457
    %v3994 = vpack.c.b16 %v3466, %v3458
    %v3995 = vpack.c.b16 %v3467, %v3459
    %v3996 = vpack.c.b16 %v3476, %v3468
    %v3997 = vpack.c.b16 %v3477, %v3469
    %v3998 = vpack.c.b16 %v3478, %v3470
    %v3999 = vpack.c.b16 %v3479, %v3471
    %v4000 = vpack.c.b16 %v3480, %v3472
    %v4001 = vpack.c.b16 %v3481, %v3473
    %v4002 = vpack.c.b16 %v3482, %v3474
    %v4003 = vpack.c.b16 %v3483, %v3475
    %v4004 = vpack.c.b16 %v3492, %v3484
    %v4005 = vpack.c.b16 %v3493, %v3485
    %v4006 = vpack.c.b16 %v3494, %v3486
    %v4007 = vpack.c.b16 %v3495, %v3487
    %v4008 = vpack.c.b16 %v3496, %v3488
    %v4009 = vpack.c.b16 %v3497, %v3489
    %v4010 = vpack.c.b16 %v3498, %v3490
    %v4011 = vpack.c.b16 %v3499, %v3491
    %4524 = vmatpush.bf16.msra.mxu0 %v3556
    %4525 = vmatpush.bf16.msra.mxu0 %v3548
    %4526 = vmatpush.bf16.msra.mxu0 %v3540
    %4527 = vmatpush.bf16.msra.mxu0 %v3532
    %4528 = vmatpush.bf16.msra.mxu0 %v3524
    %4529 = vmatpush.bf16.msra.mxu0 %v3516
    %4530 = vmatpush.bf16.msra.mxu0 %v3508
    %4531 = vmatpush.bf16.msra.mxu0 %v3500
    %4532 = vmatmul.bf16.gmra.mxu0 %v1426
    %v4533 = vpop.f32.mrf.mxu0
    %v4534 = vadd.f32 %v1948, %v4533
    %v4535 = vpop.f32.mrf.mxu0
    %4536 = vdwg.mxu0
    %4537 = vmatpush.bf16.msra.mxu0 %v3620
    %4538 = vmatpush.bf16.msra.mxu0 %v3612
    %4539 = vmatpush.bf16.msra.mxu0 %v3604
    %4540 = vmatpush.bf16.msra.mxu0 %v3596
    %4541 = vmatpush.bf16.msra.mxu0 %v3588
    %4542 = vmatpush.bf16.msra.mxu0 %v3580
    %4543 = vmatpush.bf16.msra.mxu0 %v3572
    %4544 = vmatpush.bf16.msra.mxu0 %v3564
    %4545 = vmatmul.bf16.gmra.mxu0 %v1427
    %v4546 = vpop.f32.mrf.mxu0
    %v4547 = vadd.f32 %v4534, %v4546
    %v4548 = vpop.f32.mrf.mxu0
    %4549 = vdwg.mxu0
    %4550 = vmatpush.bf16.msra.mxu0 %v3684
    %4551 = vmatpush.bf16.msra.mxu0 %v3676
    %4552 = vmatpush.bf16.msra.mxu0 %v3668
    %4553 = vmatpush.bf16.msra.mxu0 %v3660
    %4554 = vmatpush.bf16.msra.mxu0 %v3652
    %4555 = vmatpush.bf16.msra.mxu0 %v3644
    %4556 = vmatpush.bf16.msra.mxu0 %v3636
    %4557 = vmatpush.bf16.msra.mxu0 %v3628
    %4558 = vmatmul.bf16.gmra.mxu0 %v1428
    %v4559 = vpop.f32.mrf.mxu0
    %v4560 = vadd.f32 %v4547, %v4559
    %v4561 = vpop.f32.mrf.mxu0
    %4562 = vdwg.mxu0
    %4563 = vmatpush.bf16.msra.mxu0 %v3748
    %4564 = vmatpush.bf16.msra.mxu0 %v3740
    %4565 = vmatpush.bf16.msra.mxu0 %v3732
    %4566 = vmatpush.bf16.msra.mxu0 %v3724
    %4567 = vmatpush.bf16.msra.mxu0 %v3716
    %4568 = vmatpush.bf16.msra.mxu0 %v3708
    %4569 = vmatpush.bf16.msra.mxu0 %v3700
    %4570 = vmatpush.bf16.msra.mxu0 %v3692
    %4571 = vmatmul.bf16.gmra.mxu0 %v1429
    %v4572 = vpop.f32.mrf.mxu0
    %v4573 = vadd.f32 %v4560, %v4572
    %v4574 = vpop.f32.mrf.mxu0
    %4575 = vdwg.mxu0
    %4576 = vmatpush.bf16.msra.mxu0 %v3812
    %4577 = vmatpush.bf16.msra.mxu0 %v3804
    %4578 = vmatpush.bf16.msra.mxu0 %v3796
    %4579 = vmatpush.bf16.msra.mxu0 %v3788
    %4580 = vmatpush.bf16.msra.mxu0 %v3780
    %4581 = vmatpush.bf16.msra.mxu0 %v3772
    %4582 = vmatpush.bf16.msra.mxu0 %v3764
    %4583 = vmatpush.bf16.msra.mxu0 %v3756
    %4584 = vmatmul.bf16.gmra.mxu0 %v1430
    %v4585 = vpop.f32.mrf.mxu0
    %v4586 = vadd.f32 %v4573, %v4585
    %v4587 = vpop.f32.mrf.mxu0
    %4588 = vdwg.mxu0
    %4589 = vmatpush.bf16.msra.mxu0 %v3876
    %4590 = vmatpush.bf16.msra.mxu0 %v3868
    %4591 = vmatpush.bf16.msra.mxu0 %v3860
    %4592 = vmatpush.bf16.msra.mxu0 %v3852
    %4593 = vmatpush.bf16.msra.mxu0 %v3844
    %4594 = vmatpush.bf16.msra.mxu0 %v3836
    %4595 = vmatpush.bf16.msra.mxu0 %v3828
    %4596 = vmatpush.bf16.msra.mxu0 %v3820
    %4597 = vmatmul.bf16.gmra.mxu0 %v1431
    %v4598 = vpop.f32.mrf.mxu0
    %v4599 = vadd.f32 %v4586, %v4598
    %v4600 = vpop.f32.mrf.mxu0
    %4601 = vdwg.mxu0
    %4602 = vmatpush.bf16.msra.mxu0 %v3940
    %4603 = vmatpush.bf16.msra.mxu0 %v3932
    %4604 = vmatpush.bf16.msra.mxu0 %v3924
    %4605 = vmatpush.bf16.msra.mxu0 %v3916
    %4606 = vmatpush.bf16.msra.mxu0 %v3908
    %4607 = vmatpush.bf16.msra.mxu0 %v3900
    %4608 = vmatpush.bf16.msra.mxu0 %v3892
    %4609 = vmatpush.bf16.msra.mxu0 %v3884
    %4610 = vmatmul.bf16.gmra.mxu0 %v1432
    %v4611 = vpop.f32.mrf.mxu0
    %v4612 = vadd.f32 %v4599, %v4611
    %v4613 = vpop.f32.mrf.mxu0
    %4614 = vdwg.mxu0
    %4615 = vmatpush.bf16.msra.mxu0 %v4004
    %4616 = vmatpush.bf16.msra.mxu0 %v3996
    %4617 = vmatpush.bf16.msra.mxu0 %v3988
    %4618 = vmatpush.bf16.msra.mxu0 %v3980
    %4619 = vmatpush.bf16.msra.mxu0 %v3972
    %4620 = vmatpush.bf16.msra.mxu0 %v3964
    %4621 = vmatpush.bf16.msra.mxu0 %v3956
    %4622 = vmatpush.bf16.msra.mxu0 %v3948
    %4623 = vmatmul.bf16.gmra.mxu0 %v1433
    %v4624 = vpop.f32.mrf.mxu0
    %v4625 = vadd.f32 %v4612, %v4624
    %v4626 = vpop.f32.mrf.mxu0
    %4627 = vdwg.mxu0
    %4628 = vmatpush.bf16.msra.mxu0 %v3557
    %4629 = vmatpush.bf16.msra.mxu0 %v3549
    %4630 = vmatpush.bf16.msra.mxu0 %v3541
    %4631 = vmatpush.bf16.msra.mxu0 %v3533
    %4632 = vmatpush.bf16.msra.mxu0 %v3525
    %4633 = vmatpush.bf16.msra.mxu0 %v3517
    %4634 = vmatpush.bf16.msra.mxu0 %v3509
    %4635 = vmatpush.bf16.msra.mxu0 %v3501
    %4636 = vmatmul.bf16.gmra.mxu0 %v1426
    %v4637 = vpop.f32.mrf.mxu0
    %v4638 = vadd.f32 %v1949, %v4637
    %v4639 = vpop.f32.mrf.mxu0
    %4640 = vdwg.mxu0
    %4641 = vmatpush.bf16.msra.mxu0 %v3621
    %4642 = vmatpush.bf16.msra.mxu0 %v3613
    %4643 = vmatpush.bf16.msra.mxu0 %v3605
    %4644 = vmatpush.bf16.msra.mxu0 %v3597
    %4645 = vmatpush.bf16.msra.mxu0 %v3589
    %4646 = vmatpush.bf16.msra.mxu0 %v3581
    %4647 = vmatpush.bf16.msra.mxu0 %v3573
    %4648 = vmatpush.bf16.msra.mxu0 %v3565
    %4649 = vmatmul.bf16.gmra.mxu0 %v1427
    %v4650 = vpop.f32.mrf.mxu0
    %v4651 = vadd.f32 %v4638, %v4650
    %v4652 = vpop.f32.mrf.mxu0
    %4653 = vdwg.mxu0
    %4654 = vmatpush.bf16.msra.mxu0 %v3685
    %4655 = vmatpush.bf16.msra.mxu0 %v3677
    %4656 = vmatpush.bf16.msra.mxu0 %v3669
    %4657 = vmatpush.bf16.msra.mxu0 %v3661
    %4658 = vmatpush.bf16.msra.mxu0 %v3653
    %4659 = vmatpush.bf16.msra.mxu0 %v3645
    %4660 = vmatpush.bf16.msra.mxu0 %v3637
    %4661 = vmatpush.bf16.msra.mxu0 %v3629
    %4662 = vmatmul.bf16.gmra.mxu0 %v1428
    %v4663 = vpop.f32.mrf.mxu0
    %v4664 = vadd.f32 %v4651, %v4663
    %v4665 = vpop.f32.mrf.mxu0
    %4666 = vdwg.mxu0
    %4667 = vmatpush.bf16.msra.mxu0 %v3749
    %4668 = vmatpush.bf16.msra.mxu0 %v3741
    %4669 = vmatpush.bf16.msra.mxu0 %v3733
    %4670 = vmatpush.bf16.msra.mxu0 %v3725
    %4671 = vmatpush.bf16.msra.mxu0 %v3717
    %4672 = vmatpush.bf16.msra.mxu0 %v3709
    %4673 = vmatpush.bf16.msra.mxu0 %v3701
    %4674 = vmatpush.bf16.msra.mxu0 %v3693
    %4675 = vmatmul.bf16.gmra.mxu0 %v1429
    %v4676 = vpop.f32.mrf.mxu0
    %v4677 = vadd.f32 %v4664, %v4676
    %v4678 = vpop.f32.mrf.mxu0
    %4679 = vdwg.mxu0
    %4680 = vmatpush.bf16.msra.mxu0 %v3813
    %4681 = vmatpush.bf16.msra.mxu0 %v3805
    %4682 = vmatpush.bf16.msra.mxu0 %v3797
    %4683 = vmatpush.bf16.msra.mxu0 %v3789
    %4684 = vmatpush.bf16.msra.mxu0 %v3781
    %4685 = vmatpush.bf16.msra.mxu0 %v3773
    %4686 = vmatpush.bf16.msra.mxu0 %v3765
    %4687 = vmatpush.bf16.msra.mxu0 %v3757
    %4688 = vmatmul.bf16.gmra.mxu0 %v1430
    %v4689 = vpop.f32.mrf.mxu0
    %v4690 = vadd.f32 %v4677, %v4689
    %v4691 = vpop.f32.mrf.mxu0
    %4692 = vdwg.mxu0
    %4693 = vmatpush.bf16.msra.mxu0 %v3877
    %4694 = vmatpush.bf16.msra.mxu0 %v3869
    %4695 = vmatpush.bf16.msra.mxu0 %v3861
    %4696 = vmatpush.bf16.msra.mxu0 %v3853
    %4697 = vmatpush.bf16.msra.mxu0 %v3845
    %4698 = vmatpush.bf16.msra.mxu0 %v3837
    %4699 = vmatpush.bf16.msra.mxu0 %v3829
    %4700 = vmatpush.bf16.msra.mxu0 %v3821
    %4701 = vmatmul.bf16.gmra.mxu0 %v1431
    %v4702 = vpop.f32.mrf.mxu0
    %v4703 = vadd.f32 %v4690, %v4702
    %v4704 = vpop.f32.mrf.mxu0
    %4705 = vdwg.mxu0
    %4706 = vmatpush.bf16.msra.mxu0 %v3941
    %4707 = vmatpush.bf16.msra.mxu0 %v3933
    %4708 = vmatpush.bf16.msra.mxu0 %v3925
    %4709 = vmatpush.bf16.msra.mxu0 %v3917
    %4710 = vmatpush.bf16.msra.mxu0 %v3909
    %4711 = vmatpush.bf16.msra.mxu0 %v3901
    %4712 = vmatpush.bf16.msra.mxu0 %v3893
    %4713 = vmatpush.bf16.msra.mxu0 %v3885
    %4714 = vmatmul.bf16.gmra.mxu0 %v1432
    %v4715 = vpop.f32.mrf.mxu0
    %v4716 = vadd.f32 %v4703, %v4715
    %v4717 = vpop.f32.mrf.mxu0
    %4718 = vdwg.mxu0
    %4719 = vmatpush.bf16.msra.mxu0 %v4005
    %4720 = vmatpush.bf16.msra.mxu0 %v3997
    %4721 = vmatpush.bf16.msra.mxu0 %v3989
    %4722 = vmatpush.bf16.msra.mxu0 %v3981
    %4723 = vmatpush.bf16.msra.mxu0 %v3973
    %4724 = vmatpush.bf16.msra.mxu0 %v3965
    %4725 = vmatpush.bf16.msra.mxu0 %v3957
    %4726 = vmatpush.bf16.msra.mxu0 %v3949
    %4727 = vmatmul.bf16.gmra.mxu0 %v1433
    %v4728 = vpop.f32.mrf.mxu0
    %v4729 = vadd.f32 %v4716, %v4728
    %v4730 = vpop.f32.mrf.mxu0
    %4731 = vdwg.mxu0
    %4732 = vmatpush.bf16.msra.mxu0 %v3558
    %4733 = vmatpush.bf16.msra.mxu0 %v3550
    %4734 = vmatpush.bf16.msra.mxu0 %v3542
    %4735 = vmatpush.bf16.msra.mxu0 %v3534
    %4736 = vmatpush.bf16.msra.mxu0 %v3526
    %4737 = vmatpush.bf16.msra.mxu0 %v3518
    %4738 = vmatpush.bf16.msra.mxu0 %v3510
    %4739 = vmatpush.bf16.msra.mxu0 %v3502
    %4740 = vmatmul.bf16.gmra.mxu0 %v1426
    %v4741 = vpop.f32.mrf.mxu0
    %v4742 = vadd.f32 %v1950, %v4741
    %v4743 = vpop.f32.mrf.mxu0
    %4744 = vdwg.mxu0
    %4745 = vmatpush.bf16.msra.mxu0 %v3622
    %4746 = vmatpush.bf16.msra.mxu0 %v3614
    %4747 = vmatpush.bf16.msra.mxu0 %v3606
    %4748 = vmatpush.bf16.msra.mxu0 %v3598
    %4749 = vmatpush.bf16.msra.mxu0 %v3590
    %4750 = vmatpush.bf16.msra.mxu0 %v3582
    %4751 = vmatpush.bf16.msra.mxu0 %v3574
    %4752 = vmatpush.bf16.msra.mxu0 %v3566
    %4753 = vmatmul.bf16.gmra.mxu0 %v1427
    %v4754 = vpop.f32.mrf.mxu0
    %v4755 = vadd.f32 %v4742, %v4754
    %v4756 = vpop.f32.mrf.mxu0
    %4757 = vdwg.mxu0
    %4758 = vmatpush.bf16.msra.mxu0 %v3686
    %4759 = vmatpush.bf16.msra.mxu0 %v3678
    %4760 = vmatpush.bf16.msra.mxu0 %v3670
    %4761 = vmatpush.bf16.msra.mxu0 %v3662
    %4762 = vmatpush.bf16.msra.mxu0 %v3654
    %4763 = vmatpush.bf16.msra.mxu0 %v3646
    %4764 = vmatpush.bf16.msra.mxu0 %v3638
    %4765 = vmatpush.bf16.msra.mxu0 %v3630
    %4766 = vmatmul.bf16.gmra.mxu0 %v1428
    %v4767 = vpop.f32.mrf.mxu0
    %v4768 = vadd.f32 %v4755, %v4767
    %v4769 = vpop.f32.mrf.mxu0
    %4770 = vdwg.mxu0
    %4771 = vmatpush.bf16.msra.mxu0 %v3750
    %4772 = vmatpush.bf16.msra.mxu0 %v3742
    %4773 = vmatpush.bf16.msra.mxu0 %v3734
    %4774 = vmatpush.bf16.msra.mxu0 %v3726
    %4775 = vmatpush.bf16.msra.mxu0 %v3718
    %4776 = vmatpush.bf16.msra.mxu0 %v3710
    %4777 = vmatpush.bf16.msra.mxu0 %v3702
    %4778 = vmatpush.bf16.msra.mxu0 %v3694
    %4779 = vmatmul.bf16.gmra.mxu0 %v1429
    %v4780 = vpop.f32.mrf.mxu0
    %v4781 = vadd.f32 %v4768, %v4780
    %v4782 = vpop.f32.mrf.mxu0
    %4783 = vdwg.mxu0
    %4784 = vmatpush.bf16.msra.mxu0 %v3814
    %4785 = vmatpush.bf16.msra.mxu0 %v3806
    %4786 = vmatpush.bf16.msra.mxu0 %v3798
    %4787 = vmatpush.bf16.msra.mxu0 %v3790
    %4788 = vmatpush.bf16.msra.mxu0 %v3782
    %4789 = vmatpush.bf16.msra.mxu0 %v3774
    %4790 = vmatpush.bf16.msra.mxu0 %v3766
    %4791 = vmatpush.bf16.msra.mxu0 %v3758
    %4792 = vmatmul.bf16.gmra.mxu0 %v1430
    %v4793 = vpop.f32.mrf.mxu0
    %v4794 = vadd.f32 %v4781, %v4793
    %v4795 = vpop.f32.mrf.mxu0
    %4796 = vdwg.mxu0
    %4797 = vmatpush.bf16.msra.mxu0 %v3878
    %4798 = vmatpush.bf16.msra.mxu0 %v3870
    %4799 = vmatpush.bf16.msra.mxu0 %v3862
    %4800 = vmatpush.bf16.msra.mxu0 %v3854
    %4801 = vmatpush.bf16.msra.mxu0 %v3846
    %4802 = vmatpush.bf16.msra.mxu0 %v3838
    %4803 = vmatpush.bf16.msra.mxu0 %v3830
    %4804 = vmatpush.bf16.msra.mxu0 %v3822
    %4805 = vmatmul.bf16.gmra.mxu0 %v1431
    %v4806 = vpop.f32.mrf.mxu0
    %v4807 = vadd.f32 %v4794, %v4806
    %v4808 = vpop.f32.mrf.mxu0
    %4809 = vdwg.mxu0
    %4810 = vmatpush.bf16.msra.mxu0 %v3942
    %4811 = vmatpush.bf16.msra.mxu0 %v3934
    %4812 = vmatpush.bf16.msra.mxu0 %v3926
    %4813 = vmatpush.bf16.msra.mxu0 %v3918
    %4814 = vmatpush.bf16.msra.mxu0 %v3910
    %4815 = vmatpush.bf16.msra.mxu0 %v3902
    %4816 = vmatpush.bf16.msra.mxu0 %v3894
    %4817 = vmatpush.bf16.msra.mxu0 %v3886
    %4818 = vmatmul.bf16.gmra.mxu0 %v1432
    %v4819 = vpop.f32.mrf.mxu0
    %v4820 = vadd.f32 %v4807, %v4819
    %v4821 = vpop.f32.mrf.mxu0
    %4822 = vdwg.mxu0
    %4823 = vmatpush.bf16.msra.mxu0 %v4006
    %4824 = vmatpush.bf16.msra.mxu0 %v3998
    %4825 = vmatpush.bf16.msra.mxu0 %v3990
    %4826 = vmatpush.bf16.msra.mxu0 %v3982
    %4827 = vmatpush.bf16.msra.mxu0 %v3974
    %4828 = vmatpush.bf16.msra.mxu0 %v3966
    %4829 = vmatpush.bf16.msra.mxu0 %v3958
    %4830 = vmatpush.bf16.msra.mxu0 %v3950
    %4831 = vmatmul.bf16.gmra.mxu0 %v1433
    %v4832 = vpop.f32.mrf.mxu0
    %v4833 = vadd.f32 %v4820, %v4832
    %v4834 = vpop.f32.mrf.mxu0
    %4835 = vdwg.mxu0
    %4836 = vmatpush.bf16.msra.mxu0 %v3559
    %4837 = vmatpush.bf16.msra.mxu0 %v3551
    %4838 = vmatpush.bf16.msra.mxu0 %v3543
    %4839 = vmatpush.bf16.msra.mxu0 %v3535
    %4840 = vmatpush.bf16.msra.mxu0 %v3527
    %4841 = vmatpush.bf16.msra.mxu0 %v3519
    %4842 = vmatpush.bf16.msra.mxu0 %v3511
    %4843 = vmatpush.bf16.msra.mxu0 %v3503
    %4844 = vmatmul.bf16.gmra.mxu0 %v1426
    %v4845 = vpop.f32.mrf.mxu0
    %v4846 = vadd.f32 %v1951, %v4845
    %v4847 = vpop.f32.mrf.mxu0
    %4848 = vdwg.mxu0
    %4849 = vmatpush.bf16.msra.mxu0 %v3623
    %4850 = vmatpush.bf16.msra.mxu0 %v3615
    %4851 = vmatpush.bf16.msra.mxu0 %v3607
    %4852 = vmatpush.bf16.msra.mxu0 %v3599
    %4853 = vmatpush.bf16.msra.mxu0 %v3591
    %4854 = vmatpush.bf16.msra.mxu0 %v3583
    %4855 = vmatpush.bf16.msra.mxu0 %v3575
    %4856 = vmatpush.bf16.msra.mxu0 %v3567
    %4857 = vmatmul.bf16.gmra.mxu0 %v1427
    %v4858 = vpop.f32.mrf.mxu0
    %v4859 = vadd.f32 %v4846, %v4858
    %v4860 = vpop.f32.mrf.mxu0
    %4861 = vdwg.mxu0
    %4862 = vmatpush.bf16.msra.mxu0 %v3687
    %4863 = vmatpush.bf16.msra.mxu0 %v3679
    %4864 = vmatpush.bf16.msra.mxu0 %v3671
    %4865 = vmatpush.bf16.msra.mxu0 %v3663
    %4866 = vmatpush.bf16.msra.mxu0 %v3655
    %4867 = vmatpush.bf16.msra.mxu0 %v3647
    %4868 = vmatpush.bf16.msra.mxu0 %v3639
    %4869 = vmatpush.bf16.msra.mxu0 %v3631
    %4870 = vmatmul.bf16.gmra.mxu0 %v1428
    %v4871 = vpop.f32.mrf.mxu0
    %v4872 = vadd.f32 %v4859, %v4871
    %v4873 = vpop.f32.mrf.mxu0
    %4874 = vdwg.mxu0
    %4875 = vmatpush.bf16.msra.mxu0 %v3751
    %4876 = vmatpush.bf16.msra.mxu0 %v3743
    %4877 = vmatpush.bf16.msra.mxu0 %v3735
    %4878 = vmatpush.bf16.msra.mxu0 %v3727
    %4879 = vmatpush.bf16.msra.mxu0 %v3719
    %4880 = vmatpush.bf16.msra.mxu0 %v3711
    %4881 = vmatpush.bf16.msra.mxu0 %v3703
    %4882 = vmatpush.bf16.msra.mxu0 %v3695
    %4883 = vmatmul.bf16.gmra.mxu0 %v1429
    %v4884 = vpop.f32.mrf.mxu0
    %v4885 = vadd.f32 %v4872, %v4884
    %v4886 = vpop.f32.mrf.mxu0
    %4887 = vdwg.mxu0
    %4888 = vmatpush.bf16.msra.mxu0 %v3815
    %4889 = vmatpush.bf16.msra.mxu0 %v3807
    %4890 = vmatpush.bf16.msra.mxu0 %v3799
    %4891 = vmatpush.bf16.msra.mxu0 %v3791
    %4892 = vmatpush.bf16.msra.mxu0 %v3783
    %4893 = vmatpush.bf16.msra.mxu0 %v3775
    %4894 = vmatpush.bf16.msra.mxu0 %v3767
    %4895 = vmatpush.bf16.msra.mxu0 %v3759
    %4896 = vmatmul.bf16.gmra.mxu0 %v1430
    %v4897 = vpop.f32.mrf.mxu0
    %v4898 = vadd.f32 %v4885, %v4897
    %v4899 = vpop.f32.mrf.mxu0
    %4900 = vdwg.mxu0
    %4901 = vmatpush.bf16.msra.mxu0 %v3879
    %4902 = vmatpush.bf16.msra.mxu0 %v3871
    %4903 = vmatpush.bf16.msra.mxu0 %v3863
    %4904 = vmatpush.bf16.msra.mxu0 %v3855
    %4905 = vmatpush.bf16.msra.mxu0 %v3847
    %4906 = vmatpush.bf16.msra.mxu0 %v3839
    %4907 = vmatpush.bf16.msra.mxu0 %v3831
    %4908 = vmatpush.bf16.msra.mxu0 %v3823
    %4909 = vmatmul.bf16.gmra.mxu0 %v1431
    %v4910 = vpop.f32.mrf.mxu0
    %v4911 = vadd.f32 %v4898, %v4910
    %v4912 = vpop.f32.mrf.mxu0
    %4913 = vdwg.mxu0
    %4914 = vmatpush.bf16.msra.mxu0 %v3943
    %4915 = vmatpush.bf16.msra.mxu0 %v3935
    %4916 = vmatpush.bf16.msra.mxu0 %v3927
    %4917 = vmatpush.bf16.msra.mxu0 %v3919
    %4918 = vmatpush.bf16.msra.mxu0 %v3911
    %4919 = vmatpush.bf16.msra.mxu0 %v3903
    %4920 = vmatpush.bf16.msra.mxu0 %v3895
    %4921 = vmatpush.bf16.msra.mxu0 %v3887
    %4922 = vmatmul.bf16.gmra.mxu0 %v1432
    %v4923 = vpop.f32.mrf.mxu0
    %v4924 = vadd.f32 %v4911, %v4923
    %v4925 = vpop.f32.mrf.mxu0
    %4926 = vdwg.mxu0
    %4927 = vmatpush.bf16.msra.mxu0 %v4007
    %4928 = vmatpush.bf16.msra.mxu0 %v3999
    %4929 = vmatpush.bf16.msra.mxu0 %v3991
    %4930 = vmatpush.bf16.msra.mxu0 %v3983
    %4931 = vmatpush.bf16.msra.mxu0 %v3975
    %4932 = vmatpush.bf16.msra.mxu0 %v3967
    %4933 = vmatpush.bf16.msra.mxu0 %v3959
    %4934 = vmatpush.bf16.msra.mxu0 %v3951
    %4935 = vmatmul.bf16.gmra.mxu0 %v1433
    %v4936 = vpop.f32.mrf.mxu0
    %v4937 = vadd.f32 %v4924, %v4936
    %v4938 = vpop.f32.mrf.mxu0
    %4939 = vdwg.mxu0
    %4940 = vmatpush.bf16.msra.mxu0 %v3560
    %4941 = vmatpush.bf16.msra.mxu0 %v3552
    %4942 = vmatpush.bf16.msra.mxu0 %v3544
    %4943 = vmatpush.bf16.msra.mxu0 %v3536
    %4944 = vmatpush.bf16.msra.mxu0 %v3528
    %4945 = vmatpush.bf16.msra.mxu0 %v3520
    %4946 = vmatpush.bf16.msra.mxu0 %v3512
    %4947 = vmatpush.bf16.msra.mxu0 %v3504
    %4948 = vmatmul.bf16.gmra.mxu0 %v1426
    %v4949 = vpop.f32.mrf.mxu0
    %v4950 = vadd.f32 %v1952, %v4949
    %v4951 = vpop.f32.mrf.mxu0
    %4952 = vdwg.mxu0
    %4953 = vmatpush.bf16.msra.mxu0 %v3624
    %4954 = vmatpush.bf16.msra.mxu0 %v3616
    %4955 = vmatpush.bf16.msra.mxu0 %v3608
    %4956 = vmatpush.bf16.msra.mxu0 %v3600
    %4957 = vmatpush.bf16.msra.mxu0 %v3592
    %4958 = vmatpush.bf16.msra.mxu0 %v3584
    %4959 = vmatpush.bf16.msra.mxu0 %v3576
    %4960 = vmatpush.bf16.msra.mxu0 %v3568
    %4961 = vmatmul.bf16.gmra.mxu0 %v1427
    %v4962 = vpop.f32.mrf.mxu0
    %v4963 = vadd.f32 %v4950, %v4962
    %v4964 = vpop.f32.mrf.mxu0
    %4965 = vdwg.mxu0
    %4966 = vmatpush.bf16.msra.mxu0 %v3688
    %4967 = vmatpush.bf16.msra.mxu0 %v3680
    %4968 = vmatpush.bf16.msra.mxu0 %v3672
    %4969 = vmatpush.bf16.msra.mxu0 %v3664
    %4970 = vmatpush.bf16.msra.mxu0 %v3656
    %4971 = vmatpush.bf16.msra.mxu0 %v3648
    %4972 = vmatpush.bf16.msra.mxu0 %v3640
    %4973 = vmatpush.bf16.msra.mxu0 %v3632
    %4974 = vmatmul.bf16.gmra.mxu0 %v1428
    %v4975 = vpop.f32.mrf.mxu0
    %v4976 = vadd.f32 %v4963, %v4975
    %v4977 = vpop.f32.mrf.mxu0
    %4978 = vdwg.mxu0
    %4979 = vmatpush.bf16.msra.mxu0 %v3752
    %4980 = vmatpush.bf16.msra.mxu0 %v3744
    %4981 = vmatpush.bf16.msra.mxu0 %v3736
    %4982 = vmatpush.bf16.msra.mxu0 %v3728
    %4983 = vmatpush.bf16.msra.mxu0 %v3720
    %4984 = vmatpush.bf16.msra.mxu0 %v3712
    %4985 = vmatpush.bf16.msra.mxu0 %v3704
    %4986 = vmatpush.bf16.msra.mxu0 %v3696
    %4987 = vmatmul.bf16.gmra.mxu0 %v1429
    %v4988 = vpop.f32.mrf.mxu0
    %v4989 = vadd.f32 %v4976, %v4988
    %v4990 = vpop.f32.mrf.mxu0
    %4991 = vdwg.mxu0
    %4992 = vmatpush.bf16.msra.mxu0 %v3816
    %4993 = vmatpush.bf16.msra.mxu0 %v3808
    %4994 = vmatpush.bf16.msra.mxu0 %v3800
    %4995 = vmatpush.bf16.msra.mxu0 %v3792
    %4996 = vmatpush.bf16.msra.mxu0 %v3784
    %4997 = vmatpush.bf16.msra.mxu0 %v3776
    %4998 = vmatpush.bf16.msra.mxu0 %v3768
    %4999 = vmatpush.bf16.msra.mxu0 %v3760
    %5000 = vmatmul.bf16.gmra.mxu0 %v1430
    %v5001 = vpop.f32.mrf.mxu0
    %v5002 = vadd.f32 %v4989, %v5001
    %v5003 = vpop.f32.mrf.mxu0
    %5004 = vdwg.mxu0
    %5005 = vmatpush.bf16.msra.mxu0 %v3880
    %5006 = vmatpush.bf16.msra.mxu0 %v3872
    %5007 = vmatpush.bf16.msra.mxu0 %v3864
    %5008 = vmatpush.bf16.msra.mxu0 %v3856
    %5009 = vmatpush.bf16.msra.mxu0 %v3848
    %5010 = vmatpush.bf16.msra.mxu0 %v3840
    %5011 = vmatpush.bf16.msra.mxu0 %v3832
    %5012 = vmatpush.bf16.msra.mxu0 %v3824
    %5013 = vmatmul.bf16.gmra.mxu0 %v1431
    %v5014 = vpop.f32.mrf.mxu0
    %v5015 = vadd.f32 %v5002, %v5014
    %v5016 = vpop.f32.mrf.mxu0
    %5017 = vdwg.mxu0
    %5018 = vmatpush.bf16.msra.mxu0 %v3944
    %5019 = vmatpush.bf16.msra.mxu0 %v3936
    %5020 = vmatpush.bf16.msra.mxu0 %v3928
    %5021 = vmatpush.bf16.msra.mxu0 %v3920
    %5022 = vmatpush.bf16.msra.mxu0 %v3912
    %5023 = vmatpush.bf16.msra.mxu0 %v3904
    %5024 = vmatpush.bf16.msra.mxu0 %v3896
    %5025 = vmatpush.bf16.msra.mxu0 %v3888
    %5026 = vmatmul.bf16.gmra.mxu0 %v1432
    %v5027 = vpop.f32.mrf.mxu0
    %v5028 = vadd.f32 %v5015, %v5027
    %v5029 = vpop.f32.mrf.mxu0
    %5030 = vdwg.mxu0
    %5031 = vmatpush.bf16.msra.mxu0 %v4008
    %5032 = vmatpush.bf16.msra.mxu0 %v4000
    %5033 = vmatpush.bf16.msra.mxu0 %v3992
    %5034 = vmatpush.bf16.msra.mxu0 %v3984
    %5035 = vmatpush.bf16.msra.mxu0 %v3976
    %5036 = vmatpush.bf16.msra.mxu0 %v3968
    %5037 = vmatpush.bf16.msra.mxu0 %v3960
    %5038 = vmatpush.bf16.msra.mxu0 %v3952
    %5039 = vmatmul.bf16.gmra.mxu0 %v1433
    %v5040 = vpop.f32.mrf.mxu0
    %v5041 = vadd.f32 %v5028, %v5040
    %v5042 = vpop.f32.mrf.mxu0
    %5043 = vdwg.mxu0
    %5044 = vmatpush.bf16.msra.mxu0 %v3561
    %5045 = vmatpush.bf16.msra.mxu0 %v3553
    %5046 = vmatpush.bf16.msra.mxu0 %v3545
    %5047 = vmatpush.bf16.msra.mxu0 %v3537
    %5048 = vmatpush.bf16.msra.mxu0 %v3529
    %5049 = vmatpush.bf16.msra.mxu0 %v3521
    %5050 = vmatpush.bf16.msra.mxu0 %v3513
    %5051 = vmatpush.bf16.msra.mxu0 %v3505
    %5052 = vmatmul.bf16.gmra.mxu0 %v1426
    %v5053 = vpop.f32.mrf.mxu0
    %v5054 = vadd.f32 %v1953, %v5053
    %v5055 = vpop.f32.mrf.mxu0
    %5056 = vdwg.mxu0
    %5057 = vmatpush.bf16.msra.mxu0 %v3625
    %5058 = vmatpush.bf16.msra.mxu0 %v3617
    %5059 = vmatpush.bf16.msra.mxu0 %v3609
    %5060 = vmatpush.bf16.msra.mxu0 %v3601
    %5061 = vmatpush.bf16.msra.mxu0 %v3593
    %5062 = vmatpush.bf16.msra.mxu0 %v3585
    %5063 = vmatpush.bf16.msra.mxu0 %v3577
    %5064 = vmatpush.bf16.msra.mxu0 %v3569
    %5065 = vmatmul.bf16.gmra.mxu0 %v1427
    %v5066 = vpop.f32.mrf.mxu0
    %v5067 = vadd.f32 %v5054, %v5066
    %v5068 = vpop.f32.mrf.mxu0
    %5069 = vdwg.mxu0
    %5070 = vmatpush.bf16.msra.mxu0 %v3689
    %5071 = vmatpush.bf16.msra.mxu0 %v3681
    %5072 = vmatpush.bf16.msra.mxu0 %v3673
    %5073 = vmatpush.bf16.msra.mxu0 %v3665
    %5074 = vmatpush.bf16.msra.mxu0 %v3657
    %5075 = vmatpush.bf16.msra.mxu0 %v3649
    %5076 = vmatpush.bf16.msra.mxu0 %v3641
    %5077 = vmatpush.bf16.msra.mxu0 %v3633
    %5078 = vmatmul.bf16.gmra.mxu0 %v1428
    %v5079 = vpop.f32.mrf.mxu0
    %v5080 = vadd.f32 %v5067, %v5079
    %v5081 = vpop.f32.mrf.mxu0
    %5082 = vdwg.mxu0
    %5083 = vmatpush.bf16.msra.mxu0 %v3753
    %5084 = vmatpush.bf16.msra.mxu0 %v3745
    %5085 = vmatpush.bf16.msra.mxu0 %v3737
    %5086 = vmatpush.bf16.msra.mxu0 %v3729
    %5087 = vmatpush.bf16.msra.mxu0 %v3721
    %5088 = vmatpush.bf16.msra.mxu0 %v3713
    %5089 = vmatpush.bf16.msra.mxu0 %v3705
    %5090 = vmatpush.bf16.msra.mxu0 %v3697
    %5091 = vmatmul.bf16.gmra.mxu0 %v1429
    %v5092 = vpop.f32.mrf.mxu0
    %v5093 = vadd.f32 %v5080, %v5092
    %v5094 = vpop.f32.mrf.mxu0
    %5095 = vdwg.mxu0
    %5096 = vmatpush.bf16.msra.mxu0 %v3817
    %5097 = vmatpush.bf16.msra.mxu0 %v3809
    %5098 = vmatpush.bf16.msra.mxu0 %v3801
    %5099 = vmatpush.bf16.msra.mxu0 %v3793
    %5100 = vmatpush.bf16.msra.mxu0 %v3785
    %5101 = vmatpush.bf16.msra.mxu0 %v3777
    %5102 = vmatpush.bf16.msra.mxu0 %v3769
    %5103 = vmatpush.bf16.msra.mxu0 %v3761
    %5104 = vmatmul.bf16.gmra.mxu0 %v1430
    %v5105 = vpop.f32.mrf.mxu0
    %v5106 = vadd.f32 %v5093, %v5105
    %v5107 = vpop.f32.mrf.mxu0
    %5108 = vdwg.mxu0
    %5109 = vmatpush.bf16.msra.mxu0 %v3881
    %5110 = vmatpush.bf16.msra.mxu0 %v3873
    %5111 = vmatpush.bf16.msra.mxu0 %v3865
    %5112 = vmatpush.bf16.msra.mxu0 %v3857
    %5113 = vmatpush.bf16.msra.mxu0 %v3849
    %5114 = vmatpush.bf16.msra.mxu0 %v3841
    %5115 = vmatpush.bf16.msra.mxu0 %v3833
    %5116 = vmatpush.bf16.msra.mxu0 %v3825
    %5117 = vmatmul.bf16.gmra.mxu0 %v1431
    %v5118 = vpop.f32.mrf.mxu0
    %v5119 = vadd.f32 %v5106, %v5118
    %v5120 = vpop.f32.mrf.mxu0
    %5121 = vdwg.mxu0
    %5122 = vmatpush.bf16.msra.mxu0 %v3945
    %5123 = vmatpush.bf16.msra.mxu0 %v3937
    %5124 = vmatpush.bf16.msra.mxu0 %v3929
    %5125 = vmatpush.bf16.msra.mxu0 %v3921
    %5126 = vmatpush.bf16.msra.mxu0 %v3913
    %5127 = vmatpush.bf16.msra.mxu0 %v3905
    %5128 = vmatpush.bf16.msra.mxu0 %v3897
    %5129 = vmatpush.bf16.msra.mxu0 %v3889
    %5130 = vmatmul.bf16.gmra.mxu0 %v1432
    %v5131 = vpop.f32.mrf.mxu0
    %v5132 = vadd.f32 %v5119, %v5131
    %v5133 = vpop.f32.mrf.mxu0
    %5134 = vdwg.mxu0
    %5135 = vmatpush.bf16.msra.mxu0 %v4009
    %5136 = vmatpush.bf16.msra.mxu0 %v4001
    %5137 = vmatpush.bf16.msra.mxu0 %v3993
    %5138 = vmatpush.bf16.msra.mxu0 %v3985
    %5139 = vmatpush.bf16.msra.mxu0 %v3977
    %5140 = vmatpush.bf16.msra.mxu0 %v3969
    %5141 = vmatpush.bf16.msra.mxu0 %v3961
    %5142 = vmatpush.bf16.msra.mxu0 %v3953
    %5143 = vmatmul.bf16.gmra.mxu0 %v1433
    %v5144 = vpop.f32.mrf.mxu0
    %v5145 = vadd.f32 %v5132, %v5144
    %v5146 = vpop.f32.mrf.mxu0
    %5147 = vdwg.mxu0
    %5148 = vmatpush.bf16.msra.mxu0 %v3562
    %5149 = vmatpush.bf16.msra.mxu0 %v3554
    %5150 = vmatpush.bf16.msra.mxu0 %v3546
    %5151 = vmatpush.bf16.msra.mxu0 %v3538
    %5152 = vmatpush.bf16.msra.mxu0 %v3530
    %5153 = vmatpush.bf16.msra.mxu0 %v3522
    %5154 = vmatpush.bf16.msra.mxu0 %v3514
    %5155 = vmatpush.bf16.msra.mxu0 %v3506
    %5156 = vmatmul.bf16.gmra.mxu0 %v1426
    %v5157 = vpop.f32.mrf.mxu0
    %v5158 = vadd.f32 %v1954, %v5157
    %v5159 = vpop.f32.mrf.mxu0
    %5160 = vdwg.mxu0
    %5161 = vmatpush.bf16.msra.mxu0 %v3626
    %5162 = vmatpush.bf16.msra.mxu0 %v3618
    %5163 = vmatpush.bf16.msra.mxu0 %v3610
    %5164 = vmatpush.bf16.msra.mxu0 %v3602
    %5165 = vmatpush.bf16.msra.mxu0 %v3594
    %5166 = vmatpush.bf16.msra.mxu0 %v3586
    %5167 = vmatpush.bf16.msra.mxu0 %v3578
    %5168 = vmatpush.bf16.msra.mxu0 %v3570
    %5169 = vmatmul.bf16.gmra.mxu0 %v1427
    %v5170 = vpop.f32.mrf.mxu0
    %v5171 = vadd.f32 %v5158, %v5170
    %v5172 = vpop.f32.mrf.mxu0
    %5173 = vdwg.mxu0
    %5174 = vmatpush.bf16.msra.mxu0 %v3690
    %5175 = vmatpush.bf16.msra.mxu0 %v3682
    %5176 = vmatpush.bf16.msra.mxu0 %v3674
    %5177 = vmatpush.bf16.msra.mxu0 %v3666
    %5178 = vmatpush.bf16.msra.mxu0 %v3658
    %5179 = vmatpush.bf16.msra.mxu0 %v3650
    %5180 = vmatpush.bf16.msra.mxu0 %v3642
    %5181 = vmatpush.bf16.msra.mxu0 %v3634
    %5182 = vmatmul.bf16.gmra.mxu0 %v1428
    %v5183 = vpop.f32.mrf.mxu0
    %v5184 = vadd.f32 %v5171, %v5183
    %v5185 = vpop.f32.mrf.mxu0
    %5186 = vdwg.mxu0
    %5187 = vmatpush.bf16.msra.mxu0 %v3754
    %5188 = vmatpush.bf16.msra.mxu0 %v3746
    %5189 = vmatpush.bf16.msra.mxu0 %v3738
    %5190 = vmatpush.bf16.msra.mxu0 %v3730
    %5191 = vmatpush.bf16.msra.mxu0 %v3722
    %5192 = vmatpush.bf16.msra.mxu0 %v3714
    %5193 = vmatpush.bf16.msra.mxu0 %v3706
    %5194 = vmatpush.bf16.msra.mxu0 %v3698
    %5195 = vmatmul.bf16.gmra.mxu0 %v1429
    %v5196 = vpop.f32.mrf.mxu0
    %v5197 = vadd.f32 %v5184, %v5196
    %v5198 = vpop.f32.mrf.mxu0
    %5199 = vdwg.mxu0
    %5200 = vmatpush.bf16.msra.mxu0 %v3818
    %5201 = vmatpush.bf16.msra.mxu0 %v3810
    %5202 = vmatpush.bf16.msra.mxu0 %v3802
    %5203 = vmatpush.bf16.msra.mxu0 %v3794
    %5204 = vmatpush.bf16.msra.mxu0 %v3786
    %5205 = vmatpush.bf16.msra.mxu0 %v3778
    %5206 = vmatpush.bf16.msra.mxu0 %v3770
    %5207 = vmatpush.bf16.msra.mxu0 %v3762
    %5208 = vmatmul.bf16.gmra.mxu0 %v1430
    %v5209 = vpop.f32.mrf.mxu0
    %v5210 = vadd.f32 %v5197, %v5209
    %v5211 = vpop.f32.mrf.mxu0
    %5212 = vdwg.mxu0
    %5213 = vmatpush.bf16.msra.mxu0 %v3882
    %5214 = vmatpush.bf16.msra.mxu0 %v3874
    %5215 = vmatpush.bf16.msra.mxu0 %v3866
    %5216 = vmatpush.bf16.msra.mxu0 %v3858
    %5217 = vmatpush.bf16.msra.mxu0 %v3850
    %5218 = vmatpush.bf16.msra.mxu0 %v3842
    %5219 = vmatpush.bf16.msra.mxu0 %v3834
    %5220 = vmatpush.bf16.msra.mxu0 %v3826
    %5221 = vmatmul.bf16.gmra.mxu0 %v1431
    %v5222 = vpop.f32.mrf.mxu0
    %v5223 = vadd.f32 %v5210, %v5222
    %v5224 = vpop.f32.mrf.mxu0
    %5225 = vdwg.mxu0
    %5226 = vmatpush.bf16.msra.mxu0 %v3946
    %5227 = vmatpush.bf16.msra.mxu0 %v3938
    %5228 = vmatpush.bf16.msra.mxu0 %v3930
    %5229 = vmatpush.bf16.msra.mxu0 %v3922
    %5230 = vmatpush.bf16.msra.mxu0 %v3914
    %5231 = vmatpush.bf16.msra.mxu0 %v3906
    %5232 = vmatpush.bf16.msra.mxu0 %v3898
    %5233 = vmatpush.bf16.msra.mxu0 %v3890
    %5234 = vmatmul.bf16.gmra.mxu0 %v1432
    %v5235 = vpop.f32.mrf.mxu0
    %v5236 = vadd.f32 %v5223, %v5235
    %v5237 = vpop.f32.mrf.mxu0
    %5238 = vdwg.mxu0
    %5239 = vmatpush.bf16.msra.mxu0 %v4010
    %5240 = vmatpush.bf16.msra.mxu0 %v4002
    %5241 = vmatpush.bf16.msra.mxu0 %v3994
    %5242 = vmatpush.bf16.msra.mxu0 %v3986
    %5243 = vmatpush.bf16.msra.mxu0 %v3978
    %5244 = vmatpush.bf16.msra.mxu0 %v3970
    %5245 = vmatpush.bf16.msra.mxu0 %v3962
    %5246 = vmatpush.bf16.msra.mxu0 %v3954
    %5247 = vmatmul.bf16.gmra.mxu0 %v1433
    %v5248 = vpop.f32.mrf.mxu0
    %v5249 = vadd.f32 %v5236, %v5248
    %v5250 = vpop.f32.mrf.mxu0
    %5251 = vdwg.mxu0
    %5252 = vmatpush.bf16.msra.mxu0 %v3563
    %5253 = vmatpush.bf16.msra.mxu0 %v3555
    %5254 = vmatpush.bf16.msra.mxu0 %v3547
    %5255 = vmatpush.bf16.msra.mxu0 %v3539
    %5256 = vmatpush.bf16.msra.mxu0 %v3531
    %5257 = vmatpush.bf16.msra.mxu0 %v3523
    %5258 = vmatpush.bf16.msra.mxu0 %v3515
    %5259 = vmatpush.bf16.msra.mxu0 %v3507
    %5260 = vmatmul.bf16.gmra.mxu0 %v1426
    %v5261 = vpop.f32.mrf.mxu0
    %v5262 = vadd.f32 %v1955, %v5261
    %v5263 = vpop.f32.mrf.mxu0
    %5264 = vdwg.mxu0
    %5265 = vmatpush.bf16.msra.mxu0 %v3627
    %5266 = vmatpush.bf16.msra.mxu0 %v3619
    %5267 = vmatpush.bf16.msra.mxu0 %v3611
    %5268 = vmatpush.bf16.msra.mxu0 %v3603
    %5269 = vmatpush.bf16.msra.mxu0 %v3595
    %5270 = vmatpush.bf16.msra.mxu0 %v3587
    %5271 = vmatpush.bf16.msra.mxu0 %v3579
    %5272 = vmatpush.bf16.msra.mxu0 %v3571
    %5273 = vmatmul.bf16.gmra.mxu0 %v1427
    %v5274 = vpop.f32.mrf.mxu0
    %v5275 = vadd.f32 %v5262, %v5274
    %v5276 = vpop.f32.mrf.mxu0
    %5277 = vdwg.mxu0
    %5278 = vmatpush.bf16.msra.mxu0 %v3691
    %5279 = vmatpush.bf16.msra.mxu0 %v3683
    %5280 = vmatpush.bf16.msra.mxu0 %v3675
    %5281 = vmatpush.bf16.msra.mxu0 %v3667
    %5282 = vmatpush.bf16.msra.mxu0 %v3659
    %5283 = vmatpush.bf16.msra.mxu0 %v3651
    %5284 = vmatpush.bf16.msra.mxu0 %v3643
    %5285 = vmatpush.bf16.msra.mxu0 %v3635
    %5286 = vmatmul.bf16.gmra.mxu0 %v1428
    %v5287 = vpop.f32.mrf.mxu0
    %v5288 = vadd.f32 %v5275, %v5287
    %v5289 = vpop.f32.mrf.mxu0
    %5290 = vdwg.mxu0
    %5291 = vmatpush.bf16.msra.mxu0 %v3755
    %5292 = vmatpush.bf16.msra.mxu0 %v3747
    %5293 = vmatpush.bf16.msra.mxu0 %v3739
    %5294 = vmatpush.bf16.msra.mxu0 %v3731
    %5295 = vmatpush.bf16.msra.mxu0 %v3723
    %5296 = vmatpush.bf16.msra.mxu0 %v3715
    %5297 = vmatpush.bf16.msra.mxu0 %v3707
    %5298 = vmatpush.bf16.msra.mxu0 %v3699
    %5299 = vmatmul.bf16.gmra.mxu0 %v1429
    %v5300 = vpop.f32.mrf.mxu0
    %v5301 = vadd.f32 %v5288, %v5300
    %v5302 = vpop.f32.mrf.mxu0
    %5303 = vdwg.mxu0
    %5304 = vmatpush.bf16.msra.mxu0 %v3819
    %5305 = vmatpush.bf16.msra.mxu0 %v3811
    %5306 = vmatpush.bf16.msra.mxu0 %v3803
    %5307 = vmatpush.bf16.msra.mxu0 %v3795
    %5308 = vmatpush.bf16.msra.mxu0 %v3787
    %5309 = vmatpush.bf16.msra.mxu0 %v3779
    %5310 = vmatpush.bf16.msra.mxu0 %v3771
    %5311 = vmatpush.bf16.msra.mxu0 %v3763
    %5312 = vmatmul.bf16.gmra.mxu0 %v1430
    %v5313 = vpop.f32.mrf.mxu0
    %v5314 = vadd.f32 %v5301, %v5313
    %v5315 = vpop.f32.mrf.mxu0
    %5316 = vdwg.mxu0
    %5317 = vmatpush.bf16.msra.mxu0 %v3883
    %5318 = vmatpush.bf16.msra.mxu0 %v3875
    %5319 = vmatpush.bf16.msra.mxu0 %v3867
    %5320 = vmatpush.bf16.msra.mxu0 %v3859
    %5321 = vmatpush.bf16.msra.mxu0 %v3851
    %5322 = vmatpush.bf16.msra.mxu0 %v3843
    %5323 = vmatpush.bf16.msra.mxu0 %v3835
    %5324 = vmatpush.bf16.msra.mxu0 %v3827
    %5325 = vmatmul.bf16.gmra.mxu0 %v1431
    %v5326 = vpop.f32.mrf.mxu0
    %v5327 = vadd.f32 %v5314, %v5326
    %v5328 = vpop.f32.mrf.mxu0
    %5329 = vdwg.mxu0
    %5330 = vmatpush.bf16.msra.mxu0 %v3947
    %5331 = vmatpush.bf16.msra.mxu0 %v3939
    %5332 = vmatpush.bf16.msra.mxu0 %v3931
    %5333 = vmatpush.bf16.msra.mxu0 %v3923
    %5334 = vmatpush.bf16.msra.mxu0 %v3915
    %5335 = vmatpush.bf16.msra.mxu0 %v3907
    %5336 = vmatpush.bf16.msra.mxu0 %v3899
    %5337 = vmatpush.bf16.msra.mxu0 %v3891
    %5338 = vmatmul.bf16.gmra.mxu0 %v1432
    %v5339 = vpop.f32.mrf.mxu0
    %v5340 = vadd.f32 %v5327, %v5339
    %v5341 = vpop.f32.mrf.mxu0
    %5342 = vdwg.mxu0
    %5343 = vmatpush.bf16.msra.mxu0 %v4011
    %5344 = vmatpush.bf16.msra.mxu0 %v4003
    %5345 = vmatpush.bf16.msra.mxu0 %v3995
    %5346 = vmatpush.bf16.msra.mxu0 %v3987
    %5347 = vmatpush.bf16.msra.mxu0 %v3979
    %5348 = vmatpush.bf16.msra.mxu0 %v3971
    %5349 = vmatpush.bf16.msra.mxu0 %v3963
    %5350 = vmatpush.bf16.msra.mxu0 %v3955
    %5351 = vmatmul.bf16.gmra.mxu0 %v1433
    %v5352 = vpop.f32.mrf.mxu0
    %v5353 = vadd.f32 %v5340, %v5352
    %v5354 = vpop.f32.mrf.mxu0
    %5355 = vdwg.mxu0
    %v5356 = vpack.c.bf16 %v4625, %v4625
    %v5357 = vpack.c.bf16 %v4729, %v4729
    %v5358 = vpack.c.bf16 %v4833, %v4833
    %v5359 = vpack.c.bf16 %v4937, %v4937
    %v5360 = vpack.c.bf16 %v5041, %v5041
    %v5361 = vpack.c.bf16 %v5145, %v5145
    %v5362 = vpack.c.bf16 %v5249, %v5249
    %v5363 = vpack.c.bf16 %v5353, %v5353
    %v5364 = vunpack.c.l.bf16 %v5356
    %v5365 = vunpack.c.l.bf16 %v5357
    %v5366 = vunpack.c.l.bf16 %v5358
    %v5367 = vunpack.c.l.bf16 %v5359
    %v5368 = vunpack.c.l.bf16 %v5360
    %v5369 = vunpack.c.l.bf16 %v5361
    %v5370 = vunpack.c.l.bf16 %v5362
    %v5371 = vunpack.c.l.bf16 %v5363
    %v5372 = vtanh.pop %v5364
    %v5373 = vtanh.pop %v5365
    %v5374 = vtanh.pop %v5366
    %v5375 = vtanh.pop %v5367
    %v5376 = vtanh.pop %v5368
    %v5377 = vtanh.pop %v5369
    %v5378 = vtanh.pop %v5370
    %v5379 = vtanh.pop %v5371
    %v5380 = vpack.c.bf16 %v5372, %v5372
    %v5381 = vpack.c.bf16 %v5373, %v5373
    %v5382 = vpack.c.bf16 %v5374, %v5374
    %v5383 = vpack.c.bf16 %v5375, %v5375
    %v5384 = vpack.c.bf16 %v5376, %v5376
    %v5385 = vpack.c.bf16 %v5377, %v5377
    %v5386 = vpack.c.bf16 %v5378, %v5378
    %v5387 = vpack.c.bf16 %v5379, %v5379
    %v5388 = vld [vmem:[#allocation13] sm:$0xff]
    %v5389 = vld [vmem:[#allocation13 + $0x8] sm:$0xff]
    %v5390 = vld [vmem:[#allocation13 + $0x10] sm:$0xff]
    %v5391 = vld [vmem:[#allocation13 + $0x18] sm:$0xff]
    %v5392 = vld [vmem:[#allocation13 + $0x20] sm:$0xff]
    %v5393 = vld [vmem:[#allocation13 + $0x28] sm:$0xff]
    %v5394 = vld [vmem:[#allocation13 + $0x30] sm:$0xff]
    %v5395 = vld [vmem:[#allocation13 + $0x38] sm:$0xff]
    %v5396 = vld [vmem:[#allocation13 + $0x40] sm:$0xff]
    %v5397 = vld [vmem:[#allocation13 + $0x48] sm:$0xff]
    %v5398 = vld [vmem:[#allocation13 + $0x50] sm:$0xff]
    %v5399 = vld [vmem:[#allocation13 + $0x58] sm:$0xff]
    %v5400 = vld [vmem:[#allocation13 + $0x60] sm:$0xff]
    %v5401 = vld [vmem:[#allocation13 + $0x68] sm:$0xff]
    %v5402 = vld [vmem:[#allocation13 + $0x70] sm:$0xff]
    %v5403 = vld [vmem:[#allocation13 + $0x78] sm:$0xff]
    %v5404 = vld [vmem:[#allocation13 + $0x80] sm:$0xff]
    %v5405 = vld [vmem:[#allocation13 + $0x88] sm:$0xff]
    %v5406 = vld [vmem:[#allocation13 + $0x90] sm:$0xff]
    %v5407 = vld [vmem:[#allocation13 + $0x98] sm:$0xff]
    %v5408 = vld [vmem:[#allocation13 + $0xa0] sm:$0xff]
    %v5409 = vld [vmem:[#allocation13 + $0xa8] sm:$0xff]
    %v5410 = vld [vmem:[#allocation13 + $0xb0] sm:$0xff]
    %v5411 = vld [vmem:[#allocation13 + $0xb8] sm:$0xff]
    %v5412 = vld [vmem:[#allocation13 + $0xc0] sm:$0xff]
    %v5413 = vld [vmem:[#allocation13 + $0xc8] sm:$0xff]
    %v5414 = vld [vmem:[#allocation13 + $0xd0] sm:$0xff]
    %v5415 = vld [vmem:[#allocation13 + $0xd8] sm:$0xff]
    %v5416 = vld [vmem:[#allocation13 + $0xe0] sm:$0xff]
    %v5417 = vld [vmem:[#allocation13 + $0xe8] sm:$0xff]
    %v5418 = vld [vmem:[#allocation13 + $0xf0] sm:$0xff]
    %v5419 = vld [vmem:[#allocation13 + $0xf8] sm:$0xff]
    %v5420 = vld [vmem:[#allocation13 + $0x100] sm:$0xff]
    %v5421 = vld [vmem:[#allocation13 + $0x108] sm:$0xff]
    %v5422 = vld [vmem:[#allocation13 + $0x110] sm:$0xff]
    %v5423 = vld [vmem:[#allocation13 + $0x118] sm:$0xff]
    %v5424 = vld [vmem:[#allocation13 + $0x120] sm:$0xff]
    %v5425 = vld [vmem:[#allocation13 + $0x128] sm:$0xff]
    %v5426 = vld [vmem:[#allocation13 + $0x130] sm:$0xff]
    %v5427 = vld [vmem:[#allocation13 + $0x138] sm:$0xff]
    %v5428 = vld [vmem:[#allocation13 + $0x140] sm:$0xff]
    %v5429 = vld [vmem:[#allocation13 + $0x148] sm:$0xff]
    %v5430 = vld [vmem:[#allocation13 + $0x150] sm:$0xff]
    %v5431 = vld [vmem:[#allocation13 + $0x158] sm:$0xff]
    %v5432 = vld [vmem:[#allocation13 + $0x160] sm:$0xff]
    %v5433 = vld [vmem:[#allocation13 + $0x168] sm:$0xff]
    %v5434 = vld [vmem:[#allocation13 + $0x170] sm:$0xff]
    %v5435 = vld [vmem:[#allocation13 + $0x178] sm:$0xff]
    %v5436 = vld [vmem:[#allocation13 + $0x180] sm:$0xff]
    %v5437 = vld [vmem:[#allocation13 + $0x188] sm:$0xff]
    %v5438 = vld [vmem:[#allocation13 + $0x190] sm:$0xff]
    %v5439 = vld [vmem:[#allocation13 + $0x198] sm:$0xff]
    %v5440 = vld [vmem:[#allocation13 + $0x1a0] sm:$0xff]
    %v5441 = vld [vmem:[#allocation13 + $0x1a8] sm:$0xff]
    %v5442 = vld [vmem:[#allocation13 + $0x1b0] sm:$0xff]
    %v5443 = vld [vmem:[#allocation13 + $0x1b8] sm:$0xff]
    %v5444 = vld [vmem:[#allocation13 + $0x1c0] sm:$0xff]
    %v5445 = vld [vmem:[#allocation13 + $0x1c8] sm:$0xff]
    %v5446 = vld [vmem:[#allocation13 + $0x1d0] sm:$0xff]
    %v5447 = vld [vmem:[#allocation13 + $0x1d8] sm:$0xff]
    %v5448 = vld [vmem:[#allocation13 + $0x1e0] sm:$0xff]
    %v5449 = vld [vmem:[#allocation13 + $0x1e8] sm:$0xff]
    %v5450 = vld [vmem:[#allocation13 + $0x1f0] sm:$0xff]
    %v5451 = vld [vmem:[#allocation13 + $0x1f8] sm:$0xff]
    %v5452 = vld [vmem:[#allocation13 + $0x200] sm:$0xff]
    %v5453 = vld [vmem:[#allocation13 + $0x208] sm:$0xff]
    %v5454 = vld [vmem:[#allocation13 + $0x210] sm:$0xff]
    %v5455 = vld [vmem:[#allocation13 + $0x218] sm:$0xff]
    %v5456 = vld [vmem:[#allocation13 + $0x220] sm:$0xff]
    %v5457 = vld [vmem:[#allocation13 + $0x228] sm:$0xff]
    %v5458 = vld [vmem:[#allocation13 + $0x230] sm:$0xff]
    %v5459 = vld [vmem:[#allocation13 + $0x238] sm:$0xff]
    %v5460 = vld [vmem:[#allocation13 + $0x240] sm:$0xff]
    %v5461 = vld [vmem:[#allocation13 + $0x248] sm:$0xff]
    %v5462 = vld [vmem:[#allocation13 + $0x250] sm:$0xff]
    %v5463 = vld [vmem:[#allocation13 + $0x258] sm:$0xff]
    %v5464 = vld [vmem:[#allocation13 + $0x260] sm:$0xff]
    %v5465 = vld [vmem:[#allocation13 + $0x268] sm:$0xff]
    %v5466 = vld [vmem:[#allocation13 + $0x270] sm:$0xff]
    %v5467 = vld [vmem:[#allocation13 + $0x278] sm:$0xff]
    %v5468 = vld [vmem:[#allocation13 + $0x280] sm:$0xff]
    %v5469 = vld [vmem:[#allocation13 + $0x288] sm:$0xff]
    %v5470 = vld [vmem:[#allocation13 + $0x290] sm:$0xff]
    %v5471 = vld [vmem:[#allocation13 + $0x298] sm:$0xff]
    %v5472 = vld [vmem:[#allocation13 + $0x2a0] sm:$0xff]
    %v5473 = vld [vmem:[#allocation13 + $0x2a8] sm:$0xff]
    %v5474 = vld [vmem:[#allocation13 + $0x2b0] sm:$0xff]
    %v5475 = vld [vmem:[#allocation13 + $0x2b8] sm:$0xff]
    %v5476 = vld [vmem:[#allocation13 + $0x2c0] sm:$0xff]
    %v5477 = vld [vmem:[#allocation13 + $0x2c8] sm:$0xff]
    %v5478 = vld [vmem:[#allocation13 + $0x2d0] sm:$0xff]
    %v5479 = vld [vmem:[#allocation13 + $0x2d8] sm:$0xff]
    %v5480 = vld [vmem:[#allocation13 + $0x2e0] sm:$0xff]
    %v5481 = vld [vmem:[#allocation13 + $0x2e8] sm:$0xff]
    %v5482 = vld [vmem:[#allocation13 + $0x2f0] sm:$0xff]
    %v5483 = vld [vmem:[#allocation13 + $0x2f8] sm:$0xff]
    %v5484 = vld [vmem:[#allocation13 + $0x300] sm:$0xff]
    %v5485 = vld [vmem:[#allocation13 + $0x308] sm:$0xff]
    %v5486 = vld [vmem:[#allocation13 + $0x310] sm:$0xff]
    %v5487 = vld [vmem:[#allocation13 + $0x318] sm:$0xff]
    %v5488 = vld [vmem:[#allocation13 + $0x320] sm:$0xff]
    %v5489 = vld [vmem:[#allocation13 + $0x328] sm:$0xff]
    %v5490 = vld [vmem:[#allocation13 + $0x330] sm:$0xff]
    %v5491 = vld [vmem:[#allocation13 + $0x338] sm:$0xff]
    %v5492 = vld [vmem:[#allocation13 + $0x340] sm:$0xff]
    %v5493 = vld [vmem:[#allocation13 + $0x348] sm:$0xff]
    %v5494 = vld [vmem:[#allocation13 + $0x350] sm:$0xff]
    %v5495 = vld [vmem:[#allocation13 + $0x358] sm:$0xff]
    %v5496 = vld [vmem:[#allocation13 + $0x360] sm:$0xff]
    %v5497 = vld [vmem:[#allocation13 + $0x368] sm:$0xff]
    %v5498 = vld [vmem:[#allocation13 + $0x370] sm:$0xff]
    %v5499 = vld [vmem:[#allocation13 + $0x378] sm:$0xff]
    %v5500 = vld [vmem:[#allocation13 + $0x380] sm:$0xff]
    %v5501 = vld [vmem:[#allocation13 + $0x388] sm:$0xff]
    %v5502 = vld [vmem:[#allocation13 + $0x390] sm:$0xff]
    %v5503 = vld [vmem:[#allocation13 + $0x398] sm:$0xff]
    %v5504 = vld [vmem:[#allocation13 + $0x3a0] sm:$0xff]
    %v5505 = vld [vmem:[#allocation13 + $0x3a8] sm:$0xff]
    %v5506 = vld [vmem:[#allocation13 + $0x3b0] sm:$0xff]
    %v5507 = vld [vmem:[#allocation13 + $0x3b8] sm:$0xff]
    %v5508 = vld [vmem:[#allocation13 + $0x3c0] sm:$0xff]
    %v5509 = vld [vmem:[#allocation13 + $0x3c8] sm:$0xff]
    %v5510 = vld [vmem:[#allocation13 + $0x3d0] sm:$0xff]
    %v5511 = vld [vmem:[#allocation13 + $0x3d8] sm:$0xff]
    %v5512 = vld [vmem:[#allocation13 + $0x3e0] sm:$0xff]
    %v5513 = vld [vmem:[#allocation13 + $0x3e8] sm:$0xff]
    %v5514 = vld [vmem:[#allocation13 + $0x3f0] sm:$0xff]
    %v5515 = vld [vmem:[#allocation13 + $0x3f8] sm:$0xff]
    %v5516 = vld [vmem:[#allocation14] sm:$0x3]
    %v5518 = vperm.slane %v5516, 0
    %v5519 = vperm.slane %v5516, 1
    %v5650 = vunpack.c.l.b16 %v5388
    %v5651 = vunpack.c.h.b16 %v5388
    %v5652 = vunpack.c.l.b16 %v5389
    %v5653 = vunpack.c.h.b16 %v5389
    %v5654 = vunpack.c.l.b16 %v5390
    %v5655 = vunpack.c.h.b16 %v5390
    %v5656 = vunpack.c.l.b16 %v5391
    %v5657 = vunpack.c.h.b16 %v5391
    %v5658 = vunpack.c.l.b16 %v5392
    %v5659 = vunpack.c.h.b16 %v5392
    %v5660 = vunpack.c.l.b16 %v5393
    %v5661 = vunpack.c.h.b16 %v5393
    %v5662 = vunpack.c.l.b16 %v5394
    %v5663 = vunpack.c.h.b16 %v5394
    %v5664 = vunpack.c.l.b16 %v5395
    %v5665 = vunpack.c.h.b16 %v5395
    %v5666 = vunpack.c.l.b16 %v5396
    %v5667 = vunpack.c.h.b16 %v5396
    %v5668 = vunpack.c.l.b16 %v5397
    %v5669 = vunpack.c.h.b16 %v5397
    %v5670 = vunpack.c.l.b16 %v5398
    %v5671 = vunpack.c.h.b16 %v5398
    %v5672 = vunpack.c.l.b16 %v5399
    %v5673 = vunpack.c.h.b16 %v5399
    %v5674 = vunpack.c.l.b16 %v5400
    %v5675 = vunpack.c.h.b16 %v5400
    %v5676 = vunpack.c.l.b16 %v5401
    %v5677 = vunpack.c.h.b16 %v5401
    %v5678 = vunpack.c.l.b16 %v5402
    %v5679 = vunpack.c.h.b16 %v5402
    %v5680 = vunpack.c.l.b16 %v5403
    %v5681 = vunpack.c.h.b16 %v5403
    %v5682 = vunpack.c.l.b16 %v5404
    %v5683 = vunpack.c.h.b16 %v5404
    %v5684 = vunpack.c.l.b16 %v5405
    %v5685 = vunpack.c.h.b16 %v5405
    %v5686 = vunpack.c.l.b16 %v5406
    %v5687 = vunpack.c.h.b16 %v5406
    %v5688 = vunpack.c.l.b16 %v5407
    %v5689 = vunpack.c.h.b16 %v5407
    %v5690 = vunpack.c.l.b16 %v5408
    %v5691 = vunpack.c.h.b16 %v5408
    %v5692 = vunpack.c.l.b16 %v5409
    %v5693 = vunpack.c.h.b16 %v5409
    %v5694 = vunpack.c.l.b16 %v5410
    %v5695 = vunpack.c.h.b16 %v5410
    %v5696 = vunpack.c.l.b16 %v5411
    %v5697 = vunpack.c.h.b16 %v5411
    %v5698 = vunpack.c.l.b16 %v5412
    %v5699 = vunpack.c.h.b16 %v5412
    %v5700 = vunpack.c.l.b16 %v5413
    %v5701 = vunpack.c.h.b16 %v5413
    %v5702 = vunpack.c.l.b16 %v5414
    %v5703 = vunpack.c.h.b16 %v5414
    %v5704 = vunpack.c.l.b16 %v5415
    %v5705 = vunpack.c.h.b16 %v5415
    %v5706 = vunpack.c.l.b16 %v5416
    %v5707 = vunpack.c.h.b16 %v5416
    %v5708 = vunpack.c.l.b16 %v5417
    %v5709 = vunpack.c.h.b16 %v5417
    %v5710 = vunpack.c.l.b16 %v5418
    %v5711 = vunpack.c.h.b16 %v5418
    %v5712 = vunpack.c.l.b16 %v5419
    %v5713 = vunpack.c.h.b16 %v5419
    %v5714 = vunpack.c.l.b16 %v5420
    %v5715 = vunpack.c.h.b16 %v5420
    %v5716 = vunpack.c.l.b16 %v5421
    %v5717 = vunpack.c.h.b16 %v5421
    %v5718 = vunpack.c.l.b16 %v5422
    %v5719 = vunpack.c.h.b16 %v5422
    %v5720 = vunpack.c.l.b16 %v5423
    %v5721 = vunpack.c.h.b16 %v5423
    %v5722 = vunpack.c.l.b16 %v5424
    %v5723 = vunpack.c.h.b16 %v5424
    %v5724 = vunpack.c.l.b16 %v5425
    %v5725 = vunpack.c.h.b16 %v5425
    %v5726 = vunpack.c.l.b16 %v5426
    %v5727 = vunpack.c.h.b16 %v5426
    %v5728 = vunpack.c.l.b16 %v5427
    %v5729 = vunpack.c.h.b16 %v5427
    %v5730 = vunpack.c.l.b16 %v5428
    %v5731 = vunpack.c.h.b16 %v5428
    %v5732 = vunpack.c.l.b16 %v5429
    %v5733 = vunpack.c.h.b16 %v5429
    %v5734 = vunpack.c.l.b16 %v5430
    %v5735 = vunpack.c.h.b16 %v5430
    %v5736 = vunpack.c.l.b16 %v5431
    %v5737 = vunpack.c.h.b16 %v5431
    %v5738 = vunpack.c.l.b16 %v5432
    %v5739 = vunpack.c.h.b16 %v5432
    %v5740 = vunpack.c.l.b16 %v5433
    %v5741 = vunpack.c.h.b16 %v5433
    %v5742 = vunpack.c.l.b16 %v5434
    %v5743 = vunpack.c.h.b16 %v5434
    %v5744 = vunpack.c.l.b16 %v5435
    %v5745 = vunpack.c.h.b16 %v5435
    %v5746 = vunpack.c.l.b16 %v5436
    %v5747 = vunpack.c.h.b16 %v5436
    %v5748 = vunpack.c.l.b16 %v5437
    %v5749 = vunpack.c.h.b16 %v5437
    %v5750 = vunpack.c.l.b16 %v5438
    %v5751 = vunpack.c.h.b16 %v5438
    %v5752 = vunpack.c.l.b16 %v5439
    %v5753 = vunpack.c.h.b16 %v5439
    %v5754 = vunpack.c.l.b16 %v5440
    %v5755 = vunpack.c.h.b16 %v5440
    %v5756 = vunpack.c.l.b16 %v5441
    %v5757 = vunpack.c.h.b16 %v5441
    %v5758 = vunpack.c.l.b16 %v5442
    %v5759 = vunpack.c.h.b16 %v5442
    %v5760 = vunpack.c.l.b16 %v5443
    %v5761 = vunpack.c.h.b16 %v5443
    %v5762 = vunpack.c.l.b16 %v5444
    %v5763 = vunpack.c.h.b16 %v5444
    %v5764 = vunpack.c.l.b16 %v5445
    %v5765 = vunpack.c.h.b16 %v5445
    %v5766 = vunpack.c.l.b16 %v5446
    %v5767 = vunpack.c.h.b16 %v5446
    %v5768 = vunpack.c.l.b16 %v5447
    %v5769 = vunpack.c.h.b16 %v5447
    %v5770 = vunpack.c.l.b16 %v5448
    %v5771 = vunpack.c.h.b16 %v5448
    %v5772 = vunpack.c.l.b16 %v5449
    %v5773 = vunpack.c.h.b16 %v5449
    %v5774 = vunpack.c.l.b16 %v5450
    %v5775 = vunpack.c.h.b16 %v5450
    %v5776 = vunpack.c.l.b16 %v5451
    %v5777 = vunpack.c.h.b16 %v5451
    %v5778 = vunpack.c.l.b16 %v5452
    %v5779 = vunpack.c.h.b16 %v5452
    %v5780 = vunpack.c.l.b16 %v5453
    %v5781 = vunpack.c.h.b16 %v5453
    %v5782 = vunpack.c.l.b16 %v5454
    %v5783 = vunpack.c.h.b16 %v5454
    %v5784 = vunpack.c.l.b16 %v5455
    %v5785 = vunpack.c.h.b16 %v5455
    %v5786 = vunpack.c.l.b16 %v5456
    %v5787 = vunpack.c.h.b16 %v5456
    %v5788 = vunpack.c.l.b16 %v5457
    %v5789 = vunpack.c.h.b16 %v5457
    %v5790 = vunpack.c.l.b16 %v5458
    %v5791 = vunpack.c.h.b16 %v5458
    %v5792 = vunpack.c.l.b16 %v5459
    %v5793 = vunpack.c.h.b16 %v5459
    %v5794 = vunpack.c.l.b16 %v5460
    %v5795 = vunpack.c.h.b16 %v5460
    %v5796 = vunpack.c.l.b16 %v5461
    %v5797 = vunpack.c.h.b16 %v5461
    %v5798 = vunpack.c.l.b16 %v5462
    %v5799 = vunpack.c.h.b16 %v5462
    %v5800 = vunpack.c.l.b16 %v5463
    %v5801 = vunpack.c.h.b16 %v5463
    %v5802 = vunpack.c.l.b16 %v5464
    %v5803 = vunpack.c.h.b16 %v5464
    %v5804 = vunpack.c.l.b16 %v5465
    %v5805 = vunpack.c.h.b16 %v5465
    %v5806 = vunpack.c.l.b16 %v5466
    %v5807 = vunpack.c.h.b16 %v5466
    %v5808 = vunpack.c.l.b16 %v5467
    %v5809 = vunpack.c.h.b16 %v5467
    %v5810 = vunpack.c.l.b16 %v5468
    %v5811 = vunpack.c.h.b16 %v5468
    %v5812 = vunpack.c.l.b16 %v5469
    %v5813 = vunpack.c.h.b16 %v5469
    %v5814 = vunpack.c.l.b16 %v5470
    %v5815 = vunpack.c.h.b16 %v5470
    %v5816 = vunpack.c.l.b16 %v5471
    %v5817 = vunpack.c.h.b16 %v5471
    %v5818 = vunpack.c.l.b16 %v5472
    %v5819 = vunpack.c.h.b16 %v5472
    %v5820 = vunpack.c.l.b16 %v5473
    %v5821 = vunpack.c.h.b16 %v5473
    %v5822 = vunpack.c.l.b16 %v5474
    %v5823 = vunpack.c.h.b16 %v5474
    %v5824 = vunpack.c.l.b16 %v5475
    %v5825 = vunpack.c.h.b16 %v5475
    %v5826 = vunpack.c.l.b16 %v5476
    %v5827 = vunpack.c.h.b16 %v5476
    %v5828 = vunpack.c.l.b16 %v5477
    %v5829 = vunpack.c.h.b16 %v5477
    %v5830 = vunpack.c.l.b16 %v5478
    %v5831 = vunpack.c.h.b16 %v5478
    %v5832 = vunpack.c.l.b16 %v5479
    %v5833 = vunpack.c.h.b16 %v5479
    %v5834 = vunpack.c.l.b16 %v5480
    %v5835 = vunpack.c.h.b16 %v5480
    %v5836 = vunpack.c.l.b16 %v5481
    %v5837 = vunpack.c.h.b16 %v5481
    %v5838 = vunpack.c.l.b16 %v5482
    %v5839 = vunpack.c.h.b16 %v5482
    %v5840 = vunpack.c.l.b16 %v5483
    %v5841 = vunpack.c.h.b16 %v5483
    %v5842 = vunpack.c.l.b16 %v5484
    %v5843 = vunpack.c.h.b16 %v5484
    %v5844 = vunpack.c.l.b16 %v5485
    %v5845 = vunpack.c.h.b16 %v5485
    %v5846 = vunpack.c.l.b16 %v5486
    %v5847 = vunpack.c.h.b16 %v5486
    %v5848 = vunpack.c.l.b16 %v5487
    %v5849 = vunpack.c.h.b16 %v5487
    %v5850 = vunpack.c.l.b16 %v5488
    %v5851 = vunpack.c.h.b16 %v5488
    %v5852 = vunpack.c.l.b16 %v5489
    %v5853 = vunpack.c.h.b16 %v5489
    %v5854 = vunpack.c.l.b16 %v5490
    %v5855 = vunpack.c.h.b16 %v5490
    %v5856 = vunpack.c.l.b16 %v5491
    %v5857 = vunpack.c.h.b16 %v5491
    %v5858 = vunpack.c.l.b16 %v5492
    %v5859 = vunpack.c.h.b16 %v5492
    %v5860 = vunpack.c.l.b16 %v5493
    %v5861 = vunpack.c.h.b16 %v5493
    %v5862 = vunpack.c.l.b16 %v5494
    %v5863 = vunpack.c.h.b16 %v5494
    %v5864 = vunpack.c.l.b16 %v5495
    %v5865 = vunpack.c.h.b16 %v5495
    %v5866 = vunpack.c.l.b16 %v5496
    %v5867 = vunpack.c.h.b16 %v5496
    %v5868 = vunpack.c.l.b16 %v5497
    %v5869 = vunpack.c.h.b16 %v5497
    %v5870 = vunpack.c.l.b16 %v5498
    %v5871 = vunpack.c.h.b16 %v5498
    %v5872 = vunpack.c.l.b16 %v5499
    %v5873 = vunpack.c.h.b16 %v5499
    %v5874 = vunpack.c.l.b16 %v5500
    %v5875 = vunpack.c.h.b16 %v5500
    %v5876 = vunpack.c.l.b16 %v5501
    %v5877 = vunpack.c.h.b16 %v5501
    %v5878 = vunpack.c.l.b16 %v5502
    %v5879 = vunpack.c.h.b16 %v5502
    %v5880 = vunpack.c.l.b16 %v5503
    %v5881 = vunpack.c.h.b16 %v5503
    %v5882 = vunpack.c.l.b16 %v5504
    %v5883 = vunpack.c.h.b16 %v5504
    %v5884 = vunpack.c.l.b16 %v5505
    %v5885 = vunpack.c.h.b16 %v5505
    %v5886 = vunpack.c.l.b16 %v5506
    %v5887 = vunpack.c.h.b16 %v5506
    %v5888 = vunpack.c.l.b16 %v5507
    %v5889 = vunpack.c.h.b16 %v5507
    %v5890 = vunpack.c.l.b16 %v5508
    %v5891 = vunpack.c.h.b16 %v5508
    %v5892 = vunpack.c.l.b16 %v5509
    %v5893 = vunpack.c.h.b16 %v5509
    %v5894 = vunpack.c.l.b16 %v5510
    %v5895 = vunpack.c.h.b16 %v5510
    %v5896 = vunpack.c.l.b16 %v5511
    %v5897 = vunpack.c.h.b16 %v5511
    %v5898 = vunpack.c.l.b16 %v5512
    %v5899 = vunpack.c.h.b16 %v5512
    %v5900 = vunpack.c.l.b16 %v5513
    %v5901 = vunpack.c.h.b16 %v5513
    %v5902 = vunpack.c.l.b16 %v5514
    %v5903 = vunpack.c.h.b16 %v5514
    %v5904 = vunpack.c.l.b16 %v5515
    %v5905 = vunpack.c.h.b16 %v5515
    %v5906 = vpack.c.b16 %v5652, %v5650
    %v5907 = vpack.c.b16 %v5653, %v5651
    %v5908 = vpack.c.b16 %v5656, %v5654
    %v5909 = vpack.c.b16 %v5657, %v5655
    %v5910 = vpack.c.b16 %v5660, %v5658
    %v5911 = vpack.c.b16 %v5661, %v5659
    %v5912 = vpack.c.b16 %v5664, %v5662
    %v5913 = vpack.c.b16 %v5665, %v5663
    %v5914 = vpack.c.b16 %v5668, %v5666
    %v5915 = vpack.c.b16 %v5669, %v5667
    %v5916 = vpack.c.b16 %v5672, %v5670
    %v5917 = vpack.c.b16 %v5673, %v5671
    %v5918 = vpack.c.b16 %v5676, %v5674
    %v5919 = vpack.c.b16 %v5677, %v5675
    %v5920 = vpack.c.b16 %v5680, %v5678
    %v5921 = vpack.c.b16 %v5681, %v5679
    %v5922 = vpack.c.b16 %v5684, %v5682
    %v5923 = vpack.c.b16 %v5685, %v5683
    %v5924 = vpack.c.b16 %v5688, %v5686
    %v5925 = vpack.c.b16 %v5689, %v5687
    %v5926 = vpack.c.b16 %v5692, %v5690
    %v5927 = vpack.c.b16 %v5693, %v5691
    %v5928 = vpack.c.b16 %v5696, %v5694
    %v5929 = vpack.c.b16 %v5697, %v5695
    %v5930 = vpack.c.b16 %v5700, %v5698
    %v5931 = vpack.c.b16 %v5701, %v5699
    %v5932 = vpack.c.b16 %v5704, %v5702
    %v5933 = vpack.c.b16 %v5705, %v5703
    %v5934 = vpack.c.b16 %v5708, %v5706
    %v5935 = vpack.c.b16 %v5709, %v5707
    %v5936 = vpack.c.b16 %v5712, %v5710
    %v5937 = vpack.c.b16 %v5713, %v5711
    %v5938 = vpack.c.b16 %v5716, %v5714
    %v5939 = vpack.c.b16 %v5717, %v5715
    %v5940 = vpack.c.b16 %v5720, %v5718
    %v5941 = vpack.c.b16 %v5721, %v5719
    %v5942 = vpack.c.b16 %v5724, %v5722
    %v5943 = vpack.c.b16 %v5725, %v5723
    %v5944 = vpack.c.b16 %v5728, %v5726
    %v5945 = vpack.c.b16 %v5729, %v5727
    %v5946 = vpack.c.b16 %v5732, %v5730
    %v5947 = vpack.c.b16 %v5733, %v5731
    %v5948 = vpack.c.b16 %v5736, %v5734
    %v5949 = vpack.c.b16 %v5737, %v5735
    %v5950 = vpack.c.b16 %v5740, %v5738
    %v5951 = vpack.c.b16 %v5741, %v5739
    %v5952 = vpack.c.b16 %v5744, %v5742
    %v5953 = vpack.c.b16 %v5745, %v5743
    %v5954 = vpack.c.b16 %v5748, %v5746
    %v5955 = vpack.c.b16 %v5749, %v5747
    %v5956 = vpack.c.b16 %v5752, %v5750
    %v5957 = vpack.c.b16 %v5753, %v5751
    %v5958 = vpack.c.b16 %v5756, %v5754
    %v5959 = vpack.c.b16 %v5757, %v5755
    %v5960 = vpack.c.b16 %v5760, %v5758
    %v5961 = vpack.c.b16 %v5761, %v5759
    %v5962 = vpack.c.b16 %v5764, %v5762
    %v5963 = vpack.c.b16 %v5765, %v5763
    %v5964 = vpack.c.b16 %v5768, %v5766
    %v5965 = vpack.c.b16 %v5769, %v5767
    %v5966 = vpack.c.b16 %v5772, %v5770
    %v5967 = vpack.c.b16 %v5773, %v5771
    %v5968 = vpack.c.b16 %v5776, %v5774
    %v5969 = vpack.c.b16 %v5777, %v5775
    %v5970 = vpack.c.b16 %v5780, %v5778
    %v5971 = vpack.c.b16 %v5781, %v5779
    %v5972 = vpack.c.b16 %v5784, %v5782
    %v5973 = vpack.c.b16 %v5785, %v5783
    %v5974 = vpack.c.b16 %v5788, %v5786
    %v5975 = vpack.c.b16 %v5789, %v5787
    %v5976 = vpack.c.b16 %v5792, %v5790
    %v5977 = vpack.c.b16 %v5793, %v5791
    %v5978 = vpack.c.b16 %v5796, %v5794
    %v5979 = vpack.c.b16 %v5797, %v5795
    %v5980 = vpack.c.b16 %v5800, %v5798
    %v5981 = vpack.c.b16 %v5801, %v5799
    %v5982 = vpack.c.b16 %v5804, %v5802
    %v5983 = vpack.c.b16 %v5805, %v5803
    %v5984 = vpack.c.b16 %v5808, %v5806
    %v5985 = vpack.c.b16 %v5809, %v5807
    %v5986 = vpack.c.b16 %v5812, %v5810
    %v5987 = vpack.c.b16 %v5813, %v5811
    %v5988 = vpack.c.b16 %v5816, %v5814
    %v5989 = vpack.c.b16 %v5817, %v5815
    %v5990 = vpack.c.b16 %v5820, %v5818
    %v5991 = vpack.c.b16 %v5821, %v5819
    %v5992 = vpack.c.b16 %v5824, %v5822
    %v5993 = vpack.c.b16 %v5825, %v5823
    %v5994 = vpack.c.b16 %v5828, %v5826
    %v5995 = vpack.c.b16 %v5829, %v5827
    %v5996 = vpack.c.b16 %v5832, %v5830
    %v5997 = vpack.c.b16 %v5833, %v5831
    %v5998 = vpack.c.b16 %v5836, %v5834
    %v5999 = vpack.c.b16 %v5837, %v5835
    %v6000 = vpack.c.b16 %v5840, %v5838
    %v6001 = vpack.c.b16 %v5841, %v5839
    %v6002 = vpack.c.b16 %v5844, %v5842
    %v6003 = vpack.c.b16 %v5845, %v5843
    %v6004 = vpack.c.b16 %v5848, %v5846
    %v6005 = vpack.c.b16 %v5849, %v5847
    %v6006 = vpack.c.b16 %v5852, %v5850
    %v6007 = vpack.c.b16 %v5853, %v5851
    %v6008 = vpack.c.b16 %v5856, %v5854
    %v6009 = vpack.c.b16 %v5857, %v5855
    %v6010 = vpack.c.b16 %v5860, %v5858
    %v6011 = vpack.c.b16 %v5861, %v5859
    %v6012 = vpack.c.b16 %v5864, %v5862
    %v6013 = vpack.c.b16 %v5865, %v5863
    %v6014 = vpack.c.b16 %v5868, %v5866
    %v6015 = vpack.c.b16 %v5869, %v5867
    %v6016 = vpack.c.b16 %v5872, %v5870
    %v6017 = vpack.c.b16 %v5873, %v5871
    %v6018 = vpack.c.b16 %v5876, %v5874
    %v6019 = vpack.c.b16 %v5877, %v5875
    %v6020 = vpack.c.b16 %v5880, %v5878
    %v6021 = vpack.c.b16 %v5881, %v5879
    %v6022 = vpack.c.b16 %v5884, %v5882
    %v6023 = vpack.c.b16 %v5885, %v5883
    %v6024 = vpack.c.b16 %v5888, %v5886
    %v6025 = vpack.c.b16 %v5889, %v5887
    %v6026 = vpack.c.b16 %v5892, %v5890
    %v6027 = vpack.c.b16 %v5893, %v5891
    %v6028 = vpack.c.b16 %v5896, %v5894
    %v6029 = vpack.c.b16 %v5897, %v5895
    %v6030 = vpack.c.b16 %v5900, %v5898
    %v6031 = vpack.c.b16 %v5901, %v5899
    %v6032 = vpack.c.b16 %v5904, %v5902
    %v6033 = vpack.c.b16 %v5905, %v5903
    %6162 = vmatpush.bf16.msra.mxu0 %v5920
    %6163 = vmatpush.bf16.msra.mxu0 %v5918
    %6164 = vmatpush.bf16.msra.mxu0 %v5916
    %6165 = vmatpush.bf16.msra.mxu0 %v5914
    %6166 = vmatpush.bf16.msra.mxu0 %v5912
    %6167 = vmatpush.bf16.msra.mxu0 %v5910
    %6168 = vmatpush.bf16.msra.mxu0 %v5908
    %6169 = vmatpush.bf16.msra.mxu0 %v5906
    %6170 = vmatmul.bf16.gmra.mxu0 %v5380
    %v6171 = vpop.f32.mrf.mxu0
    %v6172 = vadd.f32 %v5518, %v6171
    %v6173 = vpop.f32.mrf.mxu0
    %6174 = vdwg.mxu0
    %6175 = vmatpush.bf16.msra.mxu0 %v5936
    %6176 = vmatpush.bf16.msra.mxu0 %v5934
    %6177 = vmatpush.bf16.msra.mxu0 %v5932
    %6178 = vmatpush.bf16.msra.mxu0 %v5930
    %6179 = vmatpush.bf16.msra.mxu0 %v5928
    %6180 = vmatpush.bf16.msra.mxu0 %v5926
    %6181 = vmatpush.bf16.msra.mxu0 %v5924
    %6182 = vmatpush.bf16.msra.mxu0 %v5922
    %6183 = vmatmul.bf16.gmra.mxu0 %v5381
    %v6184 = vpop.f32.mrf.mxu0
    %v6185 = vadd.f32 %v6172, %v6184
    %v6186 = vpop.f32.mrf.mxu0
    %6187 = vdwg.mxu0
    %6188 = vmatpush.bf16.msra.mxu0 %v5952
    %6189 = vmatpush.bf16.msra.mxu0 %v5950
    %6190 = vmatpush.bf16.msra.mxu0 %v5948
    %6191 = vmatpush.bf16.msra.mxu0 %v5946
    %6192 = vmatpush.bf16.msra.mxu0 %v5944
    %6193 = vmatpush.bf16.msra.mxu0 %v5942
    %6194 = vmatpush.bf16.msra.mxu0 %v5940
    %6195 = vmatpush.bf16.msra.mxu0 %v5938
    %6196 = vmatmul.bf16.gmra.mxu0 %v5382
    %v6197 = vpop.f32.mrf.mxu0
    %v6198 = vadd.f32 %v6185, %v6197
    %v6199 = vpop.f32.mrf.mxu0
    %6200 = vdwg.mxu0
    %6201 = vmatpush.bf16.msra.mxu0 %v5968
    %6202 = vmatpush.bf16.msra.mxu0 %v5966
    %6203 = vmatpush.bf16.msra.mxu0 %v5964
    %6204 = vmatpush.bf16.msra.mxu0 %v5962
    %6205 = vmatpush.bf16.msra.mxu0 %v5960
    %6206 = vmatpush.bf16.msra.mxu0 %v5958
    %6207 = vmatpush.bf16.msra.mxu0 %v5956
    %6208 = vmatpush.bf16.msra.mxu0 %v5954
    %6209 = vmatmul.bf16.gmra.mxu0 %v5383
    %v6210 = vpop.f32.mrf.mxu0
    %v6211 = vadd.f32 %v6198, %v6210
    %v6212 = vpop.f32.mrf.mxu0
    %6213 = vdwg.mxu0
    %6214 = vmatpush.bf16.msra.mxu0 %v5984
    %6215 = vmatpush.bf16.msra.mxu0 %v5982
    %6216 = vmatpush.bf16.msra.mxu0 %v5980
    %6217 = vmatpush.bf16.msra.mxu0 %v5978
    %6218 = vmatpush.bf16.msra.mxu0 %v5976
    %6219 = vmatpush.bf16.msra.mxu0 %v5974
    %6220 = vmatpush.bf16.msra.mxu0 %v5972
    %6221 = vmatpush.bf16.msra.mxu0 %v5970
    %6222 = vmatmul.bf16.gmra.mxu0 %v5384
    %v6223 = vpop.f32.mrf.mxu0
    %v6224 = vadd.f32 %v6211, %v6223
    %v6225 = vpop.f32.mrf.mxu0
    %6226 = vdwg.mxu0
    %6227 = vmatpush.bf16.msra.mxu0 %v6000
    %6228 = vmatpush.bf16.msra.mxu0 %v5998
    %6229 = vmatpush.bf16.msra.mxu0 %v5996
    %6230 = vmatpush.bf16.msra.mxu0 %v5994
    %6231 = vmatpush.bf16.msra.mxu0 %v5992
    %6232 = vmatpush.bf16.msra.mxu0 %v5990
    %6233 = vmatpush.bf16.msra.mxu0 %v5988
    %6234 = vmatpush.bf16.msra.mxu0 %v5986
    %6235 = vmatmul.bf16.gmra.mxu0 %v5385
    %v6236 = vpop.f32.mrf.mxu0
    %v6237 = vadd.f32 %v6224, %v6236
    %v6238 = vpop.f32.mrf.mxu0
    %6239 = vdwg.mxu0
    %6240 = vmatpush.bf16.msra.mxu0 %v6016
    %6241 = vmatpush.bf16.msra.mxu0 %v6014
    %6242 = vmatpush.bf16.msra.mxu0 %v6012
    %6243 = vmatpush.bf16.msra.mxu0 %v6010
    %6244 = vmatpush.bf16.msra.mxu0 %v6008
    %6245 = vmatpush.bf16.msra.mxu0 %v6006
    %6246 = vmatpush.bf16.msra.mxu0 %v6004
    %6247 = vmatpush.bf16.msra.mxu0 %v6002
    %6248 = vmatmul.bf16.gmra.mxu0 %v5386
    %v6249 = vpop.f32.mrf.mxu0
    %v6250 = vadd.f32 %v6237, %v6249
    %v6251 = vpop.f32.mrf.mxu0
    %6252 = vdwg.mxu0
    %6253 = vmatpush.bf16.msra.mxu0 %v6032
    %6254 = vmatpush.bf16.msra.mxu0 %v6030
    %6255 = vmatpush.bf16.msra.mxu0 %v6028
    %6256 = vmatpush.bf16.msra.mxu0 %v6026
    %6257 = vmatpush.bf16.msra.mxu0 %v6024
    %6258 = vmatpush.bf16.msra.mxu0 %v6022
    %6259 = vmatpush.bf16.msra.mxu0 %v6020
    %6260 = vmatpush.bf16.msra.mxu0 %v6018
    %6261 = vmatmul.bf16.gmra.mxu0 %v5387
    %v6262 = vpop.f32.mrf.mxu0
    %v6263 = vadd.f32 %v6250, %v6262
    %v6264 = vpop.f32.mrf.mxu0
    %6265 = vdwg.mxu0
    %6266 = vmatpush.bf16.msra.mxu0 %v5921
    %6267 = vmatpush.bf16.msra.mxu0 %v5919
    %6268 = vmatpush.bf16.msra.mxu0 %v5917
    %6269 = vmatpush.bf16.msra.mxu0 %v5915
    %6270 = vmatpush.bf16.msra.mxu0 %v5913
    %6271 = vmatpush.bf16.msra.mxu0 %v5911
    %6272 = vmatpush.bf16.msra.mxu0 %v5909
    %6273 = vmatpush.bf16.msra.mxu0 %v5907
    %6274 = vmatmul.bf16.gmra.mxu0 %v5380
    %v6275 = vpop.f32.mrf.mxu0
    %v6276 = vadd.f32 %v5519, %v6275
    %v6277 = vpop.f32.mrf.mxu0
    %6278 = vdwg.mxu0
    %6279 = vmatpush.bf16.msra.mxu0 %v5937
    %6280 = vmatpush.bf16.msra.mxu0 %v5935
    %6281 = vmatpush.bf16.msra.mxu0 %v5933
    %6282 = vmatpush.bf16.msra.mxu0 %v5931
    %6283 = vmatpush.bf16.msra.mxu0 %v5929
    %6284 = vmatpush.bf16.msra.mxu0 %v5927
    %6285 = vmatpush.bf16.msra.mxu0 %v5925
    %6286 = vmatpush.bf16.msra.mxu0 %v5923
    %6287 = vmatmul.bf16.gmra.mxu0 %v5381
    %v6288 = vpop.f32.mrf.mxu0
    %v6289 = vadd.f32 %v6276, %v6288
    %v6290 = vpop.f32.mrf.mxu0
    %6291 = vdwg.mxu0
    %6292 = vmatpush.bf16.msra.mxu0 %v5953
    %6293 = vmatpush.bf16.msra.mxu0 %v5951
    %6294 = vmatpush.bf16.msra.mxu0 %v5949
    %6295 = vmatpush.bf16.msra.mxu0 %v5947
    %6296 = vmatpush.bf16.msra.mxu0 %v5945
    %6297 = vmatpush.bf16.msra.mxu0 %v5943
    %6298 = vmatpush.bf16.msra.mxu0 %v5941
    %6299 = vmatpush.bf16.msra.mxu0 %v5939
    %6300 = vmatmul.bf16.gmra.mxu0 %v5382
    %v6301 = vpop.f32.mrf.mxu0
    %v6302 = vadd.f32 %v6289, %v6301
    %v6303 = vpop.f32.mrf.mxu0
    %6304 = vdwg.mxu0
    %6305 = vmatpush.bf16.msra.mxu0 %v5969
    %6306 = vmatpush.bf16.msra.mxu0 %v5967
    %6307 = vmatpush.bf16.msra.mxu0 %v5965
    %6308 = vmatpush.bf16.msra.mxu0 %v5963
    %6309 = vmatpush.bf16.msra.mxu0 %v5961
    %6310 = vmatpush.bf16.msra.mxu0 %v5959
    %6311 = vmatpush.bf16.msra.mxu0 %v5957
    %6312 = vmatpush.bf16.msra.mxu0 %v5955
    %6313 = vmatmul.bf16.gmra.mxu0 %v5383
    %v6314 = vpop.f32.mrf.mxu0
    %v6315 = vadd.f32 %v6302, %v6314
    %v6316 = vpop.f32.mrf.mxu0
    %6317 = vdwg.mxu0
    %6318 = vmatpush.bf16.msra.mxu0 %v5985
    %6319 = vmatpush.bf16.msra.mxu0 %v5983
    %6320 = vmatpush.bf16.msra.mxu0 %v5981
    %6321 = vmatpush.bf16.msra.mxu0 %v5979
    %6322 = vmatpush.bf16.msra.mxu0 %v5977
    %6323 = vmatpush.bf16.msra.mxu0 %v5975
    %6324 = vmatpush.bf16.msra.mxu0 %v5973
    %6325 = vmatpush.bf16.msra.mxu0 %v5971
    %6326 = vmatmul.bf16.gmra.mxu0 %v5384
    %v6327 = vpop.f32.mrf.mxu0
    %v6328 = vadd.f32 %v6315, %v6327
    %v6329 = vpop.f32.mrf.mxu0
    %6330 = vdwg.mxu0
    %6331 = vmatpush.bf16.msra.mxu0 %v6001
    %6332 = vmatpush.bf16.msra.mxu0 %v5999
    %6333 = vmatpush.bf16.msra.mxu0 %v5997
    %6334 = vmatpush.bf16.msra.mxu0 %v5995
    %6335 = vmatpush.bf16.msra.mxu0 %v5993
    %6336 = vmatpush.bf16.msra.mxu0 %v5991
    %6337 = vmatpush.bf16.msra.mxu0 %v5989
    %6338 = vmatpush.bf16.msra.mxu0 %v5987
    %6339 = vmatmul.bf16.gmra.mxu0 %v5385
    %v6340 = vpop.f32.mrf.mxu0
    %v6341 = vadd.f32 %v6328, %v6340
    %v6342 = vpop.f32.mrf.mxu0
    %6343 = vdwg.mxu0
    %6344 = vmatpush.bf16.msra.mxu0 %v6017
    %6345 = vmatpush.bf16.msra.mxu0 %v6015
    %6346 = vmatpush.bf16.msra.mxu0 %v6013
    %6347 = vmatpush.bf16.msra.mxu0 %v6011
    %6348 = vmatpush.bf16.msra.mxu0 %v6009
    %6349 = vmatpush.bf16.msra.mxu0 %v6007
    %6350 = vmatpush.bf16.msra.mxu0 %v6005
    %6351 = vmatpush.bf16.msra.mxu0 %v6003
    %6352 = vmatmul.bf16.gmra.mxu0 %v5386
    %v6353 = vpop.f32.mrf.mxu0
    %v6354 = vadd.f32 %v6341, %v6353
    %v6355 = vpop.f32.mrf.mxu0
    %6356 = vdwg.mxu0
    %6357 = vmatpush.bf16.msra.mxu0 %v6033
    %6358 = vmatpush.bf16.msra.mxu0 %v6031
    %6359 = vmatpush.bf16.msra.mxu0 %v6029
    %6360 = vmatpush.bf16.msra.mxu0 %v6027
    %6361 = vmatpush.bf16.msra.mxu0 %v6025
    %6362 = vmatpush.bf16.msra.mxu0 %v6023
    %6363 = vmatpush.bf16.msra.mxu0 %v6021
    %6364 = vmatpush.bf16.msra.mxu0 %v6019
    %6365 = vmatmul.bf16.gmra.mxu0 %v5387
    %v6366 = vpop.f32.mrf.mxu0
    %v6367 = vadd.f32 %v6354, %v6366
    %v6368 = vpop.f32.mrf.mxu0
    %6369 = vdwg.mxu0
    %v6370 = vpack.c.bf16 %v6263, %v6263
    %v6371 = vpack.c.bf16 %v6367, %v6367
    %v6372 = vunpack.c.l.bf16 %v6370
    %v6373 = vunpack.c.l.bf16 %v6371
    %v6374 = vtanh.pop %v6372
    %v6375 = vtanh.pop %v6373
    %v6376 = vpack.c.bf16 %v6374, %v6374
    %v6377 = vpack.c.bf16 %v6375, %v6375
    %v6378 = vld [vmem:[#allocation16] sm:$0xf]
    %v6379 = vld [vmem:[#allocation16 + $0x4] sm:$0xf]
    %v6380 = vld [vmem:[#allocation16 + $0x8] sm:$0xf]
    %v6381 = vld [vmem:[#allocation16 + $0xc] sm:$0xf]
    %v6382 = vld [vmem:[#allocation16 + $0x10] sm:$0xf]
    %v6383 = vld [vmem:[#allocation16 + $0x14] sm:$0xf]
    %v6384 = vld [vmem:[#allocation16 + $0x18] sm:$0xf]
    %v6385 = vld [vmem:[#allocation16 + $0x1c] sm:$0xf]
    %v6386 = vld [vmem:[#allocation16 + $0x20] sm:$0xf]
    %v6387 = vld [vmem:[#allocation16 + $0x24] sm:$0xf]
    %v6388 = vld [vmem:[#allocation16 + $0x28] sm:$0xf]
    %v6389 = vld [vmem:[#allocation16 + $0x2c] sm:$0xf]
    %v6390 = vld [vmem:[#allocation16 + $0x30] sm:$0xf]
    %v6391 = vld [vmem:[#allocation16 + $0x34] sm:$0xf]
    %v6392 = vld [vmem:[#allocation16 + $0x38] sm:$0xf]
    %v6393 = vld [vmem:[#allocation16 + $0x3c] sm:$0xf]
    %v6394 = vld [vmem:[#allocation16 + $0x40] sm:$0xf]
    %v6395 = vld [vmem:[#allocation16 + $0x44] sm:$0xf]
    %v6396 = vld [vmem:[#allocation16 + $0x48] sm:$0xf]
    %v6397 = vld [vmem:[#allocation16 + $0x4c] sm:$0xf]
    %v6398 = vld [vmem:[#allocation16 + $0x50] sm:$0xf]
    %v6399 = vld [vmem:[#allocation16 + $0x54] sm:$0xf]
    %v6400 = vld [vmem:[#allocation16 + $0x58] sm:$0xf]
    %v6401 = vld [vmem:[#allocation16 + $0x5c] sm:$0xf]
    %v6402 = vld [vmem:[#allocation16 + $0x60] sm:$0xf]
    %v6403 = vld [vmem:[#allocation16 + $0x64] sm:$0xf]
    %v6404 = vld [vmem:[#allocation16 + $0x68] sm:$0xf]
    %v6405 = vld [vmem:[#allocation16 + $0x6c] sm:$0xf]
    %v6406 = vld [vmem:[#allocation16 + $0x70] sm:$0xf]
    %v6407 = vld [vmem:[#allocation16 + $0x74] sm:$0xf]
    %v6408 = vld [vmem:[#allocation16 + $0x78] sm:$0xf]
    %v6409 = vld [vmem:[#allocation16 + $0x7c] sm:$0xf]
    %v6410 = vld [vmem:[#allocation17] sm:$0x1]
    %v6412 = vperm.slane %v6410, 0
    %v6446 = vunpack.c.l.b16 %v6378
    %v6447 = vunpack.c.l.b16 %v6379
    %v6448 = vunpack.c.l.b16 %v6380
    %v6449 = vunpack.c.l.b16 %v6381
    %v6450 = vunpack.c.l.b16 %v6382
    %v6451 = vunpack.c.l.b16 %v6383
    %v6452 = vunpack.c.l.b16 %v6384
    %v6453 = vunpack.c.l.b16 %v6385
    %v6454 = vunpack.c.l.b16 %v6386
    %v6455 = vunpack.c.l.b16 %v6387
    %v6456 = vunpack.c.l.b16 %v6388
    %v6457 = vunpack.c.l.b16 %v6389
    %v6458 = vunpack.c.l.b16 %v6390
    %v6459 = vunpack.c.l.b16 %v6391
    %v6460 = vunpack.c.l.b16 %v6392
    %v6461 = vunpack.c.l.b16 %v6393
    %v6462 = vunpack.c.l.b16 %v6394
    %v6463 = vunpack.c.l.b16 %v6395
    %v6464 = vunpack.c.l.b16 %v6396
    %v6465 = vunpack.c.l.b16 %v6397
    %v6466 = vunpack.c.l.b16 %v6398
    %v6467 = vunpack.c.l.b16 %v6399
    %v6468 = vunpack.c.l.b16 %v6400
    %v6469 = vunpack.c.l.b16 %v6401
    %v6470 = vunpack.c.l.b16 %v6402
    %v6471 = vunpack.c.l.b16 %v6403
    %v6472 = vunpack.c.l.b16 %v6404
    %v6473 = vunpack.c.l.b16 %v6405
    %v6474 = vunpack.c.l.b16 %v6406
    %v6475 = vunpack.c.l.b16 %v6407
    %v6476 = vunpack.c.l.b16 %v6408
    %v6477 = vunpack.c.l.b16 %v6409
    %v6478 = vpack.c.b16 %v6447, %v6446
    %v6479 = vpack.c.b16 %v6449, %v6448
    %v6480 = vpack.c.b16 %v6451, %v6450
    %v6481 = vpack.c.b16 %v6453, %v6452
    %v6482 = vpack.c.b16 %v6455, %v6454
    %v6483 = vpack.c.b16 %v6457, %v6456
    %v6484 = vpack.c.b16 %v6459, %v6458
    %v6485 = vpack.c.b16 %v6461, %v6460
    %v6486 = vpack.c.b16 %v6463, %v6462
    %v6487 = vpack.c.b16 %v6465, %v6464
    %v6488 = vpack.c.b16 %v6467, %v6466
    %v6489 = vpack.c.b16 %v6469, %v6468
    %v6490 = vpack.c.b16 %v6471, %v6470
    %v6491 = vpack.c.b16 %v6473, %v6472
    %v6492 = vpack.c.b16 %v6475, %v6474
    %v6493 = vpack.c.b16 %v6477, %v6476
    %6510 = vmatpush.bf16.msra.mxu0 %v6485
    %6511 = vmatpush.bf16.msra.mxu0 %v6484
    %6512 = vmatpush.bf16.msra.mxu0 %v6483
    %6513 = vmatpush.bf16.msra.mxu0 %v6482
    %6514 = vmatpush.bf16.msra.mxu0 %v6481
    %6515 = vmatpush.bf16.msra.mxu0 %v6480
    %6516 = vmatpush.bf16.msra.mxu0 %v6479
    %6517 = vmatpush.bf16.msra.mxu0 %v6478
    %6518 = vmatmul.bf16.gmra.mxu0 %v6376
    %v6519 = vpop.f32.mrf.mxu0
    %v6520 = vadd.f32 %v6412, %v6519
    %v6521 = vpop.f32.mrf.mxu0
    %6522 = vdwg.mxu0
    %6523 = vmatpush.bf16.msra.mxu0 %v6493
    %6524 = vmatpush.bf16.msra.mxu0 %v6492
    %6525 = vmatpush.bf16.msra.mxu0 %v6491
    %6526 = vmatpush.bf16.msra.mxu0 %v6490
    %6527 = vmatpush.bf16.msra.mxu0 %v6489
    %6528 = vmatpush.bf16.msra.mxu0 %v6488
    %6529 = vmatpush.bf16.msra.mxu0 %v6487
    %6530 = vmatpush.bf16.msra.mxu0 %v6486
    %6531 = vmatmul.bf16.gmra.mxu0 %v6377
    %v6532 = vpop.f32.mrf.mxu0
    %v6533 = vadd.f32 %v6520, %v6532
    %v6534 = vpop.f32.mrf.mxu0
    %6535 = vdwg.mxu0
    %v6536 = vpack.c.bf16 %v6533, %v6533
    %v6537 = vunpack.c.l.bf16 %v6536
    %v6538 = vtanh.pop %v6537
    %v6539 = vpack.c.bf16 %v6538, %v6538
    %v6540 = vld [vmem:[#allocation19] sm:$0xf]
    %v6541 = vld [vmem:[#allocation19 + $0x4] sm:$0xf]
    %v6542 = vld [vmem:[#allocation19 + $0x8] sm:$0xf]
    %v6543 = vld [vmem:[#allocation19 + $0xc] sm:$0xf]
    %v6544 = vld [vmem:[#allocation19 + $0x10] sm:$0xf]
    %v6545 = vld [vmem:[#allocation19 + $0x14] sm:$0xf]
    %v6546 = vld [vmem:[#allocation19 + $0x18] sm:$0xf]
    %v6547 = vld [vmem:[#allocation19 + $0x1c] sm:$0xf]
    %v6548 = vld [vmem:[#allocation19 + $0x20] sm:$0xf]
    %v6549 = vld [vmem:[#allocation19 + $0x24] sm:$0xf]
    %v6550 = vld [vmem:[#allocation19 + $0x28] sm:$0xf]
    %v6551 = vld [vmem:[#allocation19 + $0x2c] sm:$0xf]
    %v6552 = vld [vmem:[#allocation19 + $0x30] sm:$0xf]
    %v6553 = vld [vmem:[#allocation19 + $0x34] sm:$0xf]
    %v6554 = vld [vmem:[#allocation19 + $0x38] sm:$0xf]
    %v6555 = vld [vmem:[#allocation19 + $0x3c] sm:$0xf]
    %v6556 = vld [vmem:[#allocation20] sm:$0x1]
    %v6558 = vperm.slane %v6556, 0
    %v6576 = vunpack.c.l.b16 %v6540
    %v6577 = vunpack.c.l.b16 %v6541
    %v6578 = vunpack.c.l.b16 %v6542
    %v6579 = vunpack.c.l.b16 %v6543
    %v6580 = vunpack.c.l.b16 %v6544
    %v6581 = vunpack.c.l.b16 %v6545
    %v6582 = vunpack.c.l.b16 %v6546
    %v6583 = vunpack.c.l.b16 %v6547
    %v6584 = vunpack.c.l.b16 %v6548
    %v6585 = vunpack.c.l.b16 %v6549
    %v6586 = vunpack.c.l.b16 %v6550
    %v6587 = vunpack.c.l.b16 %v6551
    %v6588 = vunpack.c.l.b16 %v6552
    %v6589 = vunpack.c.l.b16 %v6553
    %v6590 = vunpack.c.l.b16 %v6554
    %v6591 = vunpack.c.l.b16 %v6555
    %v6592 = vpack.c.b16 %v6577, %v6576
    %v6593 = vpack.c.b16 %v6579, %v6578
    %v6594 = vpack.c.b16 %v6581, %v6580
    %v6595 = vpack.c.b16 %v6583, %v6582
    %v6596 = vpack.c.b16 %v6585, %v6584
    %v6597 = vpack.c.b16 %v6587, %v6586
    %v6598 = vpack.c.b16 %v6589, %v6588
    %v6599 = vpack.c.b16 %v6591, %v6590
    %6608 = vmatpush.bf16.msra.mxu0 %v6599
    %6609 = vmatpush.bf16.msra.mxu0 %v6598
    %6610 = vmatpush.bf16.msra.mxu0 %v6597
    %6611 = vmatpush.bf16.msra.mxu0 %v6596
    %6612 = vmatpush.bf16.msra.mxu0 %v6595
    %6613 = vmatpush.bf16.msra.mxu0 %v6594
    %6614 = vmatpush.bf16.msra.mxu0 %v6593
    %6615 = vmatpush.bf16.msra.mxu0 %v6592
    %6616 = vmatmul.bf16.gmra.mxu0 %v6539
    %v6617 = vpop.f32.mrf.mxu0
    %v6618 = vadd.f32 %v6558, %v6617
    %v6619 = vpop.f32.mrf.mxu0
    %6620 = vdwg.mxu0
    %v6621 = vsel %vm245, %v6618, -inf
    %6622 = vmax.xlane.f32.xlu0 %v6621
    %v6623 = vpop.xlane.xlu0 %6622
    %v6624 = vsub.f32 %v6618, %v6623
    %v6625 = vmul.f32 %v6624, 1.442695
    %v6626 = vpow.pop %v6625
    %v6627 = vsel %vm245, %v6626, 0.0
    %6628 = vadd.xlane.f32.xlu0 %v6627
    %v6629 = vpop.xlane.xlu0 %6628
    %v6630 = vrcp.pop %v6629
    %v6631 = vmul.f32 %v6629, %v6630
    %v6632 = vsub.f32 1.0, %v6631
    %v6633 = vmul.f32 %v6630, %v6632
    %v6634 = vadd.f32 %v6630, %v6633
    %vm6635 = vweird.f32 %v6629
    %vm6636 = vweird.f32 %v6630
    %vm6637 = vmor %vm6635, %vm6636
    %v6638 = vsel %vm6637, %v6630, %v6634
    %v6639 = vand.u32 2147483647, %v6629
    %vm6640 = vcmp.eq.f32.partialorder %v6639, 8.507059e+37
    %v6641 = vand.u32 %v6629, 2147483648
    %v6642 = vor.u32 1.1754944e-38, %v6641
    %v6643 = vsel %vm6640, %v6642, %v6638
    %v6644 = vmul.f32 %v6626, %v6643
    %6645 = vst [vmem:[#allocation22] sm:$0x3] %v6644
    // Predicated region
    $region102: #{classification_forward.1} parent=1 // pred_check
      _
    $region103: #{classification_forward.1} parent=1 // pred_check_branch
      %6647 = sbr.rel (0) target = $region105
    $region104: #{classification_forward.1} parent=1 // pred_region
      %6649 = vsyncadd [#allocation4], 0
      %s6651 = sshll.u32 [#allocation22], 4
      %s6652 = int_to_ptr.vmem [resolvable:$true] %s6651
      %s6653 = sshll.u32 %s13, 4
      %s6654 = int_to_ptr.hbm [resolvable:$true] %s6653
      %6656 = dma.vmem_to_hbm [thread:$0]  %s6652, 32, %s6654, [#allocation4]
    $region105: #{classification_forward.1} parent=1 // pred_fallthru
      _
    // Predicated region
    $region106: #{classification_forward.1} parent=1 // pred_check
      _
    $region107: #{classification_forward.1} parent=1 // pred_check_branch
      %6658 = sbr.rel (0) target = $region109
    $region108: #{classification_forward.1} parent=1 // pred_region
      %6660 = dma.done [#allocation4], 32
    $region109: #{classification_forward.1} parent=1 // pred_fallthru
      _
    %6661 = vsyncpa [#allocation3], 1
    %6662 = vsyncpa [#allocation6], 1
    %6663 = vsyncpa [#allocation9], 1
    %6664 = vsyncpa [#allocation12], 1
    %6665 = vsyncpa [#allocation15], 1
    %6666 = vsyncpa [#allocation18], 1
    %6667 = vsyncpa [#allocation21], 1
    %6668 = vsyncpa [#allocation4], 1

</llo_original>
